<compile_context>
chip_gen: v6e
topology: v6e:2x2x1
jax: 0.10.0
libtpu: 0.0.40
codegen_flags: <defaults>
</compile_context>

<pallas_src>
import functools
import math

import jax
import jax.numpy as jnp
from jax import lax
from jax.experimental import pallas as pl
from jax.experimental.pallas import tpu as pltpu

_NEG_BIG = -1e30      # bias padding so padded vocab columns never win the argmax
_LANE = 128
_SUBLANE_BF16 = 16    # bf16 packs 16 sublanes per vreg


def _round_up(x, m):
    return (x + m - 1) // m * m


def _nbytes(shape, dtype):
    return math.prod(shape) * jnp.dtype(dtype).itemsize


def _decoder_kernel(enc_ref, emb_ref, wxec_ref, wxemb_ref, wh_ref, bg_ref,
                    wout_ref, bout_ref,
                    logits_ref, hout_ref, cout_ref, *, sos_id):
    TB, Hp = enc_ref.shape
    Vp = emb_ref.shape[0]
    T = logits_ref.shape[0]
    wdt = emb_ref.dtype                      # MXU operand dtype (bf16 by default)

    def dot(a, b):
        return jnp.dot(a, b, preferred_element_type=jnp.float32)

    enc = enc_ref[...]                       # (TB, Hp)   f32
    emb_tbl = emb_ref[...]                   # (Vp, Hp)   wdt
    wx_emb = wxemb_ref[...]                  # (Hp, 4Hp)  wdt
    wh = wh_ref[...]                         # (Hp, 4Hp)  wdt
    wout = wout_ref[...]                     # (Hp, Vp)   wdt

    # Loop-invariant gate contribution of enc and context(==enc) plus fused bias.
    gates_enc = dot(enc.astype(wdt), wxec_ref[...]) + bg_ref[...]   # (TB, 4Hp) f32

    # Hoisted broadcasts: JAX does not CSE broadcast_in_dim, so build these once
    # instead of T times inside the unrolled loop.
    bout_b = jnp.broadcast_to(bout_ref[...], (TB, Vp))              # (TB, Vp)  f32
    ids = lax.broadcasted_iota(jnp.int32, (TB, Vp), 1)              # onehot + argmax
    # TODO(synk): at large TB*Vp regenerate `ids` per step instead of pinning it
    #             across the fully-unrolled T loop (vreg pressure / spills).

    tok0 = jnp.full((TB, 1), sos_id, dtype=jnp.int32)

    def step(t, carry):
        h, c, tok = carry                                   # (TB,Hp),(TB,Hp),(TB,1)

        # Embedding lookup as a one-hot matmul, built directly in the MXU dtype.
        onehot = (ids == tok).astype(wdt)                   # (TB, Vp)
        embedded = dot(onehot, emb_tbl)                     # (TB, Hp) f32

        # Fused LSTM gates: x@Wx + h@Wh + b with x = [enc, embedded, context].
        gates = (gates_enc
                 + dot(embedded.astype(wdt), wx_emb)
                 + dot(h.astype(wdt), wh))                  # (TB, 4Hp) f32
        i_g = jax.nn.sigmoid(gates[:, 0 * Hp:1 * Hp])
        f_g = jax.nn.sigmoid(gates[:, 1 * Hp:2 * Hp])
        g_g = jnp.tanh(gates[:, 2 * Hp:3 * Hp])
        o_g = jax.nn.sigmoid(gates[:, 3 * Hp:4 * Hp])
        c_new = f_g * c + i_g * g_g
        h_new = o_g * jnp.tanh(c_new)

        # Output projection; (TB, Vp) is a dense, unmasked lane-aligned store.
        logits = dot(h_new.astype(wdt), wout) + bout_b
        logits_ref[t] = logits

        # Greedy next token: first argmax (matches torch.topk(1) tie-breaking).
        m = jnp.max(logits, axis=-1, keepdims=True)
        cand = jnp.where(logits == m, ids, Vp)
        tok_next = jnp.min(cand, axis=-1, keepdims=True).astype(jnp.int32)
        return (h_new, c_new, tok_next)

    # Small, static T: fully unroll so the LLO scheduler sees across steps.
    h_fin, c_fin, _ = lax.fori_loop(0, T, step, (enc, enc, tok0), unroll=True)
    hout_ref[...] = h_fin
    cout_ref[...] = c_fin


def attn_decoder_lstm(params, encoder_outputs, *, max_seq_length, sos_id,
                      weight_dtype=jnp.bfloat16):
    """Greedy decode.

    Returns (decoder_outputs (B,T,V), (h (1,B,H), c (1,B,H)), attentions (B,T,1)).
    Pass weight_dtype=jnp.float32 for an exact-f32 validation mode.
    """
    B, H = encoder_outputs.shape
    V = params["emb"].shape[0]
    T = max_seq_length
    Hp = _round_up(H, _LANE)
    Vp = _round_up(V, _LANE)

    # ---- batch tiling: big tiles (MXU rows / packed bf16 sublanes), but prefer
    # an even number of tiles so v7x's two TensorCores both get work. ----------
    TB = min(_round_up(B, _SUBLANE_BF16), 128)
    if _round_up(B, TB) // TB == 1 and TB >= 2 * _SUBLANE_BF16:
        TB = _round_up(-(-B // 2), _SUBLANE_BF16)           # split batch into 2 tiles
    Bp = _round_up(B, TB)
    nb = Bp // TB

    f32 = jnp.float32
    wdt = weight_dtype

    # ---- pad / fuse / transpose parameters (wrapper-side, done once) ----
    enc_p = jnp.pad(encoder_outputs.astype(f32), ((0, Bp - B), (0, Hp - H)))

    emb_p = jnp.pad(params["emb"], ((0, Vp - V), (0, Hp - H))).astype(wdt)

    W_ih, W_hh = params["W_ih"], params["W_hh"]           # (4H, 3H), (4H, H)
    b_all = params["b_ih"] + params["b_hh"]               # (4H,)
    Wx = W_ih.T                                           # (3H, 4H): rows = [enc|emb|ctx]
    wx_ec_raw = Wx[0:H] + Wx[2 * H:3 * H]                 # enc + context(==enc) parts
    wx_emb_raw = Wx[H:2 * H]                              # embedded part
    wh_raw = W_hh.T                                       # (H, 4H)

    def pad_gate_cols(w):                                 # (H,4H) -> (Hp,4Hp), per gate
        blocks = [jnp.pad(w[:, k * H:(k + 1) * H], ((0, Hp - H), (0, Hp - H)))
                  for k in range(4)]
        return jnp.concatenate(blocks, axis=1)

    wx_ec_p = pad_gate_cols(wx_ec_raw).astype(wdt)
    wx_emb_p = pad_gate_cols(wx_emb_raw).astype(wdt)
    wh_p = pad_gate_cols(wh_raw).astype(wdt)
    bg_p = jnp.concatenate(
        [jnp.pad(b_all[k * H:(k + 1) * H], (0, Hp - H)) for k in range(4)]
    )[None, :].astype(f32)                                # (1, 4Hp)

    wout_p = jnp.pad(params["W_out"].T, ((0, Hp - H), (0, Vp - V))).astype(wdt)
    bout_p = jnp.pad(params["b_out"], (0, Vp - V),
                     constant_values=_NEG_BIG)[None, :].astype(f32)   # (1, Vp)

    # Constant-index weights: never re-DMAed, so single-buffer them (halves the
    # weight VMEM footprint vs the default double-buffering).
    def const(shape):
        return pl.BlockSpec(shape, lambda b: (0,) * len(shape),
                            pipeline_mode=pl.Buffered(buffer_count=1))

    grid_spec = pltpu.PrefetchScalarGridSpec(
        num_scalar_prefetch=0,
        grid=(nb,),
        in_specs=[
            pl.BlockSpec((TB, Hp), lambda b: (b, 0)),         # enc (batch-tiled)
            const((Vp, Hp)),                                  # embedding table
            const((Hp, 4 * Hp)),                              # Wx_enc + Wx_ctx (fused)
            const((Hp, 4 * Hp)),                              # Wx_emb (fused)
            const((Hp, 4 * Hp)),                              # Wh (fused)
            const((1, 4 * Hp)),                               # fused gate bias
            const((Hp, Vp)),                                  # output projection
            const((1, Vp)),                                   # output bias (padded -1e30)
        ],
        out_specs=[
            pl.BlockSpec((T, TB, Vp), lambda b: (0, b, 0)),   # time-major logits
            pl.BlockSpec((TB, Hp), lambda b: (b, 0)),         # final h
            pl.BlockSpec((TB, Hp), lambda b: (b, 0)),         # final c
        ],
    )

    # Explicit scoped-VMEM budget sized from actual padded blocks (with headroom),
    # so realistic H/V do not trip the 16/32 MiB default scoped limit.
    weight_bytes = (_nbytes((Vp, Hp), wdt) + 3 * _nbytes((Hp, 4 * Hp), wdt)
                    + _nbytes((1, 4 * Hp), f32) + _nbytes((Hp, Vp), wdt)
                    + _nbytes((1, Vp), f32))
    in_bytes = 2 * _nbytes((TB, Hp), f32)                     # enc, double-buffered
    out_bytes = 2 * (_nbytes((T, TB, Vp), f32) + 2 * _nbytes((TB, Hp), f32))
    vmem_limit = int(1.5 * (weight_bytes + in_bytes + out_bytes)) + (4 << 20)
    vmem_limit = min(max(vmem_limit, 16 << 20), 100 << 20)

    logits_t, h_fin, c_fin = pl.pallas_call(
        functools.partial(_decoder_kernel, sos_id=int(sos_id)),
        out_shape=(jax.ShapeDtypeStruct((T, Bp, Vp), f32),
                   jax.ShapeDtypeStruct((Bp, Hp), f32),
                   jax.ShapeDtypeStruct((Bp, Hp), f32)),
        grid_spec=grid_spec,
        compiler_params=pltpu.CompilerParams(
            # Independent per-batch-tile recurrences; with nb >= 2 this shards
            # across v7x's two TensorCores (single-TC v5e/v6e unaffected).
            dimension_semantics=("parallel",),
            vmem_limit_bytes=vmem_limit),
    )(enc_p, emb_p, wx_ec_p, wx_emb_p, wh_p, bg_p, wout_p, bout_p)

    decoder_outputs = jnp.transpose(logits_t, (1, 0, 2))[:B, :, :V]   # (B, T, V)
    hidden_state = (h_fin[:B, :H][None], c_fin[:B, :H][None])
    # Softmax over a single key is identically 1.0 (bit-identical to the reference);
    # the lane-sparse (T,B,1) in-kernel store was removed on purpose.
    attentions = jnp.ones((B, T, 1), f32)
    return decoder_outputs, hidden_state, attentions


def init_params(key, hidden_size, vocab_size):
    """Raw PyTorch-layout parameters (gate order i, f, g, o)."""
    H, V = hidden_size, vocab_size
    ks = jax.random.split(key, 13)
    rnd = lambda k, shape: jax.random.normal(k, shape, jnp.float32) * 0.1
    return dict(
        emb=rnd(ks[0], (V, H)),                   # nn.Embedding(V, H)
        W_ih=rnd(ks[1], (4 * H, 3 * H)),          # lstm.weight_ih_l0
        b_ih=rnd(ks[2], (4 * H,)),
        W_hh=rnd(ks[3], (4 * H, H)),              # lstm.weight_hh_l0
        b_hh=rnd(ks[4], (4 * H,)),
        W_out=rnd(ks[5], (V, H)),                 # out Linear
        b_out=rnd(ks[6], (V,)),
        # Attention parameters kept only for module parity: the softmax is over a
        # single key, so Wa/Ua/Va never influence any output (dead compute).
        Wa_w=rnd(ks[7], (H, H)), Wa_b=rnd(ks[8], (H,)),
        Ua_w=rnd(ks[9], (H, H)), Ua_b=rnd(ks[10], (H,)),
        Va_w=rnd(ks[11], (1, H)), Va_b=rnd(ks[12], (1,)),
    )


if __name__ == "__main__":
    B, H, V, T = 2, 32, 32, 8
    SOS_ID = 1  # vocab['<SOS>']

    key = jax.random.PRNGKey(0)
    k_params, k_enc = jax.random.split(key)
    params = init_params(k_params, H, V)
    encoder_outputs = jax.random.normal(k_enc, (B, H), jnp.float32)

    dec_out, (h_n, c_n), attn = attn_decoder_lstm(
        params, encoder_outputs, max_seq_length=T, sos_id=SOS_ID)
    jax.block_until_ready((dec_out, h_n, c_n, attn))

    assert dec_out.shape == (B, T, V)
    assert h_n.shape == (1, B, H) and c_n.shape == (1, B, H)
    assert attn.shape == (B, T, 1)
    assert bool(jnp.all(jnp.isfinite(dec_out)))
    print("KERNEL_OK")
</pallas_src>

<mosaic_0001>
module attributes {stable_mosaic.version = 11 : i64} {
  func.func @_decoder_kernel(%arg0: i32, %arg1: memref<16x128xf32, #tpu.memory_space<vmem>>, %arg2: memref<128x128xbf16, #tpu.memory_space<vmem>>, %arg3: memref<128x512xbf16, #tpu.memory_space<vmem>>, %arg4: memref<128x512xbf16, #tpu.memory_space<vmem>>, %arg5: memref<128x512xbf16, #tpu.memory_space<vmem>>, %arg6: memref<1x512xf32, #tpu.memory_space<vmem>>, %arg7: memref<128x128xbf16, #tpu.memory_space<vmem>>, %arg8: memref<1x128xf32, #tpu.memory_space<vmem>>, %arg9: memref<8x16x128xf32, #tpu.memory_space<vmem>>, %arg10: memref<16x128xf32, #tpu.memory_space<vmem>>, %arg11: memref<16x128xf32, #tpu.memory_space<vmem>>) attributes {dimension_semantics = [#tpu.dimension_semantics<parallel>], iteration_bounds = array<i64: 1>, scalar_prefetch = 0 : i64, scratch_operands = 0 : i64, tpu.core_type = #tpu.core_type<tc>, window_params = [{transform_indices = @transform_0, window_bounds = array<i64: 16, 128>}, {pipeline_mode = #tpu.pipeline_mode<synchronous>, transform_indices = @transform_1, window_bounds = array<i64: 128, 128>}, {pipeline_mode = #tpu.pipeline_mode<synchronous>, transform_indices = @transform_2, window_bounds = array<i64: 128, 512>}, {pipeline_mode = #tpu.pipeline_mode<synchronous>, transform_indices = @transform_3, window_bounds = array<i64: 128, 512>}, {pipeline_mode = #tpu.pipeline_mode<synchronous>, transform_indices = @transform_4, window_bounds = array<i64: 128, 512>}, {pipeline_mode = #tpu.pipeline_mode<synchronous>, transform_indices = @transform_5, window_bounds = array<i64: 1, 512>}, {pipeline_mode = #tpu.pipeline_mode<synchronous>, transform_indices = @transform_6, window_bounds = array<i64: 128, 128>}, {pipeline_mode = #tpu.pipeline_mode<synchronous>, transform_indices = @transform_7, window_bounds = array<i64: 1, 128>}, {transform_indices = @transform_8, window_bounds = array<i64: 8, 16, 128>}, {transform_indices = @transform_9, window_bounds = array<i64: 16, 128>}, {transform_indices = @transform_10, window_bounds = array<i64: 16, 128>}]} {
    %c0 = arith.constant 0 : index
    %c0_0 = arith.constant 0 : index
    %0 = vector.load %arg1[%c0, %c0_0] : memref<16x128xf32, #tpu.memory_space<vmem>>, vector<16x128xf32>
    %c0_1 = arith.constant 0 : index
    %c0_2 = arith.constant 0 : index
    %1 = vector.load %arg2[%c0_1, %c0_2] : memref<128x128xbf16, #tpu.memory_space<vmem>>, vector<128x128xbf16>
    %c0_3 = arith.constant 0 : index
    %c0_4 = arith.constant 0 : index
    %2 = vector.load %arg4[%c0_3, %c0_4] : memref<128x512xbf16, #tpu.memory_space<vmem>>, vector<128x512xbf16>
    %c0_5 = arith.constant 0 : index
    %c0_6 = arith.constant 0 : index
    %3 = vector.load %arg5[%c0_5, %c0_6] : memref<128x512xbf16, #tpu.memory_space<vmem>>, vector<128x512xbf16>
    %c0_7 = arith.constant 0 : index
    %c0_8 = arith.constant 0 : index
    %4 = vector.load %arg7[%c0_7, %c0_8] : memref<128x128xbf16, #tpu.memory_space<vmem>>, vector<128x128xbf16>
    %5 = arith.truncf %0 : vector<16x128xf32> to vector<16x128xbf16>
    %c0_9 = arith.constant 0 : index
    %c0_10 = arith.constant 0 : index
    %6 = vector.load %arg3[%c0_9, %c0_10] : memref<128x512xbf16, #tpu.memory_space<vmem>>, vector<128x512xbf16>
    %cst = arith.constant dense<0.000000e+00> : vector<16x512xf32>
    %7 = tpu.matmul %5, %6, %cst {dimension_numbers = #tpu.dot_dimension_numbers<[1], [0], [0], [1], [0, 0, 1, 1], [], []>} : vector<16x128xbf16>, vector<128x512xbf16>, vector<16x512xf32> -> vector<16x512xf32>
    %c0_11 = arith.constant 0 : index
    %c0_12 = arith.constant 0 : index
    %8 = vector.load %arg6[%c0_11, %c0_12] : memref<1x512xf32, #tpu.memory_space<vmem>>, vector<1x512xf32>
    %9 = vector.broadcast %8 : vector<1x512xf32> to vector<16x512xf32>
    %10 = arith.addf %7, %9 : vector<16x512xf32>
    %c0_13 = arith.constant 0 : index
    %c0_14 = arith.constant 0 : index
    %11 = vector.load %arg8[%c0_13, %c0_14] : memref<1x128xf32, #tpu.memory_space<vmem>>, vector<1x128xf32>
    %12 = vector.shape_cast %11 : vector<1x128xf32> to vector<1x128xf32>
    %13 = vector.broadcast %12 : vector<1x128xf32> to vector<16x128xf32>
    %14 = tpu.iota {dimensions = array<i32: 1>} : vector<16x128xi32>
    %c1_i32 = arith.constant 1 : i32
    %15 = vector.broadcast %c1_i32 : i32 to vector<16x1xi32>
    %c0_i32 = arith.constant 0 : i32
    %16 = vector.broadcast %15 : vector<16x1xi32> to vector<16x128xi32>
    %17 = arith.cmpi eq, %14, %16 : vector<16x128xi32>
    %18 = arith.extui %17 : vector<16x128xi1> to vector<16x128xi32>
    %19 = arith.sitofp %18 : vector<16x128xi32> to vector<16x128xf32>
    %20 = arith.truncf %19 : vector<16x128xf32> to vector<16x128xbf16>
    %cst_15 = arith.constant dense<0.000000e+00> : vector<16x128xf32>
    %21 = tpu.matmul %20, %1, %cst_15 {dimension_numbers = #tpu.dot_dimension_numbers<[1], [0], [0], [1], [0, 0, 1, 1], [], []>} : vector<16x128xbf16>, vector<128x128xbf16>, vector<16x128xf32> -> vector<16x128xf32>
    %22 = arith.truncf %21 : vector<16x128xf32> to vector<16x128xbf16>
    %cst_16 = arith.constant dense<0.000000e+00> : vector<16x512xf32>
    %23 = tpu.matmul %22, %2, %cst_16 {dimension_numbers = #tpu.dot_dimension_numbers<[1], [0], [0], [1], [0, 0, 1, 1], [], []>} : vector<16x128xbf16>, vector<128x512xbf16>, vector<16x512xf32> -> vector<16x512xf32>
    %24 = arith.addf %10, %23 : vector<16x512xf32>
    %25 = arith.truncf %0 : vector<16x128xf32> to vector<16x128xbf16>
    %cst_17 = arith.constant dense<0.000000e+00> : vector<16x512xf32>
    %26 = tpu.matmul %25, %3, %cst_17 {dimension_numbers = #tpu.dot_dimension_numbers<[1], [0], [0], [1], [0, 0, 1, 1], [], []>} : vector<16x128xbf16>, vector<128x512xbf16>, vector<16x512xf32> -> vector<16x512xf32>
    %27 = arith.addf %24, %26 : vector<16x512xf32>
    %28 = vector.extract_strided_slice %27 {offsets = [0, 0], sizes = [16, 128], strides = [1, 1]} : vector<16x512xf32> to vector<16x128xf32>
    %29 = arith.negf %28 : vector<16x128xf32>
    %30 = math.exp %29 : vector<16x128xf32>
    %cst_18 = arith.constant 1.000000e+00 : f32
    %31 = vector.broadcast %cst_18 : f32 to vector<16x128xf32>
    %32 = arith.addf %31, %30 : vector<16x128xf32>
    %33 = arith.divf %31, %32 : vector<16x128xf32>
    %34 = vector.extract_strided_slice %27 {offsets = [0, 128], sizes = [16, 128], strides = [1, 1]} : vector<16x512xf32> to vector<16x128xf32>
    %35 = arith.negf %34 : vector<16x128xf32>
    %36 = math.exp %35 : vector<16x128xf32>
    %cst_19 = arith.constant 1.000000e+00 : f32
    %37 = vector.broadcast %cst_19 : f32 to vector<16x128xf32>
    %38 = arith.addf %37, %36 : vector<16x128xf32>
    %39 = arith.divf %37, %38 : vector<16x128xf32>
    %40 = vector.extract_strided_slice %27 {offsets = [0, 256], sizes = [16, 128], strides = [1, 1]} : vector<16x512xf32> to vector<16x128xf32>
    %41 = math.tanh %40 : vector<16x128xf32>
    %42 = vector.extract_strided_slice %27 {offsets = [0, 384], sizes = [16, 128], strides = [1, 1]} : vector<16x512xf32> to vector<16x128xf32>
    %43 = arith.negf %42 : vector<16x128xf32>
    %44 = math.exp %43 : vector<16x128xf32>
    %cst_20 = arith.constant 1.000000e+00 : f32
    %45 = vector.broadcast %cst_20 : f32 to vector<16x128xf32>
    %46 = arith.addf %45, %44 : vector<16x128xf32>
    %47 = arith.divf %45, %46 : vector<16x128xf32>
    %48 = arith.mulf %39, %0 : vector<16x128xf32>
    %49 = arith.mulf %33, %41 : vector<16x128xf32>
    %50 = arith.addf %48, %49 : vector<16x128xf32>
    %51 = math.tanh %50 : vector<16x128xf32>
    %52 = arith.mulf %47, %51 : vector<16x128xf32>
    %53 = arith.truncf %52 : vector<16x128xf32> to vector<16x128xbf16>
    %cst_21 = arith.constant dense<0.000000e+00> : vector<16x128xf32>
    %54 = tpu.matmul %53, %4, %cst_21 {dimension_numbers = #tpu.dot_dimension_numbers<[1], [0], [0], [1], [0, 0, 1, 1], [], []>} : vector<16x128xbf16>, vector<128x128xbf16>, vector<16x128xf32> -> vector<16x128xf32>
    %55 = arith.addf %54, %13 : vector<16x128xf32>
    %56 = arith.index_cast %c0_i32 : i32 to index
    %c0_22 = arith.constant 0 : index
    %c0_23 = arith.constant 0 : index
    %57 = vector.load %arg9[%56, %c0_22, %c0_23] : memref<8x16x128xf32, #tpu.memory_space<vmem>>, vector<1x16x128xf32>
    %58 = vector.shape_cast %57 : vector<1x16x128xf32> to vector<16x128xf32>
    %59 = vector.shape_cast %55 : vector<16x128xf32> to vector<1x16x128xf32>
    tpu.vector_store %arg9[%56, %c0_22, %c0_23], %59 {strides = array<i32>} : memref<8x16x128xf32, #tpu.memory_space<vmem>>, vector<1x16x128xf32>,
    %cst_24 = arith.constant dense<0xFF800000> : vector<16xf32>
    %60 = vector.multi_reduction <maximumf>, %55, %cst_24 [1] : vector<16x128xf32> to vector<16xf32>
    %61 = vector.shape_cast %60 : vector<16xf32> to vector<16x1xf32>
    %62 = vector.broadcast %61 : vector<16x1xf32> to vector<16x128xf32>
    %63 = arith.cmpf oeq, %55, %62 : vector<16x128xf32>
    %c128_i32 = arith.constant 128 : i32
    %64 = vector.broadcast %c128_i32 : i32 to vector<16x128xi32>
    %65 = arith.select %63, %14, %64 : vector<16x128xi1>, vector<16x128xi32>
    %cst_25 = arith.constant dense<2147483647> : vector<16xi32>
    %66 = vector.multi_reduction <minsi>, %65, %cst_25 [1] : vector<16x128xi32> to vector<16xi32>
    %67 = vector.shape_cast %66 : vector<16xi32> to vector<16x1xi32>
    %c1_i32_26 = arith.constant 1 : i32
    %68 = vector.broadcast %67 : vector<16x1xi32> to vector<16x128xi32>
    %69 = arith.cmpi eq, %14, %68 : vector<16x128xi32>
    %70 = arith.extui %69 : vector<16x128xi1> to vector<16x128xi32>
    %71 = arith.sitofp %70 : vector<16x128xi32> to vector<16x128xf32>
    %72 = arith.truncf %71 : vector<16x128xf32> to vector<16x128xbf16>
    %cst_27 = arith.constant dense<0.000000e+00> : vector<16x128xf32>
    %73 = tpu.matmul %72, %1, %cst_27 {dimension_numbers = #tpu.dot_dimension_numbers<[1], [0], [0], [1], [0, 0, 1, 1], [], []>} : vector<16x128xbf16>, vector<128x128xbf16>, vector<16x128xf32> -> vector<16x128xf32>
    %74 = arith.truncf %73 : vector<16x128xf32> to vector<16x128xbf16>
    %cst_28 = arith.constant dense<0.000000e+00> : vector<16x512xf32>
    %75 = tpu.matmul %74, %2, %cst_28 {dimension_numbers = #tpu.dot_dimension_numbers<[1], [0], [0], [1], [0, 0, 1, 1], [], []>} : vector<16x128xbf16>, vector<128x512xbf16>, vector<16x512xf32> -> vector<16x512xf32>
    %76 = arith.addf %10, %75 : vector<16x512xf32>
    %77 = arith.truncf %52 : vector<16x128xf32> to vector<16x128xbf16>
    %cst_29 = arith.constant dense<0.000000e+00> : vector<16x512xf32>
    %78 = tpu.matmul %77, %3, %cst_29 {dimension_numbers = #tpu.dot_dimension_numbers<[1], [0], [0], [1], [0, 0, 1, 1], [], []>} : vector<16x128xbf16>, vector<128x512xbf16>, vector<16x512xf32> -> vector<16x512xf32>
    %79 = arith.addf %76, %78 : vector<16x512xf32>
    %80 = vector.extract_strided_slice %79 {offsets = [0, 0], sizes = [16, 128], strides = [1, 1]} : vector<16x512xf32> to vector<16x128xf32>
    %81 = arith.negf %80 : vector<16x128xf32>
    %82 = math.exp %81 : vector<16x128xf32>
    %cst_30 = arith.constant 1.000000e+00 : f32
    %83 = vector.broadcast %cst_30 : f32 to vector<16x128xf32>
    %84 = arith.addf %83, %82 : vector<16x128xf32>
    %85 = arith.divf %83, %84 : vector<16x128xf32>
    %86 = vector.extract_strided_slice %79 {offsets = [0, 128], sizes = [16, 128], strides = [1, 1]} : vector<16x512xf32> to vector<16x128xf32>
    %87 = arith.negf %86 : vector<16x128xf32>
    %88 = math.exp %87 : vector<16x128xf32>
    %cst_31 = arith.constant 1.000000e+00 : f32
    %89 = vector.broadcast %cst_31 : f32 to vector<16x128xf32>
    %90 = arith.addf %89, %88 : vector<16x128xf32>
    %91 = arith.divf %89, %90 : vector<16x128xf32>
    %92 = vector.extract_strided_slice %79 {offsets = [0, 256], sizes = [16, 128], strides = [1, 1]} : vector<16x512xf32> to vector<16x128xf32>
    %93 = math.tanh %92 : vector<16x128xf32>
    %94 = vector.extract_strided_slice %79 {offsets = [0, 384], sizes = [16, 128], strides = [1, 1]} : vector<16x512xf32> to vector<16x128xf32>
    %95 = arith.negf %94 : vector<16x128xf32>
    %96 = math.exp %95 : vector<16x128xf32>
    %cst_32 = arith.constant 1.000000e+00 : f32
    %97 = vector.broadcast %cst_32 : f32 to vector<16x128xf32>
    %98 = arith.addf %97, %96 : vector<16x128xf32>
    %99 = arith.divf %97, %98 : vector<16x128xf32>
    %100 = arith.mulf %91, %50 : vector<16x128xf32>
    %101 = arith.mulf %85, %93 : vector<16x128xf32>
    %102 = arith.addf %100, %101 : vector<16x128xf32>
    %103 = math.tanh %102 : vector<16x128xf32>
    %104 = arith.mulf %99, %103 : vector<16x128xf32>
    %105 = arith.truncf %104 : vector<16x128xf32> to vector<16x128xbf16>
    %cst_33 = arith.constant dense<0.000000e+00> : vector<16x128xf32>
    %106 = tpu.matmul %105, %4, %cst_33 {dimension_numbers = #tpu.dot_dimension_numbers<[1], [0], [0], [1], [0, 0, 1, 1], [], []>} : vector<16x128xbf16>, vector<128x128xbf16>, vector<16x128xf32> -> vector<16x128xf32>
    %107 = arith.addf %106, %13 : vector<16x128xf32>
    %108 = arith.index_cast %c1_i32_26 : i32 to index
    %c0_34 = arith.constant 0 : index
    %c0_35 = arith.constant 0 : index
    %109 = vector.load %arg9[%108, %c0_34, %c0_35] : memref<8x16x128xf32, #tpu.memory_space<vmem>>, vector<1x16x128xf32>
    %110 = vector.shape_cast %109 : vector<1x16x128xf32> to vector<16x128xf32>
    %111 = vector.shape_cast %107 : vector<16x128xf32> to vector<1x16x128xf32>
    tpu.vector_store %arg9[%108, %c0_34, %c0_35], %111 {strides = array<i32>} : memref<8x16x128xf32, #tpu.memory_space<vmem>>, vector<1x16x128xf32>,
    %cst_36 = arith.constant dense<0xFF800000> : vector<16xf32>
    %112 = vector.multi_reduction <maximumf>, %107, %cst_36 [1] : vector<16x128xf32> to vector<16xf32>
    %113 = vector.shape_cast %112 : vector<16xf32> to vector<16x1xf32>
    %114 = vector.broadcast %113 : vector<16x1xf32> to vector<16x128xf32>
    %115 = arith.cmpf oeq, %107, %114 : vector<16x128xf32>
    %c128_i32_37 = arith.constant 128 : i32
    %116 = vector.broadcast %c128_i32_37 : i32 to vector<16x128xi32>
    %117 = arith.select %115, %14, %116 : vector<16x128xi1>, vector<16x128xi32>
    %cst_38 = arith.constant dense<2147483647> : vector<16xi32>
    %118 = vector.multi_reduction <minsi>, %117, %cst_38 [1] : vector<16x128xi32> to vector<16xi32>
    %119 = vector.shape_cast %118 : vector<16xi32> to vector<16x1xi32>
    %c2_i32 = arith.constant 2 : i32
    %120 = vector.broadcast %119 : vector<16x1xi32> to vector<16x128xi32>
    %121 = arith.cmpi eq, %14, %120 : vector<16x128xi32>
    %122 = arith.extui %121 : vector<16x128xi1> to vector<16x128xi32>
    %123 = arith.sitofp %122 : vector<16x128xi32> to vector<16x128xf32>
    %124 = arith.truncf %123 : vector<16x128xf32> to vector<16x128xbf16>
    %cst_39 = arith.constant dense<0.000000e+00> : vector<16x128xf32>
    %125 = tpu.matmul %124, %1, %cst_39 {dimension_numbers = #tpu.dot_dimension_numbers<[1], [0], [0], [1], [0, 0, 1, 1], [], []>} : vector<16x128xbf16>, vector<128x128xbf16>, vector<16x128xf32> -> vector<16x128xf32>
    %126 = arith.truncf %125 : vector<16x128xf32> to vector<16x128xbf16>
    %cst_40 = arith.constant dense<0.000000e+00> : vector<16x512xf32>
    %127 = tpu.matmul %126, %2, %cst_40 {dimension_numbers = #tpu.dot_dimension_numbers<[1], [0], [0], [1], [0, 0, 1, 1], [], []>} : vector<16x128xbf16>, vector<128x512xbf16>, vector<16x512xf32> -> vector<16x512xf32>
    %128 = arith.addf %10, %127 : vector<16x512xf32>
    %129 = arith.truncf %104 : vector<16x128xf32> to vector<16x128xbf16>
    %cst_41 = arith.constant dense<0.000000e+00> : vector<16x512xf32>
    %130 = tpu.matmul %129, %3, %cst_41 {dimension_numbers = #tpu.dot_dimension_numbers<[1], [0], [0], [1], [0, 0, 1, 1], [], []>} : vector<16x128xbf16>, vector<128x512xbf16>, vector<16x512xf32> -> vector<16x512xf32>
    %131 = arith.addf %128, %130 : vector<16x512xf32>
    %132 = vector.extract_strided_slice %131 {offsets = [0, 0], sizes = [16, 128], strides = [1, 1]} : vector<16x512xf32> to vector<16x128xf32>
    %133 = arith.negf %132 : vector<16x128xf32>
    %134 = math.exp %133 : vector<16x128xf32>
    %cst_42 = arith.constant 1.000000e+00 : f32
    %135 = vector.broadcast %cst_42 : f32 to vector<16x128xf32>
    %136 = arith.addf %135, %134 : vector<16x128xf32>
    %137 = arith.divf %135, %136 : vector<16x128xf32>
    %138 = vector.extract_strided_slice %131 {offsets = [0, 128], sizes = [16, 128], strides = [1, 1]} : vector<16x512xf32> to vector<16x128xf32>
    %139 = arith.negf %138 : vector<16x128xf32>
    %140 = math.exp %139 : vector<16x128xf32>
    %cst_43 = arith.constant 1.000000e+00 : f32
    %141 = vector.broadcast %cst_43 : f32 to vector<16x128xf32>
    %142 = arith.addf %141, %140 : vector<16x128xf32>
    %143 = arith.divf %141, %142 : vector<16x128xf32>
    %144 = vector.extract_strided_slice %131 {offsets = [0, 256], sizes = [16, 128], strides = [1, 1]} : vector<16x512xf32> to vector<16x128xf32>
    %145 = math.tanh %144 : vector<16x128xf32>
    %146 = vector.extract_strided_slice %131 {offsets = [0, 384], sizes = [16, 128], strides = [1, 1]} : vector<16x512xf32> to vector<16x128xf32>
    %147 = arith.negf %146 : vector<16x128xf32>
    %148 = math.exp %147 : vector<16x128xf32>
    %cst_44 = arith.constant 1.000000e+00 : f32
    %149 = vector.broadcast %cst_44 : f32 to vector<16x128xf32>
    %150 = arith.addf %149, %148 : vector<16x128xf32>
    %151 = arith.divf %149, %150 : vector<16x128xf32>
    %152 = arith.mulf %143, %102 : vector<16x128xf32>
    %153 = arith.mulf %137, %145 : vector<16x128xf32>
    %154 = arith.addf %152, %153 : vector<16x128xf32>
    %155 = math.tanh %154 : vector<16x128xf32>
    %156 = arith.mulf %151, %155 : vector<16x128xf32>
    %157 = arith.truncf %156 : vector<16x128xf32> to vector<16x128xbf16>
    %cst_45 = arith.constant dense<0.000000e+00> : vector<16x128xf32>
    %158 = tpu.matmul %157, %4, %cst_45 {dimension_numbers = #tpu.dot_dimension_numbers<[1], [0], [0], [1], [0, 0, 1, 1], [], []>} : vector<16x128xbf16>, vector<128x128xbf16>, vector<16x128xf32> -> vector<16x128xf32>
    %159 = arith.addf %158, %13 : vector<16x128xf32>
    %160 = arith.index_cast %c2_i32 : i32 to index
    %c0_46 = arith.constant 0 : index
    %c0_47 = arith.constant 0 : index
    %161 = vector.load %arg9[%160, %c0_46, %c0_47] : memref<8x16x128xf32, #tpu.memory_space<vmem>>, vector<1x16x128xf32>
    %162 = vector.shape_cast %161 : vector<1x16x128xf32> to vector<16x128xf32>
    %163 = vector.shape_cast %159 : vector<16x128xf32> to vector<1x16x128xf32>
    tpu.vector_store %arg9[%160, %c0_46, %c0_47], %163 {strides = array<i32>} : memref<8x16x128xf32, #tpu.memory_space<vmem>>, vector<1x16x128xf32>,
    %cst_48 = arith.constant dense<0xFF800000> : vector<16xf32>
    %164 = vector.multi_reduction <maximumf>, %159, %cst_48 [1] : vector<16x128xf32> to vector<16xf32>
    %165 = vector.shape_cast %164 : vector<16xf32> to vector<16x1xf32>
    %166 = vector.broadcast %165 : vector<16x1xf32> to vector<16x128xf32>
    %167 = arith.cmpf oeq, %159, %166 : vector<16x128xf32>
    %c128_i32_49 = arith.constant 128 : i32
    %168 = vector.broadcast %c128_i32_49 : i32 to vector<16x128xi32>
    %169 = arith.select %167, %14, %168 : vector<16x128xi1>, vector<16x128xi32>
    %cst_50 = arith.constant dense<2147483647> : vector<16xi32>
    %170 = vector.multi_reduction <minsi>, %169, %cst_50 [1] : vector<16x128xi32> to vector<16xi32>
    %171 = vector.shape_cast %170 : vector<16xi32> to vector<16x1xi32>
    %c3_i32 = arith.constant 3 : i32
    %172 = vector.broadcast %171 : vector<16x1xi32> to vector<16x128xi32>
    %173 = arith.cmpi eq, %14, %172 : vector<16x128xi32>
    %174 = arith.extui %173 : vector<16x128xi1> to vector<16x128xi32>
    %175 = arith.sitofp %174 : vector<16x128xi32> to vector<16x128xf32>
    %176 = arith.truncf %175 : vector<16x128xf32> to vector<16x128xbf16>
    %cst_51 = arith.constant dense<0.000000e+00> : vector<16x128xf32>
    %177 = tpu.matmul %176, %1, %cst_51 {dimension_numbers = #tpu.dot_dimension_numbers<[1], [0], [0], [1], [0, 0, 1, 1], [], []>} : vector<16x128xbf16>, vector<128x128xbf16>, vector<16x128xf32> -> vector<16x128xf32>
    %178 = arith.truncf %177 : vector<16x128xf32> to vector<16x128xbf16>
    %cst_52 = arith.constant dense<0.000000e+00> : vector<16x512xf32>
    %179 = tpu.matmul %178, %2, %cst_52 {dimension_numbers = #tpu.dot_dimension_numbers<[1], [0], [0], [1], [0, 0, 1, 1], [], []>} : vector<16x128xbf16>, vector<128x512xbf16>, vector<16x512xf32> -> vector<16x512xf32>
    %180 = arith.addf %10, %179 : vector<16x512xf32>
    %181 = arith.truncf %156 : vector<16x128xf32> to vector<16x128xbf16>
    %cst_53 = arith.constant dense<0.000000e+00> : vector<16x512xf32>
    %182 = tpu.matmul %181, %3, %cst_53 {dimension_numbers = #tpu.dot_dimension_numbers<[1], [0], [0], [1], [0, 0, 1, 1], [], []>} : vector<16x128xbf16>, vector<128x512xbf16>, vector<16x512xf32> -> vector<16x512xf32>
    %183 = arith.addf %180, %182 : vector<16x512xf32>
    %184 = vector.extract_strided_slice %183 {offsets = [0, 0], sizes = [16, 128], strides = [1, 1]} : vector<16x512xf32> to vector<16x128xf32>
    %185 = arith.negf %184 : vector<16x128xf32>
    %186 = math.exp %185 : vector<16x128xf32>
    %cst_54 = arith.constant 1.000000e+00 : f32
    %187 = vector.broadcast %cst_54 : f32 to vector<16x128xf32>
    %188 = arith.addf %187, %186 : vector<16x128xf32>
    %189 = arith.divf %187, %188 : vector<16x128xf32>
    %190 = vector.extract_strided_slice %183 {offsets = [0, 128], sizes = [16, 128], strides = [1, 1]} : vector<16x512xf32> to vector<16x128xf32>
    %191 = arith.negf %190 : vector<16x128xf32>
    %192 = math.exp %191 : vector<16x128xf32>
    %cst_55 = arith.constant 1.000000e+00 : f32
    %193 = vector.broadcast %cst_55 : f32 to vector<16x128xf32>
    %194 = arith.addf %193, %192 : vector<16x128xf32>
    %195 = arith.divf %193, %194 : vector<16x128xf32>
    %196 = vector.extract_strided_slice %183 {offsets = [0, 256], sizes = [16, 128], strides = [1, 1]} : vector<16x512xf32> to vector<16x128xf32>
    %197 = math.tanh %196 : vector<16x128xf32>
    %198 = vector.extract_strided_slice %183 {offsets = [0, 384], sizes = [16, 128], strides = [1, 1]} : vector<16x512xf32> to vector<16x128xf32>
    %199 = arith.negf %198 : vector<16x128xf32>
    %200 = math.exp %199 : vector<16x128xf32>
    %cst_56 = arith.constant 1.000000e+00 : f32
    %201 = vector.broadcast %cst_56 : f32 to vector<16x128xf32>
    %202 = arith.addf %201, %200 : vector<16x128xf32>
    %203 = arith.divf %201, %202 : vector<16x128xf32>
    %204 = arith.mulf %195, %154 : vector<16x128xf32>
    %205 = arith.mulf %189, %197 : vector<16x128xf32>
    %206 = arith.addf %204, %205 : vector<16x128xf32>
    %207 = math.tanh %206 : vector<16x128xf32>
    %208 = arith.mulf %203, %207 : vector<16x128xf32>
    %209 = arith.truncf %208 : vector<16x128xf32> to vector<16x128xbf16>
    %cst_57 = arith.constant dense<0.000000e+00> : vector<16x128xf32>
    %210 = tpu.matmul %209, %4, %cst_57 {dimension_numbers = #tpu.dot_dimension_numbers<[1], [0], [0], [1], [0, 0, 1, 1], [], []>} : vector<16x128xbf16>, vector<128x128xbf16>, vector<16x128xf32> -> vector<16x128xf32>
    %211 = arith.addf %210, %13 : vector<16x128xf32>
    %212 = arith.index_cast %c3_i32 : i32 to index
    %c0_58 = arith.constant 0 : index
    %c0_59 = arith.constant 0 : index
    %213 = vector.load %arg9[%212, %c0_58, %c0_59] : memref<8x16x128xf32, #tpu.memory_space<vmem>>, vector<1x16x128xf32>
    %214 = vector.shape_cast %213 : vector<1x16x128xf32> to vector<16x128xf32>
    %215 = vector.shape_cast %211 : vector<16x128xf32> to vector<1x16x128xf32>
    tpu.vector_store %arg9[%212, %c0_58, %c0_59], %215 {strides = array<i32>} : memref<8x16x128xf32, #tpu.memory_space<vmem>>, vector<1x16x128xf32>,
    %cst_60 = arith.constant dense<0xFF800000> : vector<16xf32>
    %216 = vector.multi_reduction <maximumf>, %211, %cst_60 [1] : vector<16x128xf32> to vector<16xf32>
    %217 = vector.shape_cast %216 : vector<16xf32> to vector<16x1xf32>
    %218 = vector.broadcast %217 : vector<16x1xf32> to vector<16x128xf32>
    %219 = arith.cmpf oeq, %211, %218 : vector<16x128xf32>
    %c128_i32_61 = arith.constant 128 : i32
    %220 = vector.broadcast %c128_i32_61 : i32 to vector<16x128xi32>
    %221 = arith.select %219, %14, %220 : vector<16x128xi1>, vector<16x128xi32>
    %cst_62 = arith.constant dense<2147483647> : vector<16xi32>
    %222 = vector.multi_reduction <minsi>, %221, %cst_62 [1] : vector<16x128xi32> to vector<16xi32>
    %223 = vector.shape_cast %222 : vector<16xi32> to vector<16x1xi32>
    %c4_i32 = arith.constant 4 : i32
    %224 = vector.broadcast %223 : vector<16x1xi32> to vector<16x128xi32>
    %225 = arith.cmpi eq, %14, %224 : vector<16x128xi32>
    %226 = arith.extui %225 : vector<16x128xi1> to vector<16x128xi32>
    %227 = arith.sitofp %226 : vector<16x128xi32> to vector<16x128xf32>
    %228 = arith.truncf %227 : vector<16x128xf32> to vector<16x128xbf16>
    %cst_63 = arith.constant dense<0.000000e+00> : vector<16x128xf32>
    %229 = tpu.matmul %228, %1, %cst_63 {dimension_numbers = #tpu.dot_dimension_numbers<[1], [0], [0], [1], [0, 0, 1, 1], [], []>} : vector<16x128xbf16>, vector<128x128xbf16>, vector<16x128xf32> -> vector<16x128xf32>
    %230 = arith.truncf %229 : vector<16x128xf32> to vector<16x128xbf16>
    %cst_64 = arith.constant dense<0.000000e+00> : vector<16x512xf32>
    %231 = tpu.matmul %230, %2, %cst_64 {dimension_numbers = #tpu.dot_dimension_numbers<[1], [0], [0], [1], [0, 0, 1, 1], [], []>} : vector<16x128xbf16>, vector<128x512xbf16>, vector<16x512xf32> -> vector<16x512xf32>
    %232 = arith.addf %10, %231 : vector<16x512xf32>
    %233 = arith.truncf %208 : vector<16x128xf32> to vector<16x128xbf16>
    %cst_65 = arith.constant dense<0.000000e+00> : vector<16x512xf32>
    %234 = tpu.matmul %233, %3, %cst_65 {dimension_numbers = #tpu.dot_dimension_numbers<[1], [0], [0], [1], [0, 0, 1, 1], [], []>} : vector<16x128xbf16>, vector<128x512xbf16>, vector<16x512xf32> -> vector<16x512xf32>
    %235 = arith.addf %232, %234 : vector<16x512xf32>
    %236 = vector.extract_strided_slice %235 {offsets = [0, 0], sizes = [16, 128], strides = [1, 1]} : vector<16x512xf32> to vector<16x128xf32>
    %237 = arith.negf %236 : vector<16x128xf32>
    %238 = math.exp %237 : vector<16x128xf32>
    %cst_66 = arith.constant 1.000000e+00 : f32
    %239 = vector.broadcast %cst_66 : f32 to vector<16x128xf32>
    %240 = arith.addf %239, %238 : vector<16x128xf32>
    %241 = arith.divf %239, %240 : vector<16x128xf32>
    %242 = vector.extract_strided_slice %235 {offsets = [0, 128], sizes = [16, 128], strides = [1, 1]} : vector<16x512xf32> to vector<16x128xf32>
    %243 = arith.negf %242 : vector<16x128xf32>
    %244 = math.exp %243 : vector<16x128xf32>
    %cst_67 = arith.constant 1.000000e+00 : f32
    %245 = vector.broadcast %cst_67 : f32 to vector<16x128xf32>
    %246 = arith.addf %245, %244 : vector<16x128xf32>
    %247 = arith.divf %245, %246 : vector<16x128xf32>
    %248 = vector.extract_strided_slice %235 {offsets = [0, 256], sizes = [16, 128], strides = [1, 1]} : vector<16x512xf32> to vector<16x128xf32>
    %249 = math.tanh %248 : vector<16x128xf32>
    %250 = vector.extract_strided_slice %235 {offsets = [0, 384], sizes = [16, 128], strides = [1, 1]} : vector<16x512xf32> to vector<16x128xf32>
    %251 = arith.negf %250 : vector<16x128xf32>
    %252 = math.exp %251 : vector<16x128xf32>
    %cst_68 = arith.constant 1.000000e+00 : f32
    %253 = vector.broadcast %cst_68 : f32 to vector<16x128xf32>
    %254 = arith.addf %253, %252 : vector<16x128xf32>
    %255 = arith.divf %253, %254 : vector<16x128xf32>
    %256 = arith.mulf %247, %206 : vector<16x128xf32>
    %257 = arith.mulf %241, %249 : vector<16x128xf32>
    %258 = arith.addf %256, %257 : vector<16x128xf32>
    %259 = math.tanh %258 : vector<16x128xf32>
    %260 = arith.mulf %255, %259 : vector<16x128xf32>
    %261 = arith.truncf %260 : vector<16x128xf32> to vector<16x128xbf16>
    %cst_69 = arith.constant dense<0.000000e+00> : vector<16x128xf32>
    %262 = tpu.matmul %261, %4, %cst_69 {dimension_numbers = #tpu.dot_dimension_numbers<[1], [0], [0], [1], [0, 0, 1, 1], [], []>} : vector<16x128xbf16>, vector<128x128xbf16>, vector<16x128xf32> -> vector<16x128xf32>
    %263 = arith.addf %262, %13 : vector<16x128xf32>
    %264 = arith.index_cast %c4_i32 : i32 to index
    %c0_70 = arith.constant 0 : index
    %c0_71 = arith.constant 0 : index
    %265 = vector.load %arg9[%264, %c0_70, %c0_71] : memref<8x16x128xf32, #tpu.memory_space<vmem>>, vector<1x16x128xf32>
    %266 = vector.shape_cast %265 : vector<1x16x128xf32> to vector<16x128xf32>
    %267 = vector.shape_cast %263 : vector<16x128xf32> to vector<1x16x128xf32>
    tpu.vector_store %arg9[%264, %c0_70, %c0_71], %267 {strides = array<i32>} : memref<8x16x128xf32, #tpu.memory_space<vmem>>, vector<1x16x128xf32>,
    %cst_72 = arith.constant dense<0xFF800000> : vector<16xf32>
    %268 = vector.multi_reduction <maximumf>, %263, %cst_72 [1] : vector<16x128xf32> to vector<16xf32>
    %269 = vector.shape_cast %268 : vector<16xf32> to vector<16x1xf32>
    %270 = vector.broadcast %269 : vector<16x1xf32> to vector<16x128xf32>
    %271 = arith.cmpf oeq, %263, %270 : vector<16x128xf32>
    %c128_i32_73 = arith.constant 128 : i32
    %272 = vector.broadcast %c128_i32_73 : i32 to vector<16x128xi32>
    %273 = arith.select %271, %14, %272 : vector<16x128xi1>, vector<16x128xi32>
    %cst_74 = arith.constant dense<2147483647> : vector<16xi32>
    %274 = vector.multi_reduction <minsi>, %273, %cst_74 [1] : vector<16x128xi32> to vector<16xi32>
    %275 = vector.shape_cast %274 : vector<16xi32> to vector<16x1xi32>
    %c5_i32 = arith.constant 5 : i32
    %276 = vector.broadcast %275 : vector<16x1xi32> to vector<16x128xi32>
    %277 = arith.cmpi eq, %14, %276 : vector<16x128xi32>
    %278 = arith.extui %277 : vector<16x128xi1> to vector<16x128xi32>
    %279 = arith.sitofp %278 : vector<16x128xi32> to vector<16x128xf32>
    %280 = arith.truncf %279 : vector<16x128xf32> to vector<16x128xbf16>
    %cst_75 = arith.constant dense<0.000000e+00> : vector<16x128xf32>
    %281 = tpu.matmul %280, %1, %cst_75 {dimension_numbers = #tpu.dot_dimension_numbers<[1], [0], [0], [1], [0, 0, 1, 1], [], []>} : vector<16x128xbf16>, vector<128x128xbf16>, vector<16x128xf32> -> vector<16x128xf32>
    %282 = arith.truncf %281 : vector<16x128xf32> to vector<16x128xbf16>
    %cst_76 = arith.constant dense<0.000000e+00> : vector<16x512xf32>
    %283 = tpu.matmul %282, %2, %cst_76 {dimension_numbers = #tpu.dot_dimension_numbers<[1], [0], [0], [1], [0, 0, 1, 1], [], []>} : vector<16x128xbf16>, vector<128x512xbf16>, vector<16x512xf32> -> vector<16x512xf32>
    %284 = arith.addf %10, %283 : vector<16x512xf32>
    %285 = arith.truncf %260 : vector<16x128xf32> to vector<16x128xbf16>
    %cst_77 = arith.constant dense<0.000000e+00> : vector<16x512xf32>
    %286 = tpu.matmul %285, %3, %cst_77 {dimension_numbers = #tpu.dot_dimension_numbers<[1], [0], [0], [1], [0, 0, 1, 1], [], []>} : vector<16x128xbf16>, vector<128x512xbf16>, vector<16x512xf32> -> vector<16x512xf32>
    %287 = arith.addf %284, %286 : vector<16x512xf32>
    %288 = vector.extract_strided_slice %287 {offsets = [0, 0], sizes = [16, 128], strides = [1, 1]} : vector<16x512xf32> to vector<16x128xf32>
    %289 = arith.negf %288 : vector<16x128xf32>
    %290 = math.exp %289 : vector<16x128xf32>
    %cst_78 = arith.constant 1.000000e+00 : f32
    %291 = vector.broadcast %cst_78 : f32 to vector<16x128xf32>
    %292 = arith.addf %291, %290 : vector<16x128xf32>
    %293 = arith.divf %291, %292 : vector<16x128xf32>
    %294 = vector.extract_strided_slice %287 {offsets = [0, 128], sizes = [16, 128], strides = [1, 1]} : vector<16x512xf32> to vector<16x128xf32>
    %295 = arith.negf %294 : vector<16x128xf32>
    %296 = math.exp %295 : vector<16x128xf32>
    %cst_79 = arith.constant 1.000000e+00 : f32
    %297 = vector.broadcast %cst_79 : f32 to vector<16x128xf32>
    %298 = arith.addf %297, %296 : vector<16x128xf32>
    %299 = arith.divf %297, %298 : vector<16x128xf32>
    %300 = vector.extract_strided_slice %287 {offsets = [0, 256], sizes = [16, 128], strides = [1, 1]} : vector<16x512xf32> to vector<16x128xf32>
    %301 = math.tanh %300 : vector<16x128xf32>
    %302 = vector.extract_strided_slice %287 {offsets = [0, 384], sizes = [16, 128], strides = [1, 1]} : vector<16x512xf32> to vector<16x128xf32>
    %303 = arith.negf %302 : vector<16x128xf32>
    %304 = math.exp %303 : vector<16x128xf32>
    %cst_80 = arith.constant 1.000000e+00 : f32
    %305 = vector.broadcast %cst_80 : f32 to vector<16x128xf32>
    %306 = arith.addf %305, %304 : vector<16x128xf32>
    %307 = arith.divf %305, %306 : vector<16x128xf32>
    %308 = arith.mulf %299, %258 : vector<16x128xf32>
    %309 = arith.mulf %293, %301 : vector<16x128xf32>
    %310 = arith.addf %308, %309 : vector<16x128xf32>
    %311 = math.tanh %310 : vector<16x128xf32>
    %312 = arith.mulf %307, %311 : vector<16x128xf32>
    %313 = arith.truncf %312 : vector<16x128xf32> to vector<16x128xbf16>
    %cst_81 = arith.constant dense<0.000000e+00> : vector<16x128xf32>
    %314 = tpu.matmul %313, %4, %cst_81 {dimension_numbers = #tpu.dot_dimension_numbers<[1], [0], [0], [1], [0, 0, 1, 1], [], []>} : vector<16x128xbf16>, vector<128x128xbf16>, vector<16x128xf32> -> vector<16x128xf32>
    %315 = arith.addf %314, %13 : vector<16x128xf32>
    %316 = arith.index_cast %c5_i32 : i32 to index
    %c0_82 = arith.constant 0 : index
    %c0_83 = arith.constant 0 : index
    %317 = vector.load %arg9[%316, %c0_82, %c0_83] : memref<8x16x128xf32, #tpu.memory_space<vmem>>, vector<1x16x128xf32>
    %318 = vector.shape_cast %317 : vector<1x16x128xf32> to vector<16x128xf32>
    %319 = vector.shape_cast %315 : vector<16x128xf32> to vector<1x16x128xf32>
    tpu.vector_store %arg9[%316, %c0_82, %c0_83], %319 {strides = array<i32>} : memref<8x16x128xf32, #tpu.memory_space<vmem>>, vector<1x16x128xf32>,
    %cst_84 = arith.constant dense<0xFF800000> : vector<16xf32>
    %320 = vector.multi_reduction <maximumf>, %315, %cst_84 [1] : vector<16x128xf32> to vector<16xf32>
    %321 = vector.shape_cast %320 : vector<16xf32> to vector<16x1xf32>
    %322 = vector.broadcast %321 : vector<16x1xf32> to vector<16x128xf32>
    %323 = arith.cmpf oeq, %315, %322 : vector<16x128xf32>
    %c128_i32_85 = arith.constant 128 : i32
    %324 = vector.broadcast %c128_i32_85 : i32 to vector<16x128xi32>
    %325 = arith.select %323, %14, %324 : vector<16x128xi1>, vector<16x128xi32>
    %cst_86 = arith.constant dense<2147483647> : vector<16xi32>
    %326 = vector.multi_reduction <minsi>, %325, %cst_86 [1] : vector<16x128xi32> to vector<16xi32>
    %327 = vector.shape_cast %326 : vector<16xi32> to vector<16x1xi32>
    %c6_i32 = arith.constant 6 : i32
    %328 = vector.broadcast %327 : vector<16x1xi32> to vector<16x128xi32>
    %329 = arith.cmpi eq, %14, %328 : vector<16x128xi32>
    %330 = arith.extui %329 : vector<16x128xi1> to vector<16x128xi32>
    %331 = arith.sitofp %330 : vector<16x128xi32> to vector<16x128xf32>
    %332 = arith.truncf %331 : vector<16x128xf32> to vector<16x128xbf16>
    %cst_87 = arith.constant dense<0.000000e+00> : vector<16x128xf32>
    %333 = tpu.matmul %332, %1, %cst_87 {dimension_numbers = #tpu.dot_dimension_numbers<[1], [0], [0], [1], [0, 0, 1, 1], [], []>} : vector<16x128xbf16>, vector<128x128xbf16>, vector<16x128xf32> -> vector<16x128xf32>
    %334 = arith.truncf %333 : vector<16x128xf32> to vector<16x128xbf16>
    %cst_88 = arith.constant dense<0.000000e+00> : vector<16x512xf32>
    %335 = tpu.matmul %334, %2, %cst_88 {dimension_numbers = #tpu.dot_dimension_numbers<[1], [0], [0], [1], [0, 0, 1, 1], [], []>} : vector<16x128xbf16>, vector<128x512xbf16>, vector<16x512xf32> -> vector<16x512xf32>
    %336 = arith.addf %10, %335 : vector<16x512xf32>
    %337 = arith.truncf %312 : vector<16x128xf32> to vector<16x128xbf16>
    %cst_89 = arith.constant dense<0.000000e+00> : vector<16x512xf32>
    %338 = tpu.matmul %337, %3, %cst_89 {dimension_numbers = #tpu.dot_dimension_numbers<[1], [0], [0], [1], [0, 0, 1, 1], [], []>} : vector<16x128xbf16>, vector<128x512xbf16>, vector<16x512xf32> -> vector<16x512xf32>
    %339 = arith.addf %336, %338 : vector<16x512xf32>
    %340 = vector.extract_strided_slice %339 {offsets = [0, 0], sizes = [16, 128], strides = [1, 1]} : vector<16x512xf32> to vector<16x128xf32>
    %341 = arith.negf %340 : vector<16x128xf32>
    %342 = math.exp %341 : vector<16x128xf32>
    %cst_90 = arith.constant 1.000000e+00 : f32
    %343 = vector.broadcast %cst_90 : f32 to vector<16x128xf32>
    %344 = arith.addf %343, %342 : vector<16x128xf32>
    %345 = arith.divf %343, %344 : vector<16x128xf32>
    %346 = vector.extract_strided_slice %339 {offsets = [0, 128], sizes = [16, 128], strides = [1, 1]} : vector<16x512xf32> to vector<16x128xf32>
    %347 = arith.negf %346 : vector<16x128xf32>
    %348 = math.exp %347 : vector<16x128xf32>
    %cst_91 = arith.constant 1.000000e+00 : f32
    %349 = vector.broadcast %cst_91 : f32 to vector<16x128xf32>
    %350 = arith.addf %349, %348 : vector<16x128xf32>
    %351 = arith.divf %349, %350 : vector<16x128xf32>
    %352 = vector.extract_strided_slice %339 {offsets = [0, 256], sizes = [16, 128], strides = [1, 1]} : vector<16x512xf32> to vector<16x128xf32>
    %353 = math.tanh %352 : vector<16x128xf32>
    %354 = vector.extract_strided_slice %339 {offsets = [0, 384], sizes = [16, 128], strides = [1, 1]} : vector<16x512xf32> to vector<16x128xf32>
    %355 = arith.negf %354 : vector<16x128xf32>
    %356 = math.exp %355 : vector<16x128xf32>
    %cst_92 = arith.constant 1.000000e+00 : f32
    %357 = vector.broadcast %cst_92 : f32 to vector<16x128xf32>
    %358 = arith.addf %357, %356 : vector<16x128xf32>
    %359 = arith.divf %357, %358 : vector<16x128xf32>
    %360 = arith.mulf %351, %310 : vector<16x128xf32>
    %361 = arith.mulf %345, %353 : vector<16x128xf32>
    %362 = arith.addf %360, %361 : vector<16x128xf32>
    %363 = math.tanh %362 : vector<16x128xf32>
    %364 = arith.mulf %359, %363 : vector<16x128xf32>
    %365 = arith.truncf %364 : vector<16x128xf32> to vector<16x128xbf16>
    %cst_93 = arith.constant dense<0.000000e+00> : vector<16x128xf32>
    %366 = tpu.matmul %365, %4, %cst_93 {dimension_numbers = #tpu.dot_dimension_numbers<[1], [0], [0], [1], [0, 0, 1, 1], [], []>} : vector<16x128xbf16>, vector<128x128xbf16>, vector<16x128xf32> -> vector<16x128xf32>
    %367 = arith.addf %366, %13 : vector<16x128xf32>
    %368 = arith.index_cast %c6_i32 : i32 to index
    %c0_94 = arith.constant 0 : index
    %c0_95 = arith.constant 0 : index
    %369 = vector.load %arg9[%368, %c0_94, %c0_95] : memref<8x16x128xf32, #tpu.memory_space<vmem>>, vector<1x16x128xf32>
    %370 = vector.shape_cast %369 : vector<1x16x128xf32> to vector<16x128xf32>
    %371 = vector.shape_cast %367 : vector<16x128xf32> to vector<1x16x128xf32>
    tpu.vector_store %arg9[%368, %c0_94, %c0_95], %371 {strides = array<i32>} : memref<8x16x128xf32, #tpu.memory_space<vmem>>, vector<1x16x128xf32>,
    %cst_96 = arith.constant dense<0xFF800000> : vector<16xf32>
    %372 = vector.multi_reduction <maximumf>, %367, %cst_96 [1] : vector<16x128xf32> to vector<16xf32>
    %373 = vector.shape_cast %372 : vector<16xf32> to vector<16x1xf32>
    %374 = vector.broadcast %373 : vector<16x1xf32> to vector<16x128xf32>
    %375 = arith.cmpf oeq, %367, %374 : vector<16x128xf32>
    %c128_i32_97 = arith.constant 128 : i32
    %376 = vector.broadcast %c128_i32_97 : i32 to vector<16x128xi32>
    %377 = arith.select %375, %14, %376 : vector<16x128xi1>, vector<16x128xi32>
    %cst_98 = arith.constant dense<2147483647> : vector<16xi32>
    %378 = vector.multi_reduction <minsi>, %377, %cst_98 [1] : vector<16x128xi32> to vector<16xi32>
    %379 = vector.shape_cast %378 : vector<16xi32> to vector<16x1xi32>
    %c7_i32 = arith.constant 7 : i32
    %380 = vector.broadcast %379 : vector<16x1xi32> to vector<16x128xi32>
    %381 = arith.cmpi eq, %14, %380 : vector<16x128xi32>
    %382 = arith.extui %381 : vector<16x128xi1> to vector<16x128xi32>
    %383 = arith.sitofp %382 : vector<16x128xi32> to vector<16x128xf32>
    %384 = arith.truncf %383 : vector<16x128xf32> to vector<16x128xbf16>
    %cst_99 = arith.constant dense<0.000000e+00> : vector<16x128xf32>
    %385 = tpu.matmul %384, %1, %cst_99 {dimension_numbers = #tpu.dot_dimension_numbers<[1], [0], [0], [1], [0, 0, 1, 1], [], []>} : vector<16x128xbf16>, vector<128x128xbf16>, vector<16x128xf32> -> vector<16x128xf32>
    %386 = arith.truncf %385 : vector<16x128xf32> to vector<16x128xbf16>
    %cst_100 = arith.constant dense<0.000000e+00> : vector<16x512xf32>
    %387 = tpu.matmul %386, %2, %cst_100 {dimension_numbers = #tpu.dot_dimension_numbers<[1], [0], [0], [1], [0, 0, 1, 1], [], []>} : vector<16x128xbf16>, vector<128x512xbf16>, vector<16x512xf32> -> vector<16x512xf32>
    %388 = arith.addf %10, %387 : vector<16x512xf32>
    %389 = arith.truncf %364 : vector<16x128xf32> to vector<16x128xbf16>
    %cst_101 = arith.constant dense<0.000000e+00> : vector<16x512xf32>
    %390 = tpu.matmul %389, %3, %cst_101 {dimension_numbers = #tpu.dot_dimension_numbers<[1], [0], [0], [1], [0, 0, 1, 1], [], []>} : vector<16x128xbf16>, vector<128x512xbf16>, vector<16x512xf32> -> vector<16x512xf32>
    %391 = arith.addf %388, %390 : vector<16x512xf32>
    %392 = vector.extract_strided_slice %391 {offsets = [0, 0], sizes = [16, 128], strides = [1, 1]} : vector<16x512xf32> to vector<16x128xf32>
    %393 = arith.negf %392 : vector<16x128xf32>
    %394 = math.exp %393 : vector<16x128xf32>
    %cst_102 = arith.constant 1.000000e+00 : f32
    %395 = vector.broadcast %cst_102 : f32 to vector<16x128xf32>
    %396 = arith.addf %395, %394 : vector<16x128xf32>
    %397 = arith.divf %395, %396 : vector<16x128xf32>
    %398 = vector.extract_strided_slice %391 {offsets = [0, 128], sizes = [16, 128], strides = [1, 1]} : vector<16x512xf32> to vector<16x128xf32>
    %399 = arith.negf %398 : vector<16x128xf32>
    %400 = math.exp %399 : vector<16x128xf32>
    %cst_103 = arith.constant 1.000000e+00 : f32
    %401 = vector.broadcast %cst_103 : f32 to vector<16x128xf32>
    %402 = arith.addf %401, %400 : vector<16x128xf32>
    %403 = arith.divf %401, %402 : vector<16x128xf32>
    %404 = vector.extract_strided_slice %391 {offsets = [0, 256], sizes = [16, 128], strides = [1, 1]} : vector<16x512xf32> to vector<16x128xf32>
    %405 = math.tanh %404 : vector<16x128xf32>
    %406 = vector.extract_strided_slice %391 {offsets = [0, 384], sizes = [16, 128], strides = [1, 1]} : vector<16x512xf32> to vector<16x128xf32>
    %407 = arith.negf %406 : vector<16x128xf32>
    %408 = math.exp %407 : vector<16x128xf32>
    %cst_104 = arith.constant 1.000000e+00 : f32
    %409 = vector.broadcast %cst_104 : f32 to vector<16x128xf32>
    %410 = arith.addf %409, %408 : vector<16x128xf32>
    %411 = arith.divf %409, %410 : vector<16x128xf32>
    %412 = arith.mulf %403, %362 : vector<16x128xf32>
    %413 = arith.mulf %397, %405 : vector<16x128xf32>
    %414 = arith.addf %412, %413 : vector<16x128xf32>
    %415 = math.tanh %414 : vector<16x128xf32>
    %416 = arith.mulf %411, %415 : vector<16x128xf32>
    %417 = arith.truncf %416 : vector<16x128xf32> to vector<16x128xbf16>
    %cst_105 = arith.constant dense<0.000000e+00> : vector<16x128xf32>
    %418 = tpu.matmul %417, %4, %cst_105 {dimension_numbers = #tpu.dot_dimension_numbers<[1], [0], [0], [1], [0, 0, 1, 1], [], []>} : vector<16x128xbf16>, vector<128x128xbf16>, vector<16x128xf32> -> vector<16x128xf32>
    %419 = arith.addf %418, %13 : vector<16x128xf32>
    %420 = arith.index_cast %c7_i32 : i32 to index
    %c0_106 = arith.constant 0 : index
    %c0_107 = arith.constant 0 : index
    %421 = vector.load %arg9[%420, %c0_106, %c0_107] : memref<8x16x128xf32, #tpu.memory_space<vmem>>, vector<1x16x128xf32>
    %422 = vector.shape_cast %421 : vector<1x16x128xf32> to vector<16x128xf32>
    %423 = vector.shape_cast %419 : vector<16x128xf32> to vector<1x16x128xf32>
    tpu.vector_store %arg9[%420, %c0_106, %c0_107], %423 {strides = array<i32>} : memref<8x16x128xf32, #tpu.memory_space<vmem>>, vector<1x16x128xf32>,
    %cst_108 = arith.constant dense<0xFF800000> : vector<16xf32>
    %424 = vector.multi_reduction <maximumf>, %419, %cst_108 [1] : vector<16x128xf32> to vector<16xf32>
    %425 = vector.shape_cast %424 : vector<16xf32> to vector<16x1xf32>
    %426 = vector.broadcast %425 : vector<16x1xf32> to vector<16x128xf32>
    %427 = arith.cmpf oeq, %419, %426 : vector<16x128xf32>
    %c128_i32_109 = arith.constant 128 : i32
    %428 = vector.broadcast %c128_i32_109 : i32 to vector<16x128xi32>
    %429 = arith.select %427, %14, %428 : vector<16x128xi1>, vector<16x128xi32>
    %cst_110 = arith.constant dense<2147483647> : vector<16xi32>
    %430 = vector.multi_reduction <minsi>, %429, %cst_110 [1] : vector<16x128xi32> to vector<16xi32>
    %431 = vector.shape_cast %430 : vector<16xi32> to vector<16x1xi32>
    %c8_i32 = arith.constant 8 : i32
    %c0_111 = arith.constant 0 : index
    %c0_112 = arith.constant 0 : index
    %432 = vector.load %arg10[%c0_111, %c0_112] : memref<16x128xf32, #tpu.memory_space<vmem>>, vector<16x128xf32>
    tpu.vector_store %arg10[%c0_111, %c0_112], %416 {strides = array<i32>} : memref<16x128xf32, #tpu.memory_space<vmem>>, vector<16x128xf32>,
    %c0_113 = arith.constant 0 : index
    %c0_114 = arith.constant 0 : index
    %433 = vector.load %arg11[%c0_113, %c0_114] : memref<16x128xf32, #tpu.memory_space<vmem>>, vector<16x128xf32>
    tpu.vector_store %arg11[%c0_113, %c0_114], %414 {strides = array<i32>} : memref<16x128xf32, #tpu.memory_space<vmem>>, vector<16x128xf32>,
    return
  }
  func.func @transform_0(%arg0: i32) -> (i32, i32) {
    %c0_i32 = arith.constant 0 : i32
    %c0_i32_0 = arith.constant 0 : i32
    return %arg0, %c0_i32 : i32, i32
  }
  func.func @transform_1(%arg0: i32) -> (i32, i32) {
    %c0_i32 = arith.constant 0 : i32
    %c0_i32_0 = arith.constant 0 : i32
    %c0_i32_1 = arith.constant 0 : i32
    return %c0_i32, %c0_i32_0 : i32, i32
  }
  func.func @transform_2(%arg0: i32) -> (i32, i32) {
    %c0_i32 = arith.constant 0 : i32
    %c0_i32_0 = arith.constant 0 : i32
    %c0_i32_1 = arith.constant 0 : i32
    return %c0_i32, %c0_i32_0 : i32, i32
  }
  func.func @transform_3(%arg0: i32) -> (i32, i32) {
    %c0_i32 = arith.constant 0 : i32
    %c0_i32_0 = arith.constant 0 : i32
    %c0_i32_1 = arith.constant 0 : i32
    return %c0_i32, %c0_i32_0 : i32, i32
  }
  func.func @transform_4(%arg0: i32) -> (i32, i32) {
    %c0_i32 = arith.constant 0 : i32
    %c0_i32_0 = arith.constant 0 : i32
    %c0_i32_1 = arith.constant 0 : i32
    return %c0_i32, %c0_i32_0 : i32, i32
  }
  func.func @transform_5(%arg0: i32) -> (i32, i32) {
    %c0_i32 = arith.constant 0 : i32
    %c0_i32_0 = arith.constant 0 : i32
    %c0_i32_1 = arith.constant 0 : i32
    return %c0_i32, %c0_i32_0 : i32, i32
  }
  func.func @transform_6(%arg0: i32) -> (i32, i32) {
    %c0_i32 = arith.constant 0 : i32
    %c0_i32_0 = arith.constant 0 : i32
    %c0_i32_1 = arith.constant 0 : i32
    return %c0_i32, %c0_i32_0 : i32, i32
  }
  func.func @transform_7(%arg0: i32) -> (i32, i32) {
    %c0_i32 = arith.constant 0 : i32
    %c0_i32_0 = arith.constant 0 : i32
    %c0_i32_1 = arith.constant 0 : i32
    return %c0_i32, %c0_i32_0 : i32, i32
  }
  func.func @transform_8(%arg0: i32) -> (i32, i32, i32) {
    %c0_i32 = arith.constant 0 : i32
    %c0_i32_0 = arith.constant 0 : i32
    %c0_i32_1 = arith.constant 0 : i32
    return %c0_i32, %arg0, %c0_i32_0 : i32, i32, i32
  }
  func.func @transform_9(%arg0: i32) -> (i32, i32) {
    %c0_i32 = arith.constant 0 : i32
    %c0_i32_0 = arith.constant 0 : i32
    return %arg0, %c0_i32 : i32, i32
  }
  func.func @transform_10(%arg0: i32) -> (i32, i32) {
    %c0_i32 = arith.constant 0 : i32
    %c0_i32_0 = arith.constant 0 : i32
    return %arg0, %c0_i32 : i32, i32
  }
}

</mosaic_0001>

<llo_original>
// kernel: tpu_custom_call.1
$region0: #{tpu_custom_call.1}
  #allocation0 [shape = 'u32[]', space=smem, size = 0x4, offset = 0x4, fixed_abs, tag = 'smem constant byte address 0x4 - core index']
  #allocation1 [shape = 'u32[144,128]{1,0:T(1,128)}', space=vmem, size = 0x12000, scoped, tag = 'internal scratch']
  %s0 = inlined_call_operand.hbm [shape: f32[16,128], index: 0, kind: input, shape index: {}]
  %s1 = inlined_call_operand.hbm [shape: bf16[128,128], index: 1, kind: input, shape index: {}]
  %s2 = inlined_call_operand.hbm [shape: bf16[128,512], index: 2, kind: input, shape index: {}]
  %s3 = inlined_call_operand.hbm [shape: bf16[128,512], index: 3, kind: input, shape index: {}]
  %s4 = inlined_call_operand.hbm [shape: bf16[128,512], index: 4, kind: input, shape index: {}]
  %s5 = inlined_call_operand.vmem [shape: f32[1,512], index: 5, kind: input, shape index: {}]
  %s6 = inlined_call_operand.hbm [shape: bf16[128,128], index: 6, kind: input, shape index: {}]
  %s7 = inlined_call_operand.vmem [shape: f32[1,128], index: 7, kind: input, shape index: {}]
  %s8 = inlined_call_operand.hbm [shape: f32[8,16,128], index: 8, kind: output, shape index: {0}]
  %s9 = inlined_call_operand.hbm [shape: f32[16,128], index: 9, kind: output, shape index: {1}]
  %s10 = inlined_call_operand.hbm [shape: f32[16,128], index: 10, kind: output, shape index: {2}]
  %11 = xla_tuple %s8, %s9, %s10
  %s12 = sld [smem:[#allocation0]]
  $region82: #{tpu_custom_call.1} parent=0
    _
  %s14 = ssub.s32 1, %s12
  %s15 = scalar_select 0, %s14, %s12
  $region1: #{tpu_custom_call.1} parent=0
    #allocation2 [shape = 'u8[8192]{0}', space=vmem, size = 0x2000, scoped, tag = 'input window, operand 0, single buffered']
    #allocation3 [shape = 's32[1]{0}', space=sflag, size = 0x4, scoped, tag = 'scoped memory for tpu_custom_call.1']
    #allocation4 [shape = 's32[1]{0}', space=sflag, size = 0x4, scoped, tag = 'scoped memory for tpu_custom_call.1']
    #allocation5 [shape = 'u8[32768]{0}', space=vmem, size = 0x8000, scoped, tag = 'input window, operand 1, single buffered']
    #allocation6 [shape = 's32[1]{0}', space=sflag, size = 0x4, scoped, tag = 'scoped memory for tpu_custom_call.1']
    #allocation7 [shape = 'u8[131072]{0}', space=vmem, size = 0x20000, scoped, tag = 'input window, operand 2, single buffered']
    #allocation8 [shape = 'u8[131072]{0}', space=vmem, size = 0x20000, scoped, tag = 'input window, operand 3, single buffered']
    #allocation9 [shape = 's32[1]{0}', space=sflag, size = 0x4, scoped, tag = 'scoped memory for tpu_custom_call.1']
    #allocation10 [shape = 'u8[131072]{0}', space=vmem, size = 0x20000, scoped, tag = 'input window, operand 4, single buffered']
    #allocation11 [shape = 'u8[32768]{0}', space=vmem, size = 0x8000, scoped, tag = 'input window, operand 6, single buffered']
    #allocation12 [shape = 's32[1]{0}', space=sflag, size = 0x4, scoped, tag = 'scoped memory for tpu_custom_call.1']
    #allocation13 [shape = 'u8[65536]{0}', space=vmem, size = 0x10000, scoped, tag = 'output window, operand 0, single buffered']
    #allocation14 [shape = 'u8[8192]{0}', space=vmem, size = 0x2000, scoped, tag = 'output window, operand 1, single buffered']
    #allocation15 [shape = 's32[1]{0}', space=sflag, size = 0x4, scoped, tag = 'scoped memory for tpu_custom_call.1']
    #allocation16 [shape = 'u8[8192]{0}', space=vmem, size = 0x2000, scoped, tag = 'output window, operand 2, single buffered']
    %16 = vsyncpa [#allocation3], 0
    %17 = vsyncpa [#allocation6], 0
    %18 = vsyncpa [#allocation9], 0
    %19 = vsyncpa [#allocation12], 0
    %20 = vsyncpa [#allocation4], 0
    %21 = vsyncpa [#allocation15], 0
    // Predicated region
    $region2: #{tpu_custom_call.1} parent=1 // pred_check
      _
    $region3: #{tpu_custom_call.1} parent=1 // pred_check_branch
      %23 = sbr.rel (0) target = $region5
    $region4: #{tpu_custom_call.1} parent=1 // pred_region
      %s25 = ssub.s32 256, 256
      %26 = vsyncadd [#allocation3], %s25
      %s27 = sshll.u32 [#allocation2], 4
      %s28 = int_to_ptr.vmem [resolvable:$true] %s27
      %33 = dma.hbm_to_vmem [thread:$0]  %s0, 256, %s28, [#allocation3], 128, 128, 8
    $region5: #{tpu_custom_call.1} parent=1 // pred_fallthru
      _
    // Predicated region
    $region6: #{tpu_custom_call.1} parent=1 // pred_check
      _
    $region7: #{tpu_custom_call.1} parent=1 // pred_check_branch
      %35 = sbr.rel (0) target = $region9
    $region8: #{tpu_custom_call.1} parent=1 // pred_region
      %s37 = ssub.s32 1024, 1024
      %38 = vsyncadd [#allocation6], %s37
      %s39 = sshll.u32 [#allocation5], 4
      %s40 = int_to_ptr.vmem [resolvable:$true] %s39
      %45 = dma.hbm_to_vmem [thread:$0]  %s1, 1024, %s40, [#allocation6], 64, 64, 4
    $region9: #{tpu_custom_call.1} parent=1 // pred_fallthru
      _
    // Predicated region
    $region10: #{tpu_custom_call.1} parent=1 // pred_check
      _
    $region11: #{tpu_custom_call.1} parent=1 // pred_check_branch
      %47 = sbr.rel (0) target = $region13
    $region12: #{tpu_custom_call.1} parent=1 // pred_region
      %s49 = ssub.s32 4096, 4096
      %50 = vsyncadd [#allocation6], %s49
      %s51 = sshll.u32 [#allocation7], 4
      %s52 = int_to_ptr.vmem [resolvable:$true] %s51
      %57 = dma.hbm_to_vmem [thread:$0]  %s2, 4096, %s52, [#allocation6], 256, 256, 16
    $region13: #{tpu_custom_call.1} parent=1 // pred_fallthru
      _
    // Predicated region
    $region14: #{tpu_custom_call.1} parent=1 // pred_check
      _
    $region15: #{tpu_custom_call.1} parent=1 // pred_check_branch
      %59 = sbr.rel (0) target = $region17
    $region16: #{tpu_custom_call.1} parent=1 // pred_region
      %s61 = ssub.s32 4096, 4096
      %62 = vsyncadd [#allocation9], %s61
      %s63 = sshll.u32 [#allocation8], 4
      %s64 = int_to_ptr.vmem [resolvable:$true] %s63
      %69 = dma.hbm_to_vmem [thread:$0]  %s3, 4096, %s64, [#allocation9], 256, 256, 16
    $region17: #{tpu_custom_call.1} parent=1 // pred_fallthru
      _
    // Predicated region
    $region18: #{tpu_custom_call.1} parent=1 // pred_check
      _
    $region19: #{tpu_custom_call.1} parent=1 // pred_check_branch
      %71 = sbr.rel (0) target = $region21
    $region20: #{tpu_custom_call.1} parent=1 // pred_region
      %s73 = ssub.s32 4096, 4096
      %74 = vsyncadd [#allocation9], %s73
      %s75 = sshll.u32 [#allocation10], 4
      %s76 = int_to_ptr.vmem [resolvable:$true] %s75
      %81 = dma.hbm_to_vmem [thread:$0]  %s4, 4096, %s76, [#allocation9], 256, 256, 16
    $region21: #{tpu_custom_call.1} parent=1 // pred_fallthru
      _
    // Predicated region
    $region22: #{tpu_custom_call.1} parent=1 // pred_check
      _
    $region23: #{tpu_custom_call.1} parent=1 // pred_check_branch
      %83 = sbr.rel (0) target = $region25
    $region24: #{tpu_custom_call.1} parent=1 // pred_region
      _
    $region25: #{tpu_custom_call.1} parent=1 // pred_fallthru
      _
    // Predicated region
    $region26: #{tpu_custom_call.1} parent=1 // pred_check
      _
    $region27: #{tpu_custom_call.1} parent=1 // pred_check_branch
      %85 = sbr.rel (0) target = $region29
    $region28: #{tpu_custom_call.1} parent=1 // pred_region
      %s87 = ssub.s32 1024, 1024
      %88 = vsyncadd [#allocation12], %s87
      %s89 = sshll.u32 [#allocation11], 4
      %s90 = int_to_ptr.vmem [resolvable:$true] %s89
      %95 = dma.hbm_to_vmem [thread:$0]  %s6, 1024, %s90, [#allocation12], 64, 64, 4
    $region29: #{tpu_custom_call.1} parent=1 // pred_fallthru
      _
    // Predicated region
    $region30: #{tpu_custom_call.1} parent=1 // pred_check
      _
    $region31: #{tpu_custom_call.1} parent=1 // pred_check_branch
      %97 = sbr.rel (0) target = $region33
    $region32: #{tpu_custom_call.1} parent=1 // pred_region
      _
    $region33: #{tpu_custom_call.1} parent=1 // pred_fallthru
      _
    // Predicated region
    $region34: #{tpu_custom_call.1} parent=1 // pred_check
      _
    $region35: #{tpu_custom_call.1} parent=1 // pred_check_branch
      %99 = sbr.rel (0) target = $region37
    $region36: #{tpu_custom_call.1} parent=1 // pred_region
      %100 = dma.done [#allocation3], 256
    $region37: #{tpu_custom_call.1} parent=1 // pred_fallthru
      _
    // Predicated region
    $region38: #{tpu_custom_call.1} parent=1 // pred_check
      _
    $region39: #{tpu_custom_call.1} parent=1 // pred_check_branch
      %102 = sbr.rel (0) target = $region41
    $region40: #{tpu_custom_call.1} parent=1 // pred_region
      %103 = dma.done [#allocation6], 1024
    $region41: #{tpu_custom_call.1} parent=1 // pred_fallthru
      _
    // Predicated region
    $region42: #{tpu_custom_call.1} parent=1 // pred_check
      _
    $region43: #{tpu_custom_call.1} parent=1 // pred_check_branch
      %105 = sbr.rel (0) target = $region45
    $region44: #{tpu_custom_call.1} parent=1 // pred_region
      %106 = dma.done [#allocation6], 4096
    $region45: #{tpu_custom_call.1} parent=1 // pred_fallthru
      _
    // Predicated region
    $region46: #{tpu_custom_call.1} parent=1 // pred_check
      _
    $region47: #{tpu_custom_call.1} parent=1 // pred_check_branch
      %108 = sbr.rel (0) target = $region49
    $region48: #{tpu_custom_call.1} parent=1 // pred_region
      %109 = dma.done [#allocation9], 4096
    $region49: #{tpu_custom_call.1} parent=1 // pred_fallthru
      _
    // Predicated region
    $region50: #{tpu_custom_call.1} parent=1 // pred_check
      _
    $region51: #{tpu_custom_call.1} parent=1 // pred_check_branch
      %111 = sbr.rel (0) target = $region53
    $region52: #{tpu_custom_call.1} parent=1 // pred_region
      %112 = dma.done [#allocation9], 4096
    $region53: #{tpu_custom_call.1} parent=1 // pred_fallthru
      _
    // Predicated region
    $region54: #{tpu_custom_call.1} parent=1 // pred_check
      _
    $region55: #{tpu_custom_call.1} parent=1 // pred_check_branch
      %114 = sbr.rel (0) target = $region57
    $region56: #{tpu_custom_call.1} parent=1 // pred_region
      %115 = dma.done [#allocation12], 1024
    $region57: #{tpu_custom_call.1} parent=1 // pred_fallthru
      _
    %v117 = vld [vmem:[#allocation2] sm:$0xff]
    %v118 = vld [vmem:[#allocation2 + $0x8] sm:$0xff]
    %v119 = vld [vmem:[#allocation5] sm:$0xf]
    %v120 = vld [vmem:[#allocation5 + $0x4] sm:$0xf]
    %v121 = vld [vmem:[#allocation5 + $0x8] sm:$0xf]
    %v122 = vld [vmem:[#allocation5 + $0xc] sm:$0xf]
    %v123 = vld [vmem:[#allocation5 + $0x10] sm:$0xf]
    %v124 = vld [vmem:[#allocation5 + $0x14] sm:$0xf]
    %v125 = vld [vmem:[#allocation5 + $0x18] sm:$0xf]
    %v126 = vld [vmem:[#allocation5 + $0x1c] sm:$0xf]
    %v127 = vld [vmem:[#allocation5 + $0x20] sm:$0xf]
    %v128 = vld [vmem:[#allocation5 + $0x24] sm:$0xf]
    %v129 = vld [vmem:[#allocation5 + $0x28] sm:$0xf]
    %v130 = vld [vmem:[#allocation5 + $0x2c] sm:$0xf]
    %v131 = vld [vmem:[#allocation5 + $0x30] sm:$0xf]
    %v132 = vld [vmem:[#allocation5 + $0x34] sm:$0xf]
    %v133 = vld [vmem:[#allocation5 + $0x38] sm:$0xf]
    %v134 = vld [vmem:[#allocation5 + $0x3c] sm:$0xf]
    %v135 = vld [vmem:[#allocation8] sm:$0xff]
    %v136 = vld [vmem:[#allocation8 + $0x8] sm:$0xff]
    %v137 = vld [vmem:[#allocation8 + $0x10] sm:$0xff]
    %v138 = vld [vmem:[#allocation8 + $0x18] sm:$0xff]
    %v139 = vld [vmem:[#allocation8 + $0x20] sm:$0xff]
    %v140 = vld [vmem:[#allocation8 + $0x28] sm:$0xff]
    %v141 = vld [vmem:[#allocation8 + $0x30] sm:$0xff]
    %v142 = vld [vmem:[#allocation8 + $0x38] sm:$0xff]
    %v143 = vld [vmem:[#allocation8 + $0x40] sm:$0xff]
    %v144 = vld [vmem:[#allocation8 + $0x48] sm:$0xff]
    %v145 = vld [vmem:[#allocation8 + $0x50] sm:$0xff]
    %v146 = vld [vmem:[#allocation8 + $0x58] sm:$0xff]
    %v147 = vld [vmem:[#allocation8 + $0x60] sm:$0xff]
    %v148 = vld [vmem:[#allocation8 + $0x68] sm:$0xff]
    %v149 = vld [vmem:[#allocation8 + $0x70] sm:$0xff]
    %v150 = vld [vmem:[#allocation8 + $0x78] sm:$0xff]
    %v151 = vld [vmem:[#allocation8 + $0x80] sm:$0xff]
    %v152 = vld [vmem:[#allocation8 + $0x88] sm:$0xff]
    %v153 = vld [vmem:[#allocation8 + $0x90] sm:$0xff]
    %v154 = vld [vmem:[#allocation8 + $0x98] sm:$0xff]
    %v155 = vld [vmem:[#allocation8 + $0xa0] sm:$0xff]
    %v156 = vld [vmem:[#allocation8 + $0xa8] sm:$0xff]
    %v157 = vld [vmem:[#allocation8 + $0xb0] sm:$0xff]
    %v158 = vld [vmem:[#allocation8 + $0xb8] sm:$0xff]
    %v159 = vld [vmem:[#allocation8 + $0xc0] sm:$0xff]
    %v160 = vld [vmem:[#allocation8 + $0xc8] sm:$0xff]
    %v161 = vld [vmem:[#allocation8 + $0xd0] sm:$0xff]
    %v162 = vld [vmem:[#allocation8 + $0xd8] sm:$0xff]
    %v163 = vld [vmem:[#allocation8 + $0xe0] sm:$0xff]
    %v164 = vld [vmem:[#allocation8 + $0xe8] sm:$0xff]
    %v165 = vld [vmem:[#allocation8 + $0xf0] sm:$0xff]
    %v166 = vld [vmem:[#allocation8 + $0xf8] sm:$0xff]
    %v167 = vld [vmem:[#allocation10] sm:$0xff]
    %v168 = vld [vmem:[#allocation10 + $0x8] sm:$0xff]
    %v169 = vld [vmem:[#allocation10 + $0x10] sm:$0xff]
    %v170 = vld [vmem:[#allocation10 + $0x18] sm:$0xff]
    %v171 = vld [vmem:[#allocation10 + $0x20] sm:$0xff]
    %v172 = vld [vmem:[#allocation10 + $0x28] sm:$0xff]
    %v173 = vld [vmem:[#allocation10 + $0x30] sm:$0xff]
    %v174 = vld [vmem:[#allocation10 + $0x38] sm:$0xff]
    %v175 = vld [vmem:[#allocation10 + $0x40] sm:$0xff]
    %v176 = vld [vmem:[#allocation10 + $0x48] sm:$0xff]
    %v177 = vld [vmem:[#allocation10 + $0x50] sm:$0xff]
    %v178 = vld [vmem:[#allocation10 + $0x58] sm:$0xff]
    %v179 = vld [vmem:[#allocation10 + $0x60] sm:$0xff]
    %v180 = vld [vmem:[#allocation10 + $0x68] sm:$0xff]
    %v181 = vld [vmem:[#allocation10 + $0x70] sm:$0xff]
    %v182 = vld [vmem:[#allocation10 + $0x78] sm:$0xff]
    %v183 = vld [vmem:[#allocation10 + $0x80] sm:$0xff]
    %v184 = vld [vmem:[#allocation10 + $0x88] sm:$0xff]
    %v185 = vld [vmem:[#allocation10 + $0x90] sm:$0xff]
    %v186 = vld [vmem:[#allocation10 + $0x98] sm:$0xff]
    %v187 = vld [vmem:[#allocation10 + $0xa0] sm:$0xff]
    %v188 = vld [vmem:[#allocation10 + $0xa8] sm:$0xff]
    %v189 = vld [vmem:[#allocation10 + $0xb0] sm:$0xff]
    %v190 = vld [vmem:[#allocation10 + $0xb8] sm:$0xff]
    %v191 = vld [vmem:[#allocation10 + $0xc0] sm:$0xff]
    %v192 = vld [vmem:[#allocation10 + $0xc8] sm:$0xff]
    %v193 = vld [vmem:[#allocation10 + $0xd0] sm:$0xff]
    %v194 = vld [vmem:[#allocation10 + $0xd8] sm:$0xff]
    %v195 = vld [vmem:[#allocation10 + $0xe0] sm:$0xff]
    %v196 = vld [vmem:[#allocation10 + $0xe8] sm:$0xff]
    %v197 = vld [vmem:[#allocation10 + $0xf0] sm:$0xff]
    %v198 = vld [vmem:[#allocation10 + $0xf8] sm:$0xff]
    %v199 = vld [vmem:[#allocation11] sm:$0xf]
    %v200 = vld [vmem:[#allocation11 + $0x4] sm:$0xf]
    %v201 = vld [vmem:[#allocation11 + $0x8] sm:$0xf]
    %v202 = vld [vmem:[#allocation11 + $0xc] sm:$0xf]
    %v203 = vld [vmem:[#allocation11 + $0x10] sm:$0xf]
    %v204 = vld [vmem:[#allocation11 + $0x14] sm:$0xf]
    %v205 = vld [vmem:[#allocation11 + $0x18] sm:$0xf]
    %v206 = vld [vmem:[#allocation11 + $0x1c] sm:$0xf]
    %v207 = vld [vmem:[#allocation11 + $0x20] sm:$0xf]
    %v208 = vld [vmem:[#allocation11 + $0x24] sm:$0xf]
    %v209 = vld [vmem:[#allocation11 + $0x28] sm:$0xf]
    %v210 = vld [vmem:[#allocation11 + $0x2c] sm:$0xf]
    %v211 = vld [vmem:[#allocation11 + $0x30] sm:$0xf]
    %v212 = vld [vmem:[#allocation11 + $0x34] sm:$0xf]
    %v213 = vld [vmem:[#allocation11 + $0x38] sm:$0xf]
    %v214 = vld [vmem:[#allocation11 + $0x3c] sm:$0xf]
    %v215 = vpack.c.bf16 %v118, %v117
    %v216 = vld [vmem:[#allocation7] sm:$0xff]
    %v217 = vld [vmem:[#allocation7 + $0x8] sm:$0xff]
    %v218 = vld [vmem:[#allocation7 + $0x10] sm:$0xff]
    %v219 = vld [vmem:[#allocation7 + $0x18] sm:$0xff]
    %v220 = vld [vmem:[#allocation7 + $0x20] sm:$0xff]
    %v221 = vld [vmem:[#allocation7 + $0x28] sm:$0xff]
    %v222 = vld [vmem:[#allocation7 + $0x30] sm:$0xff]
    %v223 = vld [vmem:[#allocation7 + $0x38] sm:$0xff]
    %v224 = vld [vmem:[#allocation7 + $0x40] sm:$0xff]
    %v225 = vld [vmem:[#allocation7 + $0x48] sm:$0xff]
    %v226 = vld [vmem:[#allocation7 + $0x50] sm:$0xff]
    %v227 = vld [vmem:[#allocation7 + $0x58] sm:$0xff]
    %v228 = vld [vmem:[#allocation7 + $0x60] sm:$0xff]
    %v229 = vld [vmem:[#allocation7 + $0x68] sm:$0xff]
    %v230 = vld [vmem:[#allocation7 + $0x70] sm:$0xff]
    %v231 = vld [vmem:[#allocation7 + $0x78] sm:$0xff]
    %v232 = vld [vmem:[#allocation7 + $0x80] sm:$0xff]
    %v233 = vld [vmem:[#allocation7 + $0x88] sm:$0xff]
    %v234 = vld [vmem:[#allocation7 + $0x90] sm:$0xff]
    %v235 = vld [vmem:[#allocation7 + $0x98] sm:$0xff]
    %v236 = vld [vmem:[#allocation7 + $0xa0] sm:$0xff]
    %v237 = vld [vmem:[#allocation7 + $0xa8] sm:$0xff]
    %v238 = vld [vmem:[#allocation7 + $0xb0] sm:$0xff]
    %v239 = vld [vmem:[#allocation7 + $0xb8] sm:$0xff]
    %v240 = vld [vmem:[#allocation7 + $0xc0] sm:$0xff]
    %v241 = vld [vmem:[#allocation7 + $0xc8] sm:$0xff]
    %v242 = vld [vmem:[#allocation7 + $0xd0] sm:$0xff]
    %v243 = vld [vmem:[#allocation7 + $0xd8] sm:$0xff]
    %v244 = vld [vmem:[#allocation7 + $0xe0] sm:$0xff]
    %v245 = vld [vmem:[#allocation7 + $0xe8] sm:$0xff]
    %v246 = vld [vmem:[#allocation7 + $0xf0] sm:$0xff]
    %v247 = vld [vmem:[#allocation7 + $0xf8] sm:$0xff]
    %v248 = vld [vmem:[%s5] sm:$0xf]
    %v250 = vlaneseq
    %v251 = vshrl.u32 %v250, 7
    %v252 = vsub.s32 0, %v251
    %v253 = vrot.slane %v248, %v252
    %v254 = vlaneseq
    %v255 = vshrl.u32 %v254, 7
    %v256 = vsub.s32 1, %v255
    %v257 = vrot.slane %v248, %v256
    %v258 = vlaneseq
    %v259 = vshrl.u32 %v258, 7
    %v260 = vsub.s32 2, %v259
    %v261 = vrot.slane %v248, %v260
    %v262 = vlaneseq
    %v263 = vshrl.u32 %v262, 7
    %v264 = vsub.s32 3, %v263
    %v265 = vrot.slane %v248, %v264
    %v302 = vunpack.c.l.b16 %v216
    %v303 = vunpack.c.h.b16 %v216
    %v304 = vunpack.c.l.b16 %v217
    %v305 = vunpack.c.h.b16 %v217
    %v306 = vunpack.c.l.b16 %v218
    %v307 = vunpack.c.h.b16 %v218
    %v308 = vunpack.c.l.b16 %v219
    %v309 = vunpack.c.h.b16 %v219
    %v310 = vunpack.c.l.b16 %v220
    %v311 = vunpack.c.h.b16 %v220
    %v312 = vunpack.c.l.b16 %v221
    %v313 = vunpack.c.h.b16 %v221
    %v314 = vunpack.c.l.b16 %v222
    %v315 = vunpack.c.h.b16 %v222
    %v316 = vunpack.c.l.b16 %v223
    %v317 = vunpack.c.h.b16 %v223
    %v318 = vunpack.c.l.b16 %v224
    %v319 = vunpack.c.h.b16 %v224
    %v320 = vunpack.c.l.b16 %v225
    %v321 = vunpack.c.h.b16 %v225
    %v322 = vunpack.c.l.b16 %v226
    %v323 = vunpack.c.h.b16 %v226
    %v324 = vunpack.c.l.b16 %v227
    %v325 = vunpack.c.h.b16 %v227
    %v326 = vunpack.c.l.b16 %v228
    %v327 = vunpack.c.h.b16 %v228
    %v328 = vunpack.c.l.b16 %v229
    %v329 = vunpack.c.h.b16 %v229
    %v330 = vunpack.c.l.b16 %v230
    %v331 = vunpack.c.h.b16 %v230
    %v332 = vunpack.c.l.b16 %v231
    %v333 = vunpack.c.h.b16 %v231
    %v334 = vunpack.c.l.b16 %v232
    %v335 = vunpack.c.h.b16 %v232
    %v336 = vunpack.c.l.b16 %v233
    %v337 = vunpack.c.h.b16 %v233
    %v338 = vunpack.c.l.b16 %v234
    %v339 = vunpack.c.h.b16 %v234
    %v340 = vunpack.c.l.b16 %v235
    %v341 = vunpack.c.h.b16 %v235
    %v342 = vunpack.c.l.b16 %v236
    %v343 = vunpack.c.h.b16 %v236
    %v344 = vunpack.c.l.b16 %v237
    %v345 = vunpack.c.h.b16 %v237
    %v346 = vunpack.c.l.b16 %v238
    %v347 = vunpack.c.h.b16 %v238
    %v348 = vunpack.c.l.b16 %v239
    %v349 = vunpack.c.h.b16 %v239
    %v350 = vunpack.c.l.b16 %v240
    %v351 = vunpack.c.h.b16 %v240
    %v352 = vunpack.c.l.b16 %v241
    %v353 = vunpack.c.h.b16 %v241
    %v354 = vunpack.c.l.b16 %v242
    %v355 = vunpack.c.h.b16 %v242
    %v356 = vunpack.c.l.b16 %v243
    %v357 = vunpack.c.h.b16 %v243
    %v358 = vunpack.c.l.b16 %v244
    %v359 = vunpack.c.h.b16 %v244
    %v360 = vunpack.c.l.b16 %v245
    %v361 = vunpack.c.h.b16 %v245
    %v362 = vunpack.c.l.b16 %v246
    %v363 = vunpack.c.h.b16 %v246
    %v364 = vunpack.c.l.b16 %v247
    %v365 = vunpack.c.h.b16 %v247
    %v366 = vpack.c.b16 %v306, %v302
    %v367 = vpack.c.b16 %v307, %v303
    %v368 = vpack.c.b16 %v308, %v304
    %v369 = vpack.c.b16 %v309, %v305
    %v370 = vpack.c.b16 %v314, %v310
    %v371 = vpack.c.b16 %v315, %v311
    %v372 = vpack.c.b16 %v316, %v312
    %v373 = vpack.c.b16 %v317, %v313
    %v374 = vpack.c.b16 %v322, %v318
    %v375 = vpack.c.b16 %v323, %v319
    %v376 = vpack.c.b16 %v324, %v320
    %v377 = vpack.c.b16 %v325, %v321
    %v378 = vpack.c.b16 %v330, %v326
    %v379 = vpack.c.b16 %v331, %v327
    %v380 = vpack.c.b16 %v332, %v328
    %v381 = vpack.c.b16 %v333, %v329
    %v382 = vpack.c.b16 %v338, %v334
    %v383 = vpack.c.b16 %v339, %v335
    %v384 = vpack.c.b16 %v340, %v336
    %v385 = vpack.c.b16 %v341, %v337
    %v386 = vpack.c.b16 %v346, %v342
    %v387 = vpack.c.b16 %v347, %v343
    %v388 = vpack.c.b16 %v348, %v344
    %v389 = vpack.c.b16 %v349, %v345
    %v390 = vpack.c.b16 %v354, %v350
    %v391 = vpack.c.b16 %v355, %v351
    %v392 = vpack.c.b16 %v356, %v352
    %v393 = vpack.c.b16 %v357, %v353
    %v394 = vpack.c.b16 %v362, %v358
    %v395 = vpack.c.b16 %v363, %v359
    %v396 = vpack.c.b16 %v364, %v360
    %v397 = vpack.c.b16 %v365, %v361
    %430 = vmatprep.subr.bf16.mxu0 %v395
    %431 = vmatpush1.bf16.msra.mxu0 %v394
    %432 = vmatprep.subr.bf16.mxu0 %v391
    %433 = vmatpush1.bf16.msra.mxu0 %v390
    %434 = vmatprep.subr.bf16.mxu0 %v387
    %435 = vmatpush1.bf16.msra.mxu0 %v386
    %436 = vmatprep.subr.bf16.mxu0 %v383
    %437 = vmatpush1.bf16.msra.mxu0 %v382
    %438 = vmatprep.subr.bf16.mxu0 %v379
    %439 = vmatpush1.bf16.msra.mxu0 %v378
    %440 = vmatprep.subr.bf16.mxu0 %v375
    %441 = vmatpush1.bf16.msra.mxu0 %v374
    %442 = vmatprep.subr.bf16.mxu0 %v371
    %443 = vmatpush1.bf16.msra.mxu0 %v370
    %444 = vmatprep.subr.bf16.mxu0 %v367
    %445 = vmatpush1.bf16.msra.mxu0 %v366
    %446 = vmatprep.subr.bf16.mxu0 0
    %447 = vmatpush2.bf16.msra.mxu0 0
    %448 = vmatprep.subr.bf16.mxu0 0
    %449 = vmatpush2.bf16.msra.mxu0 0
    %450 = vmatprep.subr.bf16.mxu0 0
    %451 = vmatpush2.bf16.msra.mxu0 0
    %452 = vmatprep.subr.bf16.mxu0 0
    %453 = vmatpush2.bf16.msra.mxu0 0
    %454 = vmatprep.subr.bf16.mxu0 0
    %455 = vmatpush2.bf16.msra.mxu0 0
    %456 = vmatprep.subr.bf16.mxu0 0
    %457 = vmatpush2.bf16.msra.mxu0 0
    %458 = vmatprep.subr.bf16.mxu0 0
    %459 = vmatpush2.bf16.msra.mxu0 0
    %460 = vmatprep.subr.bf16.mxu0 0
    %461 = vmatpush2.bf16.msra.mxu0 0
    %462 = vmatprep.mubr.bf16.mxu0 0
    %463 = vmatmul.mubr.bf16.gmra.mxu0 %v215
    %v464 = vpop.f32.mrf.mxu0
    %v465 = vadd.f32 %v253, %v464
    %v466 = vpop.f32.mrf.mxu0
    %v467 = vadd.f32 %v257, %v466
    %v468 = vpop.f32.mrf.mxu0
    %v469 = vadd.f32 %v253, %v468
    %v470 = vpop.f32.mrf.mxu0
    %v471 = vadd.f32 %v257, %v470
    %472 = vdwg.mxu0
    %473 = vmatprep.subr.bf16.mxu0 %v397
    %474 = vmatpush1.bf16.msra.mxu0 %v396
    %475 = vmatprep.subr.bf16.mxu0 %v393
    %476 = vmatpush1.bf16.msra.mxu0 %v392
    %477 = vmatprep.subr.bf16.mxu0 %v389
    %478 = vmatpush1.bf16.msra.mxu0 %v388
    %479 = vmatprep.subr.bf16.mxu0 %v385
    %480 = vmatpush1.bf16.msra.mxu0 %v384
    %481 = vmatprep.subr.bf16.mxu0 %v381
    %482 = vmatpush1.bf16.msra.mxu0 %v380
    %483 = vmatprep.subr.bf16.mxu0 %v377
    %484 = vmatpush1.bf16.msra.mxu0 %v376
    %485 = vmatprep.subr.bf16.mxu0 %v373
    %486 = vmatpush1.bf16.msra.mxu0 %v372
    %487 = vmatprep.subr.bf16.mxu0 %v369
    %488 = vmatpush1.bf16.msra.mxu0 %v368
    %489 = vmatprep.subr.bf16.mxu0 0
    %490 = vmatpush2.bf16.msra.mxu0 0
    %491 = vmatprep.subr.bf16.mxu0 0
    %492 = vmatpush2.bf16.msra.mxu0 0
    %493 = vmatprep.subr.bf16.mxu0 0
    %494 = vmatpush2.bf16.msra.mxu0 0
    %495 = vmatprep.subr.bf16.mxu0 0
    %496 = vmatpush2.bf16.msra.mxu0 0
    %497 = vmatprep.subr.bf16.mxu0 0
    %498 = vmatpush2.bf16.msra.mxu0 0
    %499 = vmatprep.subr.bf16.mxu0 0
    %500 = vmatpush2.bf16.msra.mxu0 0
    %501 = vmatprep.subr.bf16.mxu0 0
    %502 = vmatpush2.bf16.msra.mxu0 0
    %503 = vmatprep.subr.bf16.mxu0 0
    %504 = vmatpush2.bf16.msra.mxu0 0
    %505 = vmatprep.mubr.bf16.mxu0 0
    %506 = vmatmul.mubr.bf16.gmra.mxu0 %v215
    %v507 = vpop.f32.mrf.mxu0
    %v508 = vadd.f32 %v261, %v507
    %v509 = vpop.f32.mrf.mxu0
    %v510 = vadd.f32 %v265, %v509
    %v511 = vpop.f32.mrf.mxu0
    %v512 = vadd.f32 %v261, %v511
    %v513 = vpop.f32.mrf.mxu0
    %v514 = vadd.f32 %v265, %v513
    %515 = vdwg.mxu0
    %v516 = vld [vmem:[%s7] sm:$0x1]
    %v518 = vlaneseq
    %v519 = vshrl.u32 %v518, 7
    %v520 = vsub.s32 0, %v519
    %v521 = vrot.slane %v516, %v520
    %v523 = vlaneseq
    %v524 = vand.u32 %v523, 127
    %vm525 = vcmp.eq.s32.totalorder %v524, 1
    %v526 = vsel %vm525, 1, 0
    %v527 = vcvt.s32.f32 %v526
    %v528 = vpack.c.bf16 %v527, %v527
    %v545 = vunpack.c.l.b16 %v119
    %v546 = vunpack.c.l.b16 %v120
    %v547 = vunpack.c.l.b16 %v121
    %v548 = vunpack.c.l.b16 %v122
    %v549 = vunpack.c.l.b16 %v123
    %v550 = vunpack.c.l.b16 %v124
    %v551 = vunpack.c.l.b16 %v125
    %v552 = vunpack.c.l.b16 %v126
    %v553 = vunpack.c.l.b16 %v127
    %v554 = vunpack.c.l.b16 %v128
    %v555 = vunpack.c.l.b16 %v129
    %v556 = vunpack.c.l.b16 %v130
    %v557 = vunpack.c.l.b16 %v131
    %v558 = vunpack.c.l.b16 %v132
    %v559 = vunpack.c.l.b16 %v133
    %v560 = vunpack.c.l.b16 %v134
    %v561 = vpack.c.b16 %v546, %v545
    %v562 = vpack.c.b16 %v548, %v547
    %v563 = vpack.c.b16 %v550, %v549
    %v564 = vpack.c.b16 %v552, %v551
    %v565 = vpack.c.b16 %v554, %v553
    %v566 = vpack.c.b16 %v556, %v555
    %v567 = vpack.c.b16 %v558, %v557
    %v568 = vpack.c.b16 %v560, %v559
    %577 = vmatprep.subr.bf16.mxu0 0
    %578 = vmatpush1.bf16.msra.mxu0 %v568
    %579 = vmatprep.subr.bf16.mxu0 0
    %580 = vmatpush1.bf16.msra.mxu0 %v567
    %581 = vmatprep.subr.bf16.mxu0 0
    %582 = vmatpush1.bf16.msra.mxu0 %v566
    %583 = vmatprep.subr.bf16.mxu0 0
    %584 = vmatpush1.bf16.msra.mxu0 %v565
    %585 = vmatprep.subr.bf16.mxu0 0
    %586 = vmatpush1.bf16.msra.mxu0 %v564
    %587 = vmatprep.subr.bf16.mxu0 0
    %588 = vmatpush1.bf16.msra.mxu0 %v563
    %589 = vmatprep.subr.bf16.mxu0 0
    %590 = vmatpush1.bf16.msra.mxu0 %v562
    %591 = vmatprep.subr.bf16.mxu0 0
    %592 = vmatpush1.bf16.msra.mxu0 %v561
    %593 = vmatprep.subr.bf16.mxu0 0
    %594 = vmatpush2.bf16.msra.mxu0 0
    %595 = vmatprep.subr.bf16.mxu0 0
    %596 = vmatpush2.bf16.msra.mxu0 0
    %597 = vmatprep.subr.bf16.mxu0 0
    %598 = vmatpush2.bf16.msra.mxu0 0
    %599 = vmatprep.subr.bf16.mxu0 0
    %600 = vmatpush2.bf16.msra.mxu0 0
    %601 = vmatprep.subr.bf16.mxu0 0
    %602 = vmatpush2.bf16.msra.mxu0 0
    %603 = vmatprep.subr.bf16.mxu0 0
    %604 = vmatpush2.bf16.msra.mxu0 0
    %605 = vmatprep.subr.bf16.mxu0 0
    %606 = vmatpush2.bf16.msra.mxu0 0
    %607 = vmatprep.subr.bf16.mxu0 0
    %608 = vmatpush2.bf16.msra.mxu0 0
    %609 = vmatprep.mubr.bf16.mxu0 0
    %610 = vmatmul.mubr.bf16.gmra.mxu0 %v528
    %v611 = vpop.f32.mrf.mxu0
    %v612 = vadd.f32 0.0, %v611
    %v613 = vpop.f32.mrf.mxu0
    %v614 = vpop.f32.mrf.mxu0
    %v615 = vadd.f32 0.0, %v614
    %v616 = vpop.f32.mrf.mxu0
    %617 = vdwg.mxu0
    %v618 = vpack.c.bf16 %v615, %v612
    %v651 = vunpack.c.l.b16 %v135
    %v652 = vunpack.c.h.b16 %v135
    %v653 = vunpack.c.l.b16 %v136
    %v654 = vunpack.c.h.b16 %v136
    %v655 = vunpack.c.l.b16 %v137
    %v656 = vunpack.c.h.b16 %v137
    %v657 = vunpack.c.l.b16 %v138
    %v658 = vunpack.c.h.b16 %v138
    %v659 = vunpack.c.l.b16 %v139
    %v660 = vunpack.c.h.b16 %v139
    %v661 = vunpack.c.l.b16 %v140
    %v662 = vunpack.c.h.b16 %v140
    %v663 = vunpack.c.l.b16 %v141
    %v664 = vunpack.c.h.b16 %v141
    %v665 = vunpack.c.l.b16 %v142
    %v666 = vunpack.c.h.b16 %v142
    %v667 = vunpack.c.l.b16 %v143
    %v668 = vunpack.c.h.b16 %v143
    %v669 = vunpack.c.l.b16 %v144
    %v670 = vunpack.c.h.b16 %v144
    %v671 = vunpack.c.l.b16 %v145
    %v672 = vunpack.c.h.b16 %v145
    %v673 = vunpack.c.l.b16 %v146
    %v674 = vunpack.c.h.b16 %v146
    %v675 = vunpack.c.l.b16 %v147
    %v676 = vunpack.c.h.b16 %v147
    %v677 = vunpack.c.l.b16 %v148
    %v678 = vunpack.c.h.b16 %v148
    %v679 = vunpack.c.l.b16 %v149
    %v680 = vunpack.c.h.b16 %v149
    %v681 = vunpack.c.l.b16 %v150
    %v682 = vunpack.c.h.b16 %v150
    %v683 = vunpack.c.l.b16 %v151
    %v684 = vunpack.c.h.b16 %v151
    %v685 = vunpack.c.l.b16 %v152
    %v686 = vunpack.c.h.b16 %v152
    %v687 = vunpack.c.l.b16 %v153
    %v688 = vunpack.c.h.b16 %v153
    %v689 = vunpack.c.l.b16 %v154
    %v690 = vunpack.c.h.b16 %v154
    %v691 = vunpack.c.l.b16 %v155
    %v692 = vunpack.c.h.b16 %v155
    %v693 = vunpack.c.l.b16 %v156
    %v694 = vunpack.c.h.b16 %v156
    %v695 = vunpack.c.l.b16 %v157
    %v696 = vunpack.c.h.b16 %v157
    %v697 = vunpack.c.l.b16 %v158
    %v698 = vunpack.c.h.b16 %v158
    %v699 = vunpack.c.l.b16 %v159
    %v700 = vunpack.c.h.b16 %v159
    %v701 = vunpack.c.l.b16 %v160
    %v702 = vunpack.c.h.b16 %v160
    %v703 = vunpack.c.l.b16 %v161
    %v704 = vunpack.c.h.b16 %v161
    %v705 = vunpack.c.l.b16 %v162
    %v706 = vunpack.c.h.b16 %v162
    %v707 = vunpack.c.l.b16 %v163
    %v708 = vunpack.c.h.b16 %v163
    %v709 = vunpack.c.l.b16 %v164
    %v710 = vunpack.c.h.b16 %v164
    %v711 = vunpack.c.l.b16 %v165
    %v712 = vunpack.c.h.b16 %v165
    %v713 = vunpack.c.l.b16 %v166
    %v714 = vunpack.c.h.b16 %v166
    %v715 = vpack.c.b16 %v655, %v651
    %v716 = vpack.c.b16 %v656, %v652
    %v717 = vpack.c.b16 %v657, %v653
    %v718 = vpack.c.b16 %v658, %v654
    %v719 = vpack.c.b16 %v663, %v659
    %v720 = vpack.c.b16 %v664, %v660
    %v721 = vpack.c.b16 %v665, %v661
    %v722 = vpack.c.b16 %v666, %v662
    %v723 = vpack.c.b16 %v671, %v667
    %v724 = vpack.c.b16 %v672, %v668
    %v725 = vpack.c.b16 %v673, %v669
    %v726 = vpack.c.b16 %v674, %v670
    %v727 = vpack.c.b16 %v679, %v675
    %v728 = vpack.c.b16 %v680, %v676
    %v729 = vpack.c.b16 %v681, %v677
    %v730 = vpack.c.b16 %v682, %v678
    %v731 = vpack.c.b16 %v687, %v683
    %v732 = vpack.c.b16 %v688, %v684
    %v733 = vpack.c.b16 %v689, %v685
    %v734 = vpack.c.b16 %v690, %v686
    %v735 = vpack.c.b16 %v695, %v691
    %v736 = vpack.c.b16 %v696, %v692
    %v737 = vpack.c.b16 %v697, %v693
    %v738 = vpack.c.b16 %v698, %v694
    %v739 = vpack.c.b16 %v703, %v699
    %v740 = vpack.c.b16 %v704, %v700
    %v741 = vpack.c.b16 %v705, %v701
    %v742 = vpack.c.b16 %v706, %v702
    %v743 = vpack.c.b16 %v711, %v707
    %v744 = vpack.c.b16 %v712, %v708
    %v745 = vpack.c.b16 %v713, %v709
    %v746 = vpack.c.b16 %v714, %v710
    %779 = vmatprep.subr.bf16.mxu0 %v744
    %780 = vmatpush1.bf16.msra.mxu0 %v743
    %781 = vmatprep.subr.bf16.mxu0 %v740
    %782 = vmatpush1.bf16.msra.mxu0 %v739
    %783 = vmatprep.subr.bf16.mxu0 %v736
    %784 = vmatpush1.bf16.msra.mxu0 %v735
    %785 = vmatprep.subr.bf16.mxu0 %v732
    %786 = vmatpush1.bf16.msra.mxu0 %v731
    %787 = vmatprep.subr.bf16.mxu0 %v728
    %788 = vmatpush1.bf16.msra.mxu0 %v727
    %789 = vmatprep.subr.bf16.mxu0 %v724
    %790 = vmatpush1.bf16.msra.mxu0 %v723
    %791 = vmatprep.subr.bf16.mxu0 %v720
    %792 = vmatpush1.bf16.msra.mxu0 %v719
    %793 = vmatprep.subr.bf16.mxu0 %v716
    %794 = vmatpush1.bf16.msra.mxu0 %v715
    %795 = vmatprep.subr.bf16.mxu0 0
    %796 = vmatpush2.bf16.msra.mxu0 0
    %797 = vmatprep.subr.bf16.mxu0 0
    %798 = vmatpush2.bf16.msra.mxu0 0
    %799 = vmatprep.subr.bf16.mxu0 0
    %800 = vmatpush2.bf16.msra.mxu0 0
    %801 = vmatprep.subr.bf16.mxu0 0
    %802 = vmatpush2.bf16.msra.mxu0 0
    %803 = vmatprep.subr.bf16.mxu0 0
    %804 = vmatpush2.bf16.msra.mxu0 0
    %805 = vmatprep.subr.bf16.mxu0 0
    %806 = vmatpush2.bf16.msra.mxu0 0
    %807 = vmatprep.subr.bf16.mxu0 0
    %808 = vmatpush2.bf16.msra.mxu0 0
    %809 = vmatprep.subr.bf16.mxu0 0
    %810 = vmatpush2.bf16.msra.mxu0 0
    %811 = vmatprep.mubr.bf16.mxu0 0
    %812 = vmatmul.mubr.bf16.gmra.mxu0 %v618
    %v813 = vpop.f32.mrf.mxu0
    %v814 = vadd.f32 0.0, %v813
    %v815 = vpop.f32.mrf.mxu0
    %v816 = vadd.f32 0.0, %v815
    %v817 = vpop.f32.mrf.mxu0
    %v818 = vadd.f32 0.0, %v817
    %v819 = vpop.f32.mrf.mxu0
    %v820 = vadd.f32 0.0, %v819
    %821 = vdwg.mxu0
    %822 = vmatprep.subr.bf16.mxu0 %v746
    %823 = vmatpush1.bf16.msra.mxu0 %v745
    %824 = vmatprep.subr.bf16.mxu0 %v742
    %825 = vmatpush1.bf16.msra.mxu0 %v741
    %826 = vmatprep.subr.bf16.mxu0 %v738
    %827 = vmatpush1.bf16.msra.mxu0 %v737
    %828 = vmatprep.subr.bf16.mxu0 %v734
    %829 = vmatpush1.bf16.msra.mxu0 %v733
    %830 = vmatprep.subr.bf16.mxu0 %v730
    %831 = vmatpush1.bf16.msra.mxu0 %v729
    %832 = vmatprep.subr.bf16.mxu0 %v726
    %833 = vmatpush1.bf16.msra.mxu0 %v725
    %834 = vmatprep.subr.bf16.mxu0 %v722
    %835 = vmatpush1.bf16.msra.mxu0 %v721
    %836 = vmatprep.subr.bf16.mxu0 %v718
    %837 = vmatpush1.bf16.msra.mxu0 %v717
    %838 = vmatprep.subr.bf16.mxu0 0
    %839 = vmatpush2.bf16.msra.mxu0 0
    %840 = vmatprep.subr.bf16.mxu0 0
    %841 = vmatpush2.bf16.msra.mxu0 0
    %842 = vmatprep.subr.bf16.mxu0 0
    %843 = vmatpush2.bf16.msra.mxu0 0
    %844 = vmatprep.subr.bf16.mxu0 0
    %845 = vmatpush2.bf16.msra.mxu0 0
    %846 = vmatprep.subr.bf16.mxu0 0
    %847 = vmatpush2.bf16.msra.mxu0 0
    %848 = vmatprep.subr.bf16.mxu0 0
    %849 = vmatpush2.bf16.msra.mxu0 0
    %850 = vmatprep.subr.bf16.mxu0 0
    %851 = vmatpush2.bf16.msra.mxu0 0
    %852 = vmatprep.subr.bf16.mxu0 0
    %853 = vmatpush2.bf16.msra.mxu0 0
    %854 = vmatprep.mubr.bf16.mxu0 0
    %855 = vmatmul.mubr.bf16.gmra.mxu0 %v618
    %v856 = vpop.f32.mrf.mxu0
    %v857 = vadd.f32 0.0, %v856
    %v858 = vpop.f32.mrf.mxu0
    %v859 = vadd.f32 0.0, %v858
    %v860 = vpop.f32.mrf.mxu0
    %v861 = vadd.f32 0.0, %v860
    %v862 = vpop.f32.mrf.mxu0
    %v863 = vadd.f32 0.0, %v862
    %864 = vdwg.mxu0
    %v865 = vadd.f32 %v465, %v814
    %v866 = vadd.f32 %v467, %v816
    %v867 = vadd.f32 %v508, %v857
    %v868 = vadd.f32 %v510, %v859
    %v869 = vadd.f32 %v469, %v818
    %v870 = vadd.f32 %v471, %v820
    %v871 = vadd.f32 %v512, %v861
    %v872 = vadd.f32 %v514, %v863
    %v905 = vunpack.c.l.b16 %v167
    %v906 = vunpack.c.h.b16 %v167
    %v907 = vunpack.c.l.b16 %v168
    %v908 = vunpack.c.h.b16 %v168
    %v909 = vunpack.c.l.b16 %v169
    %v910 = vunpack.c.h.b16 %v169
    %v911 = vunpack.c.l.b16 %v170
    %v912 = vunpack.c.h.b16 %v170
    %v913 = vunpack.c.l.b16 %v171
    %v914 = vunpack.c.h.b16 %v171
    %v915 = vunpack.c.l.b16 %v172
    %v916 = vunpack.c.h.b16 %v172
    %v917 = vunpack.c.l.b16 %v173
    %v918 = vunpack.c.h.b16 %v173
    %v919 = vunpack.c.l.b16 %v174
    %v920 = vunpack.c.h.b16 %v174
    %v921 = vunpack.c.l.b16 %v175
    %v922 = vunpack.c.h.b16 %v175
    %v923 = vunpack.c.l.b16 %v176
    %v924 = vunpack.c.h.b16 %v176
    %v925 = vunpack.c.l.b16 %v177
    %v926 = vunpack.c.h.b16 %v177
    %v927 = vunpack.c.l.b16 %v178
    %v928 = vunpack.c.h.b16 %v178
    %v929 = vunpack.c.l.b16 %v179
    %v930 = vunpack.c.h.b16 %v179
    %v931 = vunpack.c.l.b16 %v180
    %v932 = vunpack.c.h.b16 %v180
    %v933 = vunpack.c.l.b16 %v181
    %v934 = vunpack.c.h.b16 %v181
    %v935 = vunpack.c.l.b16 %v182
    %v936 = vunpack.c.h.b16 %v182
    %v937 = vunpack.c.l.b16 %v183
    %v938 = vunpack.c.h.b16 %v183
    %v939 = vunpack.c.l.b16 %v184
    %v940 = vunpack.c.h.b16 %v184
    %v941 = vunpack.c.l.b16 %v185
    %v942 = vunpack.c.h.b16 %v185
    %v943 = vunpack.c.l.b16 %v186
    %v944 = vunpack.c.h.b16 %v186
    %v945 = vunpack.c.l.b16 %v187
    %v946 = vunpack.c.h.b16 %v187
    %v947 = vunpack.c.l.b16 %v188
    %v948 = vunpack.c.h.b16 %v188
    %v949 = vunpack.c.l.b16 %v189
    %v950 = vunpack.c.h.b16 %v189
    %v951 = vunpack.c.l.b16 %v190
    %v952 = vunpack.c.h.b16 %v190
    %v953 = vunpack.c.l.b16 %v191
    %v954 = vunpack.c.h.b16 %v191
    %v955 = vunpack.c.l.b16 %v192
    %v956 = vunpack.c.h.b16 %v192
    %v957 = vunpack.c.l.b16 %v193
    %v958 = vunpack.c.h.b16 %v193
    %v959 = vunpack.c.l.b16 %v194
    %v960 = vunpack.c.h.b16 %v194
    %v961 = vunpack.c.l.b16 %v195
    %v962 = vunpack.c.h.b16 %v195
    %v963 = vunpack.c.l.b16 %v196
    %v964 = vunpack.c.h.b16 %v196
    %v965 = vunpack.c.l.b16 %v197
    %v966 = vunpack.c.h.b16 %v197
    %v967 = vunpack.c.l.b16 %v198
    %v968 = vunpack.c.h.b16 %v198
    %v969 = vpack.c.b16 %v909, %v905
    %v970 = vpack.c.b16 %v910, %v906
    %v971 = vpack.c.b16 %v911, %v907
    %v972 = vpack.c.b16 %v912, %v908
    %v973 = vpack.c.b16 %v917, %v913
    %v974 = vpack.c.b16 %v918, %v914
    %v975 = vpack.c.b16 %v919, %v915
    %v976 = vpack.c.b16 %v920, %v916
    %v977 = vpack.c.b16 %v925, %v921
    %v978 = vpack.c.b16 %v926, %v922
    %v979 = vpack.c.b16 %v927, %v923
    %v980 = vpack.c.b16 %v928, %v924
    %v981 = vpack.c.b16 %v933, %v929
    %v982 = vpack.c.b16 %v934, %v930
    %v983 = vpack.c.b16 %v935, %v931
    %v984 = vpack.c.b16 %v936, %v932
    %v985 = vpack.c.b16 %v941, %v937
    %v986 = vpack.c.b16 %v942, %v938
    %v987 = vpack.c.b16 %v943, %v939
    %v988 = vpack.c.b16 %v944, %v940
    %v989 = vpack.c.b16 %v949, %v945
    %v990 = vpack.c.b16 %v950, %v946
    %v991 = vpack.c.b16 %v951, %v947
    %v992 = vpack.c.b16 %v952, %v948
    %v993 = vpack.c.b16 %v957, %v953
    %v994 = vpack.c.b16 %v958, %v954
    %v995 = vpack.c.b16 %v959, %v955
    %v996 = vpack.c.b16 %v960, %v956
    %v997 = vpack.c.b16 %v965, %v961
    %v998 = vpack.c.b16 %v966, %v962
    %v999 = vpack.c.b16 %v967, %v963
    %v1000 = vpack.c.b16 %v968, %v964
    %1033 = vmatprep.subr.bf16.mxu0 %v998
    %1034 = vmatpush1.bf16.msra.mxu0 %v997
    %1035 = vmatprep.subr.bf16.mxu0 %v994
    %1036 = vmatpush1.bf16.msra.mxu0 %v993
    %1037 = vmatprep.subr.bf16.mxu0 %v990
    %1038 = vmatpush1.bf16.msra.mxu0 %v989
    %1039 = vmatprep.subr.bf16.mxu0 %v986
    %1040 = vmatpush1.bf16.msra.mxu0 %v985
    %1041 = vmatprep.subr.bf16.mxu0 %v982
    %1042 = vmatpush1.bf16.msra.mxu0 %v981
    %1043 = vmatprep.subr.bf16.mxu0 %v978
    %1044 = vmatpush1.bf16.msra.mxu0 %v977
    %1045 = vmatprep.subr.bf16.mxu0 %v974
    %1046 = vmatpush1.bf16.msra.mxu0 %v973
    %1047 = vmatprep.subr.bf16.mxu0 %v970
    %1048 = vmatpush1.bf16.msra.mxu0 %v969
    %1049 = vmatprep.subr.bf16.mxu0 0
    %1050 = vmatpush2.bf16.msra.mxu0 0
    %1051 = vmatprep.subr.bf16.mxu0 0
    %1052 = vmatpush2.bf16.msra.mxu0 0
    %1053 = vmatprep.subr.bf16.mxu0 0
    %1054 = vmatpush2.bf16.msra.mxu0 0
    %1055 = vmatprep.subr.bf16.mxu0 0
    %1056 = vmatpush2.bf16.msra.mxu0 0
    %1057 = vmatprep.subr.bf16.mxu0 0
    %1058 = vmatpush2.bf16.msra.mxu0 0
    %1059 = vmatprep.subr.bf16.mxu0 0
    %1060 = vmatpush2.bf16.msra.mxu0 0
    %1061 = vmatprep.subr.bf16.mxu0 0
    %1062 = vmatpush2.bf16.msra.mxu0 0
    %1063 = vmatprep.subr.bf16.mxu0 0
    %1064 = vmatpush2.bf16.msra.mxu0 0
    %1065 = vmatprep.mubr.bf16.mxu0 0
    %1066 = vmatmul.mubr.bf16.gmra.mxu0 %v215
    %v1067 = vpop.f32.mrf.mxu0
    %v1068 = vadd.f32 0.0, %v1067
    %v1069 = vpop.f32.mrf.mxu0
    %v1070 = vadd.f32 0.0, %v1069
    %v1071 = vpop.f32.mrf.mxu0
    %v1072 = vadd.f32 0.0, %v1071
    %v1073 = vpop.f32.mrf.mxu0
    %v1074 = vadd.f32 0.0, %v1073
    %1075 = vdwg.mxu0
    %1076 = vmatprep.subr.bf16.mxu0 %v1000
    %1077 = vmatpush1.bf16.msra.mxu0 %v999
    %1078 = vmatprep.subr.bf16.mxu0 %v996
    %1079 = vmatpush1.bf16.msra.mxu0 %v995
    %1080 = vmatprep.subr.bf16.mxu0 %v992
    %1081 = vmatpush1.bf16.msra.mxu0 %v991
    %1082 = vmatprep.subr.bf16.mxu0 %v988
    %1083 = vmatpush1.bf16.msra.mxu0 %v987
    %1084 = vmatprep.subr.bf16.mxu0 %v984
    %1085 = vmatpush1.bf16.msra.mxu0 %v983
    %1086 = vmatprep.subr.bf16.mxu0 %v980
    %1087 = vmatpush1.bf16.msra.mxu0 %v979
    %1088 = vmatprep.subr.bf16.mxu0 %v976
    %1089 = vmatpush1.bf16.msra.mxu0 %v975
    %1090 = vmatprep.subr.bf16.mxu0 %v972
    %1091 = vmatpush1.bf16.msra.mxu0 %v971
    %1092 = vmatprep.subr.bf16.mxu0 0
    %1093 = vmatpush2.bf16.msra.mxu0 0
    %1094 = vmatprep.subr.bf16.mxu0 0
    %1095 = vmatpush2.bf16.msra.mxu0 0
    %1096 = vmatprep.subr.bf16.mxu0 0
    %1097 = vmatpush2.bf16.msra.mxu0 0
    %1098 = vmatprep.subr.bf16.mxu0 0
    %1099 = vmatpush2.bf16.msra.mxu0 0
    %1100 = vmatprep.subr.bf16.mxu0 0
    %1101 = vmatpush2.bf16.msra.mxu0 0
    %1102 = vmatprep.subr.bf16.mxu0 0
    %1103 = vmatpush2.bf16.msra.mxu0 0
    %1104 = vmatprep.subr.bf16.mxu0 0
    %1105 = vmatpush2.bf16.msra.mxu0 0
    %1106 = vmatprep.subr.bf16.mxu0 0
    %1107 = vmatpush2.bf16.msra.mxu0 0
    %1108 = vmatprep.mubr.bf16.mxu0 0
    %1109 = vmatmul.mubr.bf16.gmra.mxu0 %v215
    %v1110 = vpop.f32.mrf.mxu0
    %v1111 = vadd.f32 0.0, %v1110
    %v1112 = vpop.f32.mrf.mxu0
    %v1113 = vadd.f32 0.0, %v1112
    %v1114 = vpop.f32.mrf.mxu0
    %v1115 = vadd.f32 0.0, %v1114
    %v1116 = vpop.f32.mrf.mxu0
    %v1117 = vadd.f32 0.0, %v1116
    %1118 = vdwg.mxu0
    %v1119 = vadd.f32 %v865, %v1068
    %v1120 = vadd.f32 %v866, %v1070
    %v1121 = vadd.f32 %v867, %v1111
    %v1122 = vadd.f32 %v868, %v1113
    %v1123 = vadd.f32 %v869, %v1072
    %v1124 = vadd.f32 %v870, %v1074
    %v1125 = vadd.f32 %v871, %v1115
    %v1126 = vadd.f32 %v872, %v1117
    %v1127 = vxor.u32 %v1119, 2147483648
    %v1128 = vxor.u32 %v1123, 2147483648
    %v1129 = vmul.f32 %v1127, 1.442695
    %v1130 = vpow.pop %v1129
    %v1131 = vmul.f32 %v1128, 1.442695
    %v1132 = vpow.pop %v1131
    %v1133 = vadd.f32 %v1130, 1.0
    %v1134 = vadd.f32 %v1132, 1.0
    %v1135 = vrcp.pop %v1133
    %v1136 = vmul.f32 1.0, %v1135
    %v1137 = vrcp.pop %v1134
    %v1138 = vmul.f32 1.0, %v1137
    %v1139 = vxor.u32 %v1120, 2147483648
    %v1140 = vxor.u32 %v1124, 2147483648
    %v1141 = vmul.f32 %v1139, 1.442695
    %v1142 = vpow.pop %v1141
    %v1143 = vmul.f32 %v1140, 1.442695
    %v1144 = vpow.pop %v1143
    %v1145 = vadd.f32 %v1142, 1.0
    %v1146 = vadd.f32 %v1144, 1.0
    %v1147 = vrcp.pop %v1145
    %v1148 = vmul.f32 1.0, %v1147
    %v1149 = vrcp.pop %v1146
    %v1150 = vmul.f32 1.0, %v1149
    %v1151 = vtanh.pop %v1121
    %v1152 = vtanh.pop %v1125
    %v1153 = vxor.u32 %v1122, 2147483648
    %v1154 = vxor.u32 %v1126, 2147483648
    %v1155 = vmul.f32 %v1153, 1.442695
    %v1156 = vpow.pop %v1155
    %v1157 = vmul.f32 %v1154, 1.442695
    %v1158 = vpow.pop %v1157
    %v1159 = vadd.f32 %v1156, 1.0
    %v1160 = vadd.f32 %v1158, 1.0
    %v1161 = vrcp.pop %v1159
    %v1162 = vmul.f32 1.0, %v1161
    %v1163 = vrcp.pop %v1160
    %v1164 = vmul.f32 1.0, %v1163
    %v1165 = vmul.f32 %v1148, %v117
    %v1166 = vmul.f32 %v1150, %v118
    %v1167 = vmul.f32 %v1136, %v1151
    %v1168 = vmul.f32 %v1138, %v1152
    %v1169 = vadd.f32 %v1165, %v1167
    %v1170 = vadd.f32 %v1166, %v1168
    %v1171 = vtanh.pop %v1169
    %v1172 = vtanh.pop %v1170
    %v1173 = vmul.f32 %v1162, %v1171
    %v1174 = vmul.f32 %v1164, %v1172
    %v1175 = vpack.c.bf16 %v1174, %v1173
    %v1192 = vunpack.c.l.b16 %v199
    %v1193 = vunpack.c.l.b16 %v200
    %v1194 = vunpack.c.l.b16 %v201
    %v1195 = vunpack.c.l.b16 %v202
    %v1196 = vunpack.c.l.b16 %v203
    %v1197 = vunpack.c.l.b16 %v204
    %v1198 = vunpack.c.l.b16 %v205
    %v1199 = vunpack.c.l.b16 %v206
    %v1200 = vunpack.c.l.b16 %v207
    %v1201 = vunpack.c.l.b16 %v208
    %v1202 = vunpack.c.l.b16 %v209
    %v1203 = vunpack.c.l.b16 %v210
    %v1204 = vunpack.c.l.b16 %v211
    %v1205 = vunpack.c.l.b16 %v212
    %v1206 = vunpack.c.l.b16 %v213
    %v1207 = vunpack.c.l.b16 %v214
    %v1208 = vpack.c.b16 %v1193, %v1192
    %v1209 = vpack.c.b16 %v1195, %v1194
    %v1210 = vpack.c.b16 %v1197, %v1196
    %v1211 = vpack.c.b16 %v1199, %v1198
    %v1212 = vpack.c.b16 %v1201, %v1200
    %v1213 = vpack.c.b16 %v1203, %v1202
    %v1214 = vpack.c.b16 %v1205, %v1204
    %v1215 = vpack.c.b16 %v1207, %v1206
    %1224 = vmatprep.subr.bf16.mxu0 0
    %1225 = vmatpush1.bf16.msra.mxu0 %v1215
    %1226 = vmatprep.subr.bf16.mxu0 0
    %1227 = vmatpush1.bf16.msra.mxu0 %v1214
    %1228 = vmatprep.subr.bf16.mxu0 0
    %1229 = vmatpush1.bf16.msra.mxu0 %v1213
    %1230 = vmatprep.subr.bf16.mxu0 0
    %1231 = vmatpush1.bf16.msra.mxu0 %v1212
    %1232 = vmatprep.subr.bf16.mxu0 0
    %1233 = vmatpush1.bf16.msra.mxu0 %v1211
    %1234 = vmatprep.subr.bf16.mxu0 0
    %1235 = vmatpush1.bf16.msra.mxu0 %v1210
    %1236 = vmatprep.subr.bf16.mxu0 0
    %1237 = vmatpush1.bf16.msra.mxu0 %v1209
    %1238 = vmatprep.subr.bf16.mxu0 0
    %1239 = vmatpush1.bf16.msra.mxu0 %v1208
    %1240 = vmatprep.subr.bf16.mxu0 0
    %1241 = vmatpush2.bf16.msra.mxu0 0
    %1242 = vmatprep.subr.bf16.mxu0 0
    %1243 = vmatpush2.bf16.msra.mxu0 0
    %1244 = vmatprep.subr.bf16.mxu0 0
    %1245 = vmatpush2.bf16.msra.mxu0 0
    %1246 = vmatprep.subr.bf16.mxu0 0
    %1247 = vmatpush2.bf16.msra.mxu0 0
    %1248 = vmatprep.subr.bf16.mxu0 0
    %1249 = vmatpush2.bf16.msra.mxu0 0
    %1250 = vmatprep.subr.bf16.mxu0 0
    %1251 = vmatpush2.bf16.msra.mxu0 0
    %1252 = vmatprep.subr.bf16.mxu0 0
    %1253 = vmatpush2.bf16.msra.mxu0 0
    %1254 = vmatprep.subr.bf16.mxu0 0
    %1255 = vmatpush2.bf16.msra.mxu0 0
    %1256 = vmatprep.mubr.bf16.mxu0 0
    %1257 = vmatmul.mubr.bf16.gmra.mxu0 %v1175
    %v1258 = vpop.f32.mrf.mxu0
    %v1259 = vadd.f32 %v521, %v1258
    %v1260 = vpop.f32.mrf.mxu0
    %v1261 = vpop.f32.mrf.mxu0
    %v1262 = vadd.f32 %v521, %v1261
    %v1263 = vpop.f32.mrf.mxu0
    %1264 = vdwg.mxu0
    %1265 = vst [vmem:[#allocation13] sm:$0xff] %v1259
    %1266 = vst [vmem:[#allocation13 + $0x8] sm:$0xff] %v1262
    %1267 = vmax.xlane.f32.xlu0 %v1259
    %v1268 = vpop.xlane.xlu0 %1267
    %1269 = vmax.xlane.f32.xlu0 %v1262
    %v1270 = vpop.xlane.xlu0 %1269
    %vm1271 = vcmp.eq.f32.partialorder %v1259, %v1268
    %vm1272 = vcmp.eq.f32.partialorder %v1262, %v1270
    %v1273 = vsel %vm1271, %v524, 128
    %v1274 = vsel %vm1272, %v524, 128
    %v1275 = vand.u32 %v1273, 65535
    %v1276 = vshra.s32 %v1273, 16
    %v1277 = vcvt.s32.f32 %v1275
    %v1278 = vcvt.s32.f32 %v1276
    %1279 = vmin.xlane.f32.xlu0 %v1278
    %v1280 = vpop.xlane.xlu0 %1279
    %vm1281 = vcmp.eq.f32.partialorder %v1278, %v1280
    %v1282 = vsel %vm1281, %v1277, inf
    %1283 = vmin.xlane.f32.xlu0 %v1282
    %v1284 = vpop.xlane.xlu0 %1283
    %v1285 = vcvt.f32.s32 %v1284
    %v1286 = vcvt.f32.s32 %v1280
    %v1287 = vshll.u32 %v1286, 16
    %v1288 = vadd.s32 %v1287, %v1285
    %v1289 = vand.u32 %v1274, 65535
    %v1290 = vshra.s32 %v1274, 16
    %v1291 = vcvt.s32.f32 %v1289
    %v1292 = vcvt.s32.f32 %v1290
    %1293 = vmin.xlane.f32.xlu0 %v1292
    %v1294 = vpop.xlane.xlu0 %1293
    %vm1295 = vcmp.eq.f32.partialorder %v1292, %v1294
    %v1296 = vsel %vm1295, %v1291, inf
    %1297 = vmin.xlane.f32.xlu0 %v1296
    %v1298 = vpop.xlane.xlu0 %1297
    %v1299 = vcvt.f32.s32 %v1298
    %v1300 = vcvt.f32.s32 %v1294
    %v1301 = vshll.u32 %v1300, 16
    %v1302 = vadd.s32 %v1301, %v1299
    %vm1303 = vcmp.eq.s32.totalorder %v524, %v1288
    %vm1304 = vcmp.eq.s32.totalorder %v524, %v1302
    %v1305 = vsel %vm1303, 1, 0
    %v1306 = vsel %vm1304, 1, 0
    %v1307 = vcvt.s32.f32 %v1305
    %v1308 = vcvt.s32.f32 %v1306
    %v1309 = vpack.c.bf16 %v1308, %v1307
    %1310 = vmatprep.subr.bf16.mxu0 0
    %1311 = vmatpush1.bf16.msra.mxu0 %v568
    %1312 = vmatprep.subr.bf16.mxu0 0
    %1313 = vmatpush1.bf16.msra.mxu0 %v567
    %1314 = vmatprep.subr.bf16.mxu0 0
    %1315 = vmatpush1.bf16.msra.mxu0 %v566
    %1316 = vmatprep.subr.bf16.mxu0 0
    %1317 = vmatpush1.bf16.msra.mxu0 %v565
    %1318 = vmatprep.subr.bf16.mxu0 0
    %1319 = vmatpush1.bf16.msra.mxu0 %v564
    %1320 = vmatprep.subr.bf16.mxu0 0
    %1321 = vmatpush1.bf16.msra.mxu0 %v563
    %1322 = vmatprep.subr.bf16.mxu0 0
    %1323 = vmatpush1.bf16.msra.mxu0 %v562
    %1324 = vmatprep.subr.bf16.mxu0 0
    %1325 = vmatpush1.bf16.msra.mxu0 %v561
    %1326 = vmatprep.subr.bf16.mxu0 0
    %1327 = vmatpush2.bf16.msra.mxu0 0
    %1328 = vmatprep.subr.bf16.mxu0 0
    %1329 = vmatpush2.bf16.msra.mxu0 0
    %1330 = vmatprep.subr.bf16.mxu0 0
    %1331 = vmatpush2.bf16.msra.mxu0 0
    %1332 = vmatprep.subr.bf16.mxu0 0
    %1333 = vmatpush2.bf16.msra.mxu0 0
    %1334 = vmatprep.subr.bf16.mxu0 0
    %1335 = vmatpush2.bf16.msra.mxu0 0
    %1336 = vmatprep.subr.bf16.mxu0 0
    %1337 = vmatpush2.bf16.msra.mxu0 0
    %1338 = vmatprep.subr.bf16.mxu0 0
    %1339 = vmatpush2.bf16.msra.mxu0 0
    %1340 = vmatprep.subr.bf16.mxu0 0
    %1341 = vmatpush2.bf16.msra.mxu0 0
    %1342 = vmatprep.mubr.bf16.mxu0 0
    %1343 = vmatmul.mubr.bf16.gmra.mxu0 %v1309
    %v1344 = vpop.f32.mrf.mxu0
    %v1345 = vadd.f32 0.0, %v1344
    %v1346 = vpop.f32.mrf.mxu0
    %v1347 = vpop.f32.mrf.mxu0
    %v1348 = vadd.f32 0.0, %v1347
    %v1349 = vpop.f32.mrf.mxu0
    %1350 = vdwg.mxu0
    %v1351 = vpack.c.bf16 %v1348, %v1345
    %1352 = vmatprep.subr.bf16.mxu0 %v744
    %1353 = vmatpush1.bf16.msra.mxu0 %v743
    %1354 = vmatprep.subr.bf16.mxu0 %v740
    %1355 = vmatpush1.bf16.msra.mxu0 %v739
    %1356 = vmatprep.subr.bf16.mxu0 %v736
    %1357 = vmatpush1.bf16.msra.mxu0 %v735
    %1358 = vmatprep.subr.bf16.mxu0 %v732
    %1359 = vmatpush1.bf16.msra.mxu0 %v731
    %1360 = vmatprep.subr.bf16.mxu0 %v728
    %1361 = vmatpush1.bf16.msra.mxu0 %v727
    %1362 = vmatprep.subr.bf16.mxu0 %v724
    %1363 = vmatpush1.bf16.msra.mxu0 %v723
    %1364 = vmatprep.subr.bf16.mxu0 %v720
    %1365 = vmatpush1.bf16.msra.mxu0 %v719
    %1366 = vmatprep.subr.bf16.mxu0 %v716
    %1367 = vmatpush1.bf16.msra.mxu0 %v715
    %1368 = vmatprep.subr.bf16.mxu0 0
    %1369 = vmatpush2.bf16.msra.mxu0 0
    %1370 = vmatprep.subr.bf16.mxu0 0
    %1371 = vmatpush2.bf16.msra.mxu0 0
    %1372 = vmatprep.subr.bf16.mxu0 0
    %1373 = vmatpush2.bf16.msra.mxu0 0
    %1374 = vmatprep.subr.bf16.mxu0 0
    %1375 = vmatpush2.bf16.msra.mxu0 0
    %1376 = vmatprep.subr.bf16.mxu0 0
    %1377 = vmatpush2.bf16.msra.mxu0 0
    %1378 = vmatprep.subr.bf16.mxu0 0
    %1379 = vmatpush2.bf16.msra.mxu0 0
    %1380 = vmatprep.subr.bf16.mxu0 0
    %1381 = vmatpush2.bf16.msra.mxu0 0
    %1382 = vmatprep.subr.bf16.mxu0 0
    %1383 = vmatpush2.bf16.msra.mxu0 0
    %1384 = vmatprep.mubr.bf16.mxu0 0
    %1385 = vmatmul.mubr.bf16.gmra.mxu0 %v1351
    %v1386 = vpop.f32.mrf.mxu0
    %v1387 = vadd.f32 0.0, %v1386
    %v1388 = vpop.f32.mrf.mxu0
    %v1389 = vadd.f32 0.0, %v1388
    %v1390 = vpop.f32.mrf.mxu0
    %v1391 = vadd.f32 0.0, %v1390
    %v1392 = vpop.f32.mrf.mxu0
    %v1393 = vadd.f32 0.0, %v1392
    %1394 = vdwg.mxu0
    %1395 = vmatprep.subr.bf16.mxu0 %v746
    %1396 = vmatpush1.bf16.msra.mxu0 %v745
    %1397 = vmatprep.subr.bf16.mxu0 %v742
    %1398 = vmatpush1.bf16.msra.mxu0 %v741
    %1399 = vmatprep.subr.bf16.mxu0 %v738
    %1400 = vmatpush1.bf16.msra.mxu0 %v737
    %1401 = vmatprep.subr.bf16.mxu0 %v734
    %1402 = vmatpush1.bf16.msra.mxu0 %v733
    %1403 = vmatprep.subr.bf16.mxu0 %v730
    %1404 = vmatpush1.bf16.msra.mxu0 %v729
    %1405 = vmatprep.subr.bf16.mxu0 %v726
    %1406 = vmatpush1.bf16.msra.mxu0 %v725
    %1407 = vmatprep.subr.bf16.mxu0 %v722
    %1408 = vmatpush1.bf16.msra.mxu0 %v721
    %1409 = vmatprep.subr.bf16.mxu0 %v718
    %1410 = vmatpush1.bf16.msra.mxu0 %v717
    %1411 = vmatprep.subr.bf16.mxu0 0
    %1412 = vmatpush2.bf16.msra.mxu0 0
    %1413 = vmatprep.subr.bf16.mxu0 0
    %1414 = vmatpush2.bf16.msra.mxu0 0
    %1415 = vmatprep.subr.bf16.mxu0 0
    %1416 = vmatpush2.bf16.msra.mxu0 0
    %1417 = vmatprep.subr.bf16.mxu0 0
    %1418 = vmatpush2.bf16.msra.mxu0 0
    %1419 = vmatprep.subr.bf16.mxu0 0
    %1420 = vmatpush2.bf16.msra.mxu0 0
    %1421 = vmatprep.subr.bf16.mxu0 0
    %1422 = vmatpush2.bf16.msra.mxu0 0
    %1423 = vmatprep.subr.bf16.mxu0 0
    %1424 = vmatpush2.bf16.msra.mxu0 0
    %1425 = vmatprep.subr.bf16.mxu0 0
    %1426 = vmatpush2.bf16.msra.mxu0 0
    %1427 = vmatprep.mubr.bf16.mxu0 0
    %1428 = vmatmul.mubr.bf16.gmra.mxu0 %v1351
    %v1429 = vpop.f32.mrf.mxu0
    %v1430 = vadd.f32 0.0, %v1429
    %v1431 = vpop.f32.mrf.mxu0
    %v1432 = vadd.f32 0.0, %v1431
    %v1433 = vpop.f32.mrf.mxu0
    %v1434 = vadd.f32 0.0, %v1433
    %v1435 = vpop.f32.mrf.mxu0
    %v1436 = vadd.f32 0.0, %v1435
    %1437 = vdwg.mxu0
    %v1438 = vadd.f32 %v465, %v1387
    %v1439 = vadd.f32 %v467, %v1389
    %v1440 = vadd.f32 %v508, %v1430
    %v1441 = vadd.f32 %v510, %v1432
    %v1442 = vadd.f32 %v469, %v1391
    %v1443 = vadd.f32 %v471, %v1393
    %v1444 = vadd.f32 %v512, %v1434
    %v1445 = vadd.f32 %v514, %v1436
    %1446 = vmatprep.subr.bf16.mxu0 %v998
    %1447 = vmatpush1.bf16.msra.mxu0 %v997
    %1448 = vmatprep.subr.bf16.mxu0 %v994
    %1449 = vmatpush1.bf16.msra.mxu0 %v993
    %1450 = vmatprep.subr.bf16.mxu0 %v990
    %1451 = vmatpush1.bf16.msra.mxu0 %v989
    %1452 = vmatprep.subr.bf16.mxu0 %v986
    %1453 = vmatpush1.bf16.msra.mxu0 %v985
    %1454 = vmatprep.subr.bf16.mxu0 %v982
    %1455 = vmatpush1.bf16.msra.mxu0 %v981
    %1456 = vmatprep.subr.bf16.mxu0 %v978
    %1457 = vmatpush1.bf16.msra.mxu0 %v977
    %1458 = vmatprep.subr.bf16.mxu0 %v974
    %1459 = vmatpush1.bf16.msra.mxu0 %v973
    %1460 = vmatprep.subr.bf16.mxu0 %v970
    %1461 = vmatpush1.bf16.msra.mxu0 %v969
    %1462 = vmatprep.subr.bf16.mxu0 0
    %1463 = vmatpush2.bf16.msra.mxu0 0
    %1464 = vmatprep.subr.bf16.mxu0 0
    %1465 = vmatpush2.bf16.msra.mxu0 0
    %1466 = vmatprep.subr.bf16.mxu0 0
    %1467 = vmatpush2.bf16.msra.mxu0 0
    %1468 = vmatprep.subr.bf16.mxu0 0
    %1469 = vmatpush2.bf16.msra.mxu0 0
    %1470 = vmatprep.subr.bf16.mxu0 0
    %1471 = vmatpush2.bf16.msra.mxu0 0
    %1472 = vmatprep.subr.bf16.mxu0 0
    %1473 = vmatpush2.bf16.msra.mxu0 0
    %1474 = vmatprep.subr.bf16.mxu0 0
    %1475 = vmatpush2.bf16.msra.mxu0 0
    %1476 = vmatprep.subr.bf16.mxu0 0
    %1477 = vmatpush2.bf16.msra.mxu0 0
    %1478 = vmatprep.mubr.bf16.mxu0 0
    %1479 = vmatmul.mubr.bf16.gmra.mxu0 %v1175
    %v1480 = vpop.f32.mrf.mxu0
    %v1481 = vadd.f32 0.0, %v1480
    %v1482 = vpop.f32.mrf.mxu0
    %v1483 = vadd.f32 0.0, %v1482
    %v1484 = vpop.f32.mrf.mxu0
    %v1485 = vadd.f32 0.0, %v1484
    %v1486 = vpop.f32.mrf.mxu0
    %v1487 = vadd.f32 0.0, %v1486
    %1488 = vdwg.mxu0
    %1489 = vmatprep.subr.bf16.mxu0 %v1000
    %1490 = vmatpush1.bf16.msra.mxu0 %v999
    %1491 = vmatprep.subr.bf16.mxu0 %v996
    %1492 = vmatpush1.bf16.msra.mxu0 %v995
    %1493 = vmatprep.subr.bf16.mxu0 %v992
    %1494 = vmatpush1.bf16.msra.mxu0 %v991
    %1495 = vmatprep.subr.bf16.mxu0 %v988
    %1496 = vmatpush1.bf16.msra.mxu0 %v987
    %1497 = vmatprep.subr.bf16.mxu0 %v984
    %1498 = vmatpush1.bf16.msra.mxu0 %v983
    %1499 = vmatprep.subr.bf16.mxu0 %v980
    %1500 = vmatpush1.bf16.msra.mxu0 %v979
    %1501 = vmatprep.subr.bf16.mxu0 %v976
    %1502 = vmatpush1.bf16.msra.mxu0 %v975
    %1503 = vmatprep.subr.bf16.mxu0 %v972
    %1504 = vmatpush1.bf16.msra.mxu0 %v971
    %1505 = vmatprep.subr.bf16.mxu0 0
    %1506 = vmatpush2.bf16.msra.mxu0 0
    %1507 = vmatprep.subr.bf16.mxu0 0
    %1508 = vmatpush2.bf16.msra.mxu0 0
    %1509 = vmatprep.subr.bf16.mxu0 0
    %1510 = vmatpush2.bf16.msra.mxu0 0
    %1511 = vmatprep.subr.bf16.mxu0 0
    %1512 = vmatpush2.bf16.msra.mxu0 0
    %1513 = vmatprep.subr.bf16.mxu0 0
    %1514 = vmatpush2.bf16.msra.mxu0 0
    %1515 = vmatprep.subr.bf16.mxu0 0
    %1516 = vmatpush2.bf16.msra.mxu0 0
    %1517 = vmatprep.subr.bf16.mxu0 0
    %1518 = vmatpush2.bf16.msra.mxu0 0
    %1519 = vmatprep.subr.bf16.mxu0 0
    %1520 = vmatpush2.bf16.msra.mxu0 0
    %1521 = vmatprep.mubr.bf16.mxu0 0
    %1522 = vmatmul.mubr.bf16.gmra.mxu0 %v1175
    %v1523 = vpop.f32.mrf.mxu0
    %v1524 = vadd.f32 0.0, %v1523
    %v1525 = vpop.f32.mrf.mxu0
    %v1526 = vadd.f32 0.0, %v1525
    %v1527 = vpop.f32.mrf.mxu0
    %v1528 = vadd.f32 0.0, %v1527
    %v1529 = vpop.f32.mrf.mxu0
    %v1530 = vadd.f32 0.0, %v1529
    %1531 = vdwg.mxu0
    %v1532 = vadd.f32 %v1438, %v1481
    %v1533 = vadd.f32 %v1439, %v1483
    %v1534 = vadd.f32 %v1440, %v1524
    %v1535 = vadd.f32 %v1441, %v1526
    %v1536 = vadd.f32 %v1442, %v1485
    %v1537 = vadd.f32 %v1443, %v1487
    %v1538 = vadd.f32 %v1444, %v1528
    %v1539 = vadd.f32 %v1445, %v1530
    %v1540 = vxor.u32 %v1532, 2147483648
    %v1541 = vxor.u32 %v1536, 2147483648
    %v1542 = vmul.f32 %v1540, 1.442695
    %v1543 = vpow.pop %v1542
    %v1544 = vmul.f32 %v1541, 1.442695
    %v1545 = vpow.pop %v1544
    %v1546 = vadd.f32 %v1543, 1.0
    %v1547 = vadd.f32 %v1545, 1.0
    %v1548 = vrcp.pop %v1546
    %v1549 = vmul.f32 1.0, %v1548
    %v1550 = vrcp.pop %v1547
    %v1551 = vmul.f32 1.0, %v1550
    %v1552 = vxor.u32 %v1533, 2147483648
    %v1553 = vxor.u32 %v1537, 2147483648
    %v1554 = vmul.f32 %v1552, 1.442695
    %v1555 = vpow.pop %v1554
    %v1556 = vmul.f32 %v1553, 1.442695
    %v1557 = vpow.pop %v1556
    %v1558 = vadd.f32 %v1555, 1.0
    %v1559 = vadd.f32 %v1557, 1.0
    %v1560 = vrcp.pop %v1558
    %v1561 = vmul.f32 1.0, %v1560
    %v1562 = vrcp.pop %v1559
    %v1563 = vmul.f32 1.0, %v1562
    %v1564 = vtanh.pop %v1534
    %v1565 = vtanh.pop %v1538
    %v1566 = vxor.u32 %v1535, 2147483648
    %v1567 = vxor.u32 %v1539, 2147483648
    %v1568 = vmul.f32 %v1566, 1.442695
    %v1569 = vpow.pop %v1568
    %v1570 = vmul.f32 %v1567, 1.442695
    %v1571 = vpow.pop %v1570
    %v1572 = vadd.f32 %v1569, 1.0
    %v1573 = vadd.f32 %v1571, 1.0
    %v1574 = vrcp.pop %v1572
    %v1575 = vmul.f32 1.0, %v1574
    %v1576 = vrcp.pop %v1573
    %v1577 = vmul.f32 1.0, %v1576
    %v1578 = vmul.f32 %v1561, %v1169
    %v1579 = vmul.f32 %v1563, %v1170
    %v1580 = vmul.f32 %v1549, %v1564
    %v1581 = vmul.f32 %v1551, %v1565
    %v1582 = vadd.f32 %v1578, %v1580
    %v1583 = vadd.f32 %v1579, %v1581
    %v1584 = vtanh.pop %v1582
    %v1585 = vtanh.pop %v1583
    %v1586 = vmul.f32 %v1575, %v1584
    %v1587 = vmul.f32 %v1577, %v1585
    %v1588 = vpack.c.bf16 %v1587, %v1586
    %1589 = vmatprep.subr.bf16.mxu0 0
    %1590 = vmatpush1.bf16.msra.mxu0 %v1215
    %1591 = vmatprep.subr.bf16.mxu0 0
    %1592 = vmatpush1.bf16.msra.mxu0 %v1214
    %1593 = vmatprep.subr.bf16.mxu0 0
    %1594 = vmatpush1.bf16.msra.mxu0 %v1213
    %1595 = vmatprep.subr.bf16.mxu0 0
    %1596 = vmatpush1.bf16.msra.mxu0 %v1212
    %1597 = vmatprep.subr.bf16.mxu0 0
    %1598 = vmatpush1.bf16.msra.mxu0 %v1211
    %1599 = vmatprep.subr.bf16.mxu0 0
    %1600 = vmatpush1.bf16.msra.mxu0 %v1210
    %1601 = vmatprep.subr.bf16.mxu0 0
    %1602 = vmatpush1.bf16.msra.mxu0 %v1209
    %1603 = vmatprep.subr.bf16.mxu0 0
    %1604 = vmatpush1.bf16.msra.mxu0 %v1208
    %1605 = vmatprep.subr.bf16.mxu0 0
    %1606 = vmatpush2.bf16.msra.mxu0 0
    %1607 = vmatprep.subr.bf16.mxu0 0
    %1608 = vmatpush2.bf16.msra.mxu0 0
    %1609 = vmatprep.subr.bf16.mxu0 0
    %1610 = vmatpush2.bf16.msra.mxu0 0
    %1611 = vmatprep.subr.bf16.mxu0 0
    %1612 = vmatpush2.bf16.msra.mxu0 0
    %1613 = vmatprep.subr.bf16.mxu0 0
    %1614 = vmatpush2.bf16.msra.mxu0 0
    %1615 = vmatprep.subr.bf16.mxu0 0
    %1616 = vmatpush2.bf16.msra.mxu0 0
    %1617 = vmatprep.subr.bf16.mxu0 0
    %1618 = vmatpush2.bf16.msra.mxu0 0
    %1619 = vmatprep.subr.bf16.mxu0 0
    %1620 = vmatpush2.bf16.msra.mxu0 0
    %1621 = vmatprep.mubr.bf16.mxu0 0
    %1622 = vmatmul.mubr.bf16.gmra.mxu0 %v1588
    %v1623 = vpop.f32.mrf.mxu0
    %v1624 = vadd.f32 %v521, %v1623
    %v1625 = vpop.f32.mrf.mxu0
    %v1626 = vpop.f32.mrf.mxu0
    %v1627 = vadd.f32 %v521, %v1626
    %v1628 = vpop.f32.mrf.mxu0
    %1629 = vdwg.mxu0
    %s1630 = scalar_lea.vmem [#allocation13], 16
    %1631 = vst [vmem:[%s1630] sm:$0xff] %v1624
    %1632 = vst [vmem:[%s1630 + $0x8] sm:$0xff] %v1627
    %1633 = vmax.xlane.f32.xlu0 %v1624
    %v1634 = vpop.xlane.xlu0 %1633
    %1635 = vmax.xlane.f32.xlu0 %v1627
    %v1636 = vpop.xlane.xlu0 %1635
    %vm1637 = vcmp.eq.f32.partialorder %v1624, %v1634
    %vm1638 = vcmp.eq.f32.partialorder %v1627, %v1636
    %v1639 = vsel %vm1637, %v524, 128
    %v1640 = vsel %vm1638, %v524, 128
    %v1641 = vand.u32 %v1639, 65535
    %v1642 = vshra.s32 %v1639, 16
    %v1643 = vcvt.s32.f32 %v1641
    %v1644 = vcvt.s32.f32 %v1642
    %1645 = vmin.xlane.f32.xlu0 %v1644
    %v1646 = vpop.xlane.xlu0 %1645
    %vm1647 = vcmp.eq.f32.partialorder %v1644, %v1646
    %v1648 = vsel %vm1647, %v1643, inf
    %1649 = vmin.xlane.f32.xlu0 %v1648
    %v1650 = vpop.xlane.xlu0 %1649
    %v1651 = vcvt.f32.s32 %v1650
    %v1652 = vcvt.f32.s32 %v1646
    %v1653 = vshll.u32 %v1652, 16
    %v1654 = vadd.s32 %v1653, %v1651
    %v1655 = vand.u32 %v1640, 65535
    %v1656 = vshra.s32 %v1640, 16
    %v1657 = vcvt.s32.f32 %v1655
    %v1658 = vcvt.s32.f32 %v1656
    %1659 = vmin.xlane.f32.xlu0 %v1658
    %v1660 = vpop.xlane.xlu0 %1659
    %vm1661 = vcmp.eq.f32.partialorder %v1658, %v1660
    %v1662 = vsel %vm1661, %v1657, inf
    %1663 = vmin.xlane.f32.xlu0 %v1662
    %v1664 = vpop.xlane.xlu0 %1663
    %v1665 = vcvt.f32.s32 %v1664
    %v1666 = vcvt.f32.s32 %v1660
    %v1667 = vshll.u32 %v1666, 16
    %v1668 = vadd.s32 %v1667, %v1665
    %vm1669 = vcmp.eq.s32.totalorder %v524, %v1654
    %vm1670 = vcmp.eq.s32.totalorder %v524, %v1668
    %v1671 = vsel %vm1669, 1, 0
    %v1672 = vsel %vm1670, 1, 0
    %v1673 = vcvt.s32.f32 %v1671
    %v1674 = vcvt.s32.f32 %v1672
    %v1675 = vpack.c.bf16 %v1674, %v1673
    %1676 = vmatprep.subr.bf16.mxu0 0
    %1677 = vmatpush1.bf16.msra.mxu0 %v568
    %1678 = vmatprep.subr.bf16.mxu0 0
    %1679 = vmatpush1.bf16.msra.mxu0 %v567
    %1680 = vmatprep.subr.bf16.mxu0 0
    %1681 = vmatpush1.bf16.msra.mxu0 %v566
    %1682 = vmatprep.subr.bf16.mxu0 0
    %1683 = vmatpush1.bf16.msra.mxu0 %v565
    %1684 = vmatprep.subr.bf16.mxu0 0
    %1685 = vmatpush1.bf16.msra.mxu0 %v564
    %1686 = vmatprep.subr.bf16.mxu0 0
    %1687 = vmatpush1.bf16.msra.mxu0 %v563
    %1688 = vmatprep.subr.bf16.mxu0 0
    %1689 = vmatpush1.bf16.msra.mxu0 %v562
    %1690 = vmatprep.subr.bf16.mxu0 0
    %1691 = vmatpush1.bf16.msra.mxu0 %v561
    %1692 = vmatprep.subr.bf16.mxu0 0
    %1693 = vmatpush2.bf16.msra.mxu0 0
    %1694 = vmatprep.subr.bf16.mxu0 0
    %1695 = vmatpush2.bf16.msra.mxu0 0
    %1696 = vmatprep.subr.bf16.mxu0 0
    %1697 = vmatpush2.bf16.msra.mxu0 0
    %1698 = vmatprep.subr.bf16.mxu0 0
    %1699 = vmatpush2.bf16.msra.mxu0 0
    %1700 = vmatprep.subr.bf16.mxu0 0
    %1701 = vmatpush2.bf16.msra.mxu0 0
    %1702 = vmatprep.subr.bf16.mxu0 0
    %1703 = vmatpush2.bf16.msra.mxu0 0
    %1704 = vmatprep.subr.bf16.mxu0 0
    %1705 = vmatpush2.bf16.msra.mxu0 0
    %1706 = vmatprep.subr.bf16.mxu0 0
    %1707 = vmatpush2.bf16.msra.mxu0 0
    %1708 = vmatprep.mubr.bf16.mxu0 0
    %1709 = vmatmul.mubr.bf16.gmra.mxu0 %v1675
    %v1710 = vpop.f32.mrf.mxu0
    %v1711 = vadd.f32 0.0, %v1710
    %v1712 = vpop.f32.mrf.mxu0
    %v1713 = vpop.f32.mrf.mxu0
    %v1714 = vadd.f32 0.0, %v1713
    %v1715 = vpop.f32.mrf.mxu0
    %1716 = vdwg.mxu0
    %v1717 = vpack.c.bf16 %v1714, %v1711
    %1718 = vmatprep.subr.bf16.mxu0 %v744
    %1719 = vmatpush1.bf16.msra.mxu0 %v743
    %1720 = vmatprep.subr.bf16.mxu0 %v740
    %1721 = vmatpush1.bf16.msra.mxu0 %v739
    %1722 = vmatprep.subr.bf16.mxu0 %v736
    %1723 = vmatpush1.bf16.msra.mxu0 %v735
    %1724 = vmatprep.subr.bf16.mxu0 %v732
    %1725 = vmatpush1.bf16.msra.mxu0 %v731
    %1726 = vmatprep.subr.bf16.mxu0 %v728
    %1727 = vmatpush1.bf16.msra.mxu0 %v727
    %1728 = vmatprep.subr.bf16.mxu0 %v724
    %1729 = vmatpush1.bf16.msra.mxu0 %v723
    %1730 = vmatprep.subr.bf16.mxu0 %v720
    %1731 = vmatpush1.bf16.msra.mxu0 %v719
    %1732 = vmatprep.subr.bf16.mxu0 %v716
    %1733 = vmatpush1.bf16.msra.mxu0 %v715
    %1734 = vmatprep.subr.bf16.mxu0 0
    %1735 = vmatpush2.bf16.msra.mxu0 0
    %1736 = vmatprep.subr.bf16.mxu0 0
    %1737 = vmatpush2.bf16.msra.mxu0 0
    %1738 = vmatprep.subr.bf16.mxu0 0
    %1739 = vmatpush2.bf16.msra.mxu0 0
    %1740 = vmatprep.subr.bf16.mxu0 0
    %1741 = vmatpush2.bf16.msra.mxu0 0
    %1742 = vmatprep.subr.bf16.mxu0 0
    %1743 = vmatpush2.bf16.msra.mxu0 0
    %1744 = vmatprep.subr.bf16.mxu0 0
    %1745 = vmatpush2.bf16.msra.mxu0 0
    %1746 = vmatprep.subr.bf16.mxu0 0
    %1747 = vmatpush2.bf16.msra.mxu0 0
    %1748 = vmatprep.subr.bf16.mxu0 0
    %1749 = vmatpush2.bf16.msra.mxu0 0
    %1750 = vmatprep.mubr.bf16.mxu0 0
    %1751 = vmatmul.mubr.bf16.gmra.mxu0 %v1717
    %v1752 = vpop.f32.mrf.mxu0
    %v1753 = vadd.f32 0.0, %v1752
    %v1754 = vpop.f32.mrf.mxu0
    %v1755 = vadd.f32 0.0, %v1754
    %v1756 = vpop.f32.mrf.mxu0
    %v1757 = vadd.f32 0.0, %v1756
    %v1758 = vpop.f32.mrf.mxu0
    %v1759 = vadd.f32 0.0, %v1758
    %1760 = vdwg.mxu0
    %1761 = vmatprep.subr.bf16.mxu0 %v746
    %1762 = vmatpush1.bf16.msra.mxu0 %v745
    %1763 = vmatprep.subr.bf16.mxu0 %v742
    %1764 = vmatpush1.bf16.msra.mxu0 %v741
    %1765 = vmatprep.subr.bf16.mxu0 %v738
    %1766 = vmatpush1.bf16.msra.mxu0 %v737
    %1767 = vmatprep.subr.bf16.mxu0 %v734
    %1768 = vmatpush1.bf16.msra.mxu0 %v733
    %1769 = vmatprep.subr.bf16.mxu0 %v730
    %1770 = vmatpush1.bf16.msra.mxu0 %v729
    %1771 = vmatprep.subr.bf16.mxu0 %v726
    %1772 = vmatpush1.bf16.msra.mxu0 %v725
    %1773 = vmatprep.subr.bf16.mxu0 %v722
    %1774 = vmatpush1.bf16.msra.mxu0 %v721
    %1775 = vmatprep.subr.bf16.mxu0 %v718
    %1776 = vmatpush1.bf16.msra.mxu0 %v717
    %1777 = vmatprep.subr.bf16.mxu0 0
    %1778 = vmatpush2.bf16.msra.mxu0 0
    %1779 = vmatprep.subr.bf16.mxu0 0
    %1780 = vmatpush2.bf16.msra.mxu0 0
    %1781 = vmatprep.subr.bf16.mxu0 0
    %1782 = vmatpush2.bf16.msra.mxu0 0
    %1783 = vmatprep.subr.bf16.mxu0 0
    %1784 = vmatpush2.bf16.msra.mxu0 0
    %1785 = vmatprep.subr.bf16.mxu0 0
    %1786 = vmatpush2.bf16.msra.mxu0 0
    %1787 = vmatprep.subr.bf16.mxu0 0
    %1788 = vmatpush2.bf16.msra.mxu0 0
    %1789 = vmatprep.subr.bf16.mxu0 0
    %1790 = vmatpush2.bf16.msra.mxu0 0
    %1791 = vmatprep.subr.bf16.mxu0 0
    %1792 = vmatpush2.bf16.msra.mxu0 0
    %1793 = vmatprep.mubr.bf16.mxu0 0
    %1794 = vmatmul.mubr.bf16.gmra.mxu0 %v1717
    %v1795 = vpop.f32.mrf.mxu0
    %v1796 = vadd.f32 0.0, %v1795
    %v1797 = vpop.f32.mrf.mxu0
    %v1798 = vadd.f32 0.0, %v1797
    %v1799 = vpop.f32.mrf.mxu0
    %v1800 = vadd.f32 0.0, %v1799
    %v1801 = vpop.f32.mrf.mxu0
    %v1802 = vadd.f32 0.0, %v1801
    %1803 = vdwg.mxu0
    %v1804 = vadd.f32 %v465, %v1753
    %v1805 = vadd.f32 %v467, %v1755
    %v1806 = vadd.f32 %v508, %v1796
    %v1807 = vadd.f32 %v510, %v1798
    %v1808 = vadd.f32 %v469, %v1757
    %v1809 = vadd.f32 %v471, %v1759
    %v1810 = vadd.f32 %v512, %v1800
    %v1811 = vadd.f32 %v514, %v1802
    %1812 = vmatprep.subr.bf16.mxu0 %v998
    %1813 = vmatpush1.bf16.msra.mxu0 %v997
    %1814 = vmatprep.subr.bf16.mxu0 %v994
    %1815 = vmatpush1.bf16.msra.mxu0 %v993
    %1816 = vmatprep.subr.bf16.mxu0 %v990
    %1817 = vmatpush1.bf16.msra.mxu0 %v989
    %1818 = vmatprep.subr.bf16.mxu0 %v986
    %1819 = vmatpush1.bf16.msra.mxu0 %v985
    %1820 = vmatprep.subr.bf16.mxu0 %v982
    %1821 = vmatpush1.bf16.msra.mxu0 %v981
    %1822 = vmatprep.subr.bf16.mxu0 %v978
    %1823 = vmatpush1.bf16.msra.mxu0 %v977
    %1824 = vmatprep.subr.bf16.mxu0 %v974
    %1825 = vmatpush1.bf16.msra.mxu0 %v973
    %1826 = vmatprep.subr.bf16.mxu0 %v970
    %1827 = vmatpush1.bf16.msra.mxu0 %v969
    %1828 = vmatprep.subr.bf16.mxu0 0
    %1829 = vmatpush2.bf16.msra.mxu0 0
    %1830 = vmatprep.subr.bf16.mxu0 0
    %1831 = vmatpush2.bf16.msra.mxu0 0
    %1832 = vmatprep.subr.bf16.mxu0 0
    %1833 = vmatpush2.bf16.msra.mxu0 0
    %1834 = vmatprep.subr.bf16.mxu0 0
    %1835 = vmatpush2.bf16.msra.mxu0 0
    %1836 = vmatprep.subr.bf16.mxu0 0
    %1837 = vmatpush2.bf16.msra.mxu0 0
    %1838 = vmatprep.subr.bf16.mxu0 0
    %1839 = vmatpush2.bf16.msra.mxu0 0
    %1840 = vmatprep.subr.bf16.mxu0 0
    %1841 = vmatpush2.bf16.msra.mxu0 0
    %1842 = vmatprep.subr.bf16.mxu0 0
    %1843 = vmatpush2.bf16.msra.mxu0 0
    %1844 = vmatprep.mubr.bf16.mxu0 0
    %1845 = vmatmul.mubr.bf16.gmra.mxu0 %v1588
    %v1846 = vpop.f32.mrf.mxu0
    %v1847 = vadd.f32 0.0, %v1846
    %v1848 = vpop.f32.mrf.mxu0
    %v1849 = vadd.f32 0.0, %v1848
    %v1850 = vpop.f32.mrf.mxu0
    %v1851 = vadd.f32 0.0, %v1850
    %v1852 = vpop.f32.mrf.mxu0
    %v1853 = vadd.f32 0.0, %v1852
    %1854 = vdwg.mxu0
    %1855 = vmatprep.subr.bf16.mxu0 %v1000
    %1856 = vmatpush1.bf16.msra.mxu0 %v999
    %1857 = vmatprep.subr.bf16.mxu0 %v996
    %1858 = vmatpush1.bf16.msra.mxu0 %v995
    %1859 = vmatprep.subr.bf16.mxu0 %v992
    %1860 = vmatpush1.bf16.msra.mxu0 %v991
    %1861 = vmatprep.subr.bf16.mxu0 %v988
    %1862 = vmatpush1.bf16.msra.mxu0 %v987
    %1863 = vmatprep.subr.bf16.mxu0 %v984
    %1864 = vmatpush1.bf16.msra.mxu0 %v983
    %1865 = vmatprep.subr.bf16.mxu0 %v980
    %1866 = vmatpush1.bf16.msra.mxu0 %v979
    %1867 = vmatprep.subr.bf16.mxu0 %v976
    %1868 = vmatpush1.bf16.msra.mxu0 %v975
    %1869 = vmatprep.subr.bf16.mxu0 %v972
    %1870 = vmatpush1.bf16.msra.mxu0 %v971
    %1871 = vmatprep.subr.bf16.mxu0 0
    %1872 = vmatpush2.bf16.msra.mxu0 0
    %1873 = vmatprep.subr.bf16.mxu0 0
    %1874 = vmatpush2.bf16.msra.mxu0 0
    %1875 = vmatprep.subr.bf16.mxu0 0
    %1876 = vmatpush2.bf16.msra.mxu0 0
    %1877 = vmatprep.subr.bf16.mxu0 0
    %1878 = vmatpush2.bf16.msra.mxu0 0
    %1879 = vmatprep.subr.bf16.mxu0 0
    %1880 = vmatpush2.bf16.msra.mxu0 0
    %1881 = vmatprep.subr.bf16.mxu0 0
    %1882 = vmatpush2.bf16.msra.mxu0 0
    %1883 = vmatprep.subr.bf16.mxu0 0
    %1884 = vmatpush2.bf16.msra.mxu0 0
    %1885 = vmatprep.subr.bf16.mxu0 0
    %1886 = vmatpush2.bf16.msra.mxu0 0
    %1887 = vmatprep.mubr.bf16.mxu0 0
    %1888 = vmatmul.mubr.bf16.gmra.mxu0 %v1588
    %v1889 = vpop.f32.mrf.mxu0
    %v1890 = vadd.f32 0.0, %v1889
    %v1891 = vpop.f32.mrf.mxu0
    %v1892 = vadd.f32 0.0, %v1891
    %v1893 = vpop.f32.mrf.mxu0
    %v1894 = vadd.f32 0.0, %v1893
    %v1895 = vpop.f32.mrf.mxu0
    %v1896 = vadd.f32 0.0, %v1895
    %1897 = vdwg.mxu0
    %v1898 = vadd.f32 %v1804, %v1847
    %v1899 = vadd.f32 %v1805, %v1849
    %v1900 = vadd.f32 %v1806, %v1890
    %v1901 = vadd.f32 %v1807, %v1892
    %v1902 = vadd.f32 %v1808, %v1851
    %v1903 = vadd.f32 %v1809, %v1853
    %v1904 = vadd.f32 %v1810, %v1894
    %v1905 = vadd.f32 %v1811, %v1896
    %v1906 = vxor.u32 %v1898, 2147483648
    %v1907 = vxor.u32 %v1902, 2147483648
    %v1908 = vmul.f32 %v1906, 1.442695
    %v1909 = vpow.pop %v1908
    %v1910 = vmul.f32 %v1907, 1.442695
    %v1911 = vpow.pop %v1910
    %v1912 = vadd.f32 %v1909, 1.0
    %v1913 = vadd.f32 %v1911, 1.0
    %v1914 = vrcp.pop %v1912
    %v1915 = vmul.f32 1.0, %v1914
    %v1916 = vrcp.pop %v1913
    %v1917 = vmul.f32 1.0, %v1916
    %v1918 = vxor.u32 %v1899, 2147483648
    %v1919 = vxor.u32 %v1903, 2147483648
    %v1920 = vmul.f32 %v1918, 1.442695
    %v1921 = vpow.pop %v1920
    %v1922 = vmul.f32 %v1919, 1.442695
    %v1923 = vpow.pop %v1922
    %v1924 = vadd.f32 %v1921, 1.0
    %v1925 = vadd.f32 %v1923, 1.0
    %v1926 = vrcp.pop %v1924
    %v1927 = vmul.f32 1.0, %v1926
    %v1928 = vrcp.pop %v1925
    %v1929 = vmul.f32 1.0, %v1928
    %v1930 = vtanh.pop %v1900
    %v1931 = vtanh.pop %v1904
    %v1932 = vxor.u32 %v1901, 2147483648
    %v1933 = vxor.u32 %v1905, 2147483648
    %v1934 = vmul.f32 %v1932, 1.442695
    %v1935 = vpow.pop %v1934
    %v1936 = vmul.f32 %v1933, 1.442695
    %v1937 = vpow.pop %v1936
    %v1938 = vadd.f32 %v1935, 1.0
    %v1939 = vadd.f32 %v1937, 1.0
    %v1940 = vrcp.pop %v1938
    %v1941 = vmul.f32 1.0, %v1940
    %v1942 = vrcp.pop %v1939
    %v1943 = vmul.f32 1.0, %v1942
    %v1944 = vmul.f32 %v1927, %v1582
    %v1945 = vmul.f32 %v1929, %v1583
    %v1946 = vmul.f32 %v1915, %v1930
    %v1947 = vmul.f32 %v1917, %v1931
    %v1948 = vadd.f32 %v1944, %v1946
    %v1949 = vadd.f32 %v1945, %v1947
    %v1950 = vtanh.pop %v1948
    %v1951 = vtanh.pop %v1949
    %v1952 = vmul.f32 %v1941, %v1950
    %v1953 = vmul.f32 %v1943, %v1951
    %v1954 = vpack.c.bf16 %v1953, %v1952
    %1955 = vmatprep.subr.bf16.mxu0 0
    %1956 = vmatpush1.bf16.msra.mxu0 %v1215
    %1957 = vmatprep.subr.bf16.mxu0 0
    %1958 = vmatpush1.bf16.msra.mxu0 %v1214
    %1959 = vmatprep.subr.bf16.mxu0 0
    %1960 = vmatpush1.bf16.msra.mxu0 %v1213
    %1961 = vmatprep.subr.bf16.mxu0 0
    %1962 = vmatpush1.bf16.msra.mxu0 %v1212
    %1963 = vmatprep.subr.bf16.mxu0 0
    %1964 = vmatpush1.bf16.msra.mxu0 %v1211
    %1965 = vmatprep.subr.bf16.mxu0 0
    %1966 = vmatpush1.bf16.msra.mxu0 %v1210
    %1967 = vmatprep.subr.bf16.mxu0 0
    %1968 = vmatpush1.bf16.msra.mxu0 %v1209
    %1969 = vmatprep.subr.bf16.mxu0 0
    %1970 = vmatpush1.bf16.msra.mxu0 %v1208
    %1971 = vmatprep.subr.bf16.mxu0 0
    %1972 = vmatpush2.bf16.msra.mxu0 0
    %1973 = vmatprep.subr.bf16.mxu0 0
    %1974 = vmatpush2.bf16.msra.mxu0 0
    %1975 = vmatprep.subr.bf16.mxu0 0
    %1976 = vmatpush2.bf16.msra.mxu0 0
    %1977 = vmatprep.subr.bf16.mxu0 0
    %1978 = vmatpush2.bf16.msra.mxu0 0
    %1979 = vmatprep.subr.bf16.mxu0 0
    %1980 = vmatpush2.bf16.msra.mxu0 0
    %1981 = vmatprep.subr.bf16.mxu0 0
    %1982 = vmatpush2.bf16.msra.mxu0 0
    %1983 = vmatprep.subr.bf16.mxu0 0
    %1984 = vmatpush2.bf16.msra.mxu0 0
    %1985 = vmatprep.subr.bf16.mxu0 0
    %1986 = vmatpush2.bf16.msra.mxu0 0
    %1987 = vmatprep.mubr.bf16.mxu0 0
    %1988 = vmatmul.mubr.bf16.gmra.mxu0 %v1954
    %v1989 = vpop.f32.mrf.mxu0
    %v1990 = vadd.f32 %v521, %v1989
    %v1991 = vpop.f32.mrf.mxu0
    %v1992 = vpop.f32.mrf.mxu0
    %v1993 = vadd.f32 %v521, %v1992
    %v1994 = vpop.f32.mrf.mxu0
    %1995 = vdwg.mxu0
    %s1996 = scalar_lea.vmem [#allocation13], 32
    %1997 = vst [vmem:[%s1996] sm:$0xff] %v1990
    %1998 = vst [vmem:[%s1996 + $0x8] sm:$0xff] %v1993
    %1999 = vmax.xlane.f32.xlu0 %v1990
    %v2000 = vpop.xlane.xlu0 %1999
    %2001 = vmax.xlane.f32.xlu0 %v1993
    %v2002 = vpop.xlane.xlu0 %2001
    %vm2003 = vcmp.eq.f32.partialorder %v1990, %v2000
    %vm2004 = vcmp.eq.f32.partialorder %v1993, %v2002
    %v2005 = vsel %vm2003, %v524, 128
    %v2006 = vsel %vm2004, %v524, 128
    %v2007 = vand.u32 %v2005, 65535
    %v2008 = vshra.s32 %v2005, 16
    %v2009 = vcvt.s32.f32 %v2007
    %v2010 = vcvt.s32.f32 %v2008
    %2011 = vmin.xlane.f32.xlu0 %v2010
    %v2012 = vpop.xlane.xlu0 %2011
    %vm2013 = vcmp.eq.f32.partialorder %v2010, %v2012
    %v2014 = vsel %vm2013, %v2009, inf
    %2015 = vmin.xlane.f32.xlu0 %v2014
    %v2016 = vpop.xlane.xlu0 %2015
    %v2017 = vcvt.f32.s32 %v2016
    %v2018 = vcvt.f32.s32 %v2012
    %v2019 = vshll.u32 %v2018, 16
    %v2020 = vadd.s32 %v2019, %v2017
    %v2021 = vand.u32 %v2006, 65535
    %v2022 = vshra.s32 %v2006, 16
    %v2023 = vcvt.s32.f32 %v2021
    %v2024 = vcvt.s32.f32 %v2022
    %2025 = vmin.xlane.f32.xlu0 %v2024
    %v2026 = vpop.xlane.xlu0 %2025
    %vm2027 = vcmp.eq.f32.partialorder %v2024, %v2026
    %v2028 = vsel %vm2027, %v2023, inf
    %2029 = vmin.xlane.f32.xlu0 %v2028
    %v2030 = vpop.xlane.xlu0 %2029
    %v2031 = vcvt.f32.s32 %v2030
    %v2032 = vcvt.f32.s32 %v2026
    %v2033 = vshll.u32 %v2032, 16
    %v2034 = vadd.s32 %v2033, %v2031
    %vm2035 = vcmp.eq.s32.totalorder %v524, %v2020
    %vm2036 = vcmp.eq.s32.totalorder %v524, %v2034
    %v2037 = vsel %vm2035, 1, 0
    %v2038 = vsel %vm2036, 1, 0
    %v2039 = vcvt.s32.f32 %v2037
    %v2040 = vcvt.s32.f32 %v2038
    %v2041 = vpack.c.bf16 %v2040, %v2039
    %2042 = vmatprep.subr.bf16.mxu0 0
    %2043 = vmatpush1.bf16.msra.mxu0 %v568
    %2044 = vmatprep.subr.bf16.mxu0 0
    %2045 = vmatpush1.bf16.msra.mxu0 %v567
    %2046 = vmatprep.subr.bf16.mxu0 0
    %2047 = vmatpush1.bf16.msra.mxu0 %v566
    %2048 = vmatprep.subr.bf16.mxu0 0
    %2049 = vmatpush1.bf16.msra.mxu0 %v565
    %2050 = vmatprep.subr.bf16.mxu0 0
    %2051 = vmatpush1.bf16.msra.mxu0 %v564
    %2052 = vmatprep.subr.bf16.mxu0 0
    %2053 = vmatpush1.bf16.msra.mxu0 %v563
    %2054 = vmatprep.subr.bf16.mxu0 0
    %2055 = vmatpush1.bf16.msra.mxu0 %v562
    %2056 = vmatprep.subr.bf16.mxu0 0
    %2057 = vmatpush1.bf16.msra.mxu0 %v561
    %2058 = vmatprep.subr.bf16.mxu0 0
    %2059 = vmatpush2.bf16.msra.mxu0 0
    %2060 = vmatprep.subr.bf16.mxu0 0
    %2061 = vmatpush2.bf16.msra.mxu0 0
    %2062 = vmatprep.subr.bf16.mxu0 0
    %2063 = vmatpush2.bf16.msra.mxu0 0
    %2064 = vmatprep.subr.bf16.mxu0 0
    %2065 = vmatpush2.bf16.msra.mxu0 0
    %2066 = vmatprep.subr.bf16.mxu0 0
    %2067 = vmatpush2.bf16.msra.mxu0 0
    %2068 = vmatprep.subr.bf16.mxu0 0
    %2069 = vmatpush2.bf16.msra.mxu0 0
    %2070 = vmatprep.subr.bf16.mxu0 0
    %2071 = vmatpush2.bf16.msra.mxu0 0
    %2072 = vmatprep.subr.bf16.mxu0 0
    %2073 = vmatpush2.bf16.msra.mxu0 0
    %2074 = vmatprep.mubr.bf16.mxu0 0
    %2075 = vmatmul.mubr.bf16.gmra.mxu0 %v2041
    %v2076 = vpop.f32.mrf.mxu0
    %v2077 = vadd.f32 0.0, %v2076
    %v2078 = vpop.f32.mrf.mxu0
    %v2079 = vpop.f32.mrf.mxu0
    %v2080 = vadd.f32 0.0, %v2079
    %v2081 = vpop.f32.mrf.mxu0
    %2082 = vdwg.mxu0
    %v2083 = vpack.c.bf16 %v2080, %v2077
    %2084 = vmatprep.subr.bf16.mxu0 %v744
    %2085 = vmatpush1.bf16.msra.mxu0 %v743
    %2086 = vmatprep.subr.bf16.mxu0 %v740
    %2087 = vmatpush1.bf16.msra.mxu0 %v739
    %2088 = vmatprep.subr.bf16.mxu0 %v736
    %2089 = vmatpush1.bf16.msra.mxu0 %v735
    %2090 = vmatprep.subr.bf16.mxu0 %v732
    %2091 = vmatpush1.bf16.msra.mxu0 %v731
    %2092 = vmatprep.subr.bf16.mxu0 %v728
    %2093 = vmatpush1.bf16.msra.mxu0 %v727
    %2094 = vmatprep.subr.bf16.mxu0 %v724
    %2095 = vmatpush1.bf16.msra.mxu0 %v723
    %2096 = vmatprep.subr.bf16.mxu0 %v720
    %2097 = vmatpush1.bf16.msra.mxu0 %v719
    %2098 = vmatprep.subr.bf16.mxu0 %v716
    %2099 = vmatpush1.bf16.msra.mxu0 %v715
    %2100 = vmatprep.subr.bf16.mxu0 0
    %2101 = vmatpush2.bf16.msra.mxu0 0
    %2102 = vmatprep.subr.bf16.mxu0 0
    %2103 = vmatpush2.bf16.msra.mxu0 0
    %2104 = vmatprep.subr.bf16.mxu0 0
    %2105 = vmatpush2.bf16.msra.mxu0 0
    %2106 = vmatprep.subr.bf16.mxu0 0
    %2107 = vmatpush2.bf16.msra.mxu0 0
    %2108 = vmatprep.subr.bf16.mxu0 0
    %2109 = vmatpush2.bf16.msra.mxu0 0
    %2110 = vmatprep.subr.bf16.mxu0 0
    %2111 = vmatpush2.bf16.msra.mxu0 0
    %2112 = vmatprep.subr.bf16.mxu0 0
    %2113 = vmatpush2.bf16.msra.mxu0 0
    %2114 = vmatprep.subr.bf16.mxu0 0
    %2115 = vmatpush2.bf16.msra.mxu0 0
    %2116 = vmatprep.mubr.bf16.mxu0 0
    %2117 = vmatmul.mubr.bf16.gmra.mxu0 %v2083
    %v2118 = vpop.f32.mrf.mxu0
    %v2119 = vadd.f32 0.0, %v2118
    %v2120 = vpop.f32.mrf.mxu0
    %v2121 = vadd.f32 0.0, %v2120
    %v2122 = vpop.f32.mrf.mxu0
    %v2123 = vadd.f32 0.0, %v2122
    %v2124 = vpop.f32.mrf.mxu0
    %v2125 = vadd.f32 0.0, %v2124
    %2126 = vdwg.mxu0
    %2127 = vmatprep.subr.bf16.mxu0 %v746
    %2128 = vmatpush1.bf16.msra.mxu0 %v745
    %2129 = vmatprep.subr.bf16.mxu0 %v742
    %2130 = vmatpush1.bf16.msra.mxu0 %v741
    %2131 = vmatprep.subr.bf16.mxu0 %v738
    %2132 = vmatpush1.bf16.msra.mxu0 %v737
    %2133 = vmatprep.subr.bf16.mxu0 %v734
    %2134 = vmatpush1.bf16.msra.mxu0 %v733
    %2135 = vmatprep.subr.bf16.mxu0 %v730
    %2136 = vmatpush1.bf16.msra.mxu0 %v729
    %2137 = vmatprep.subr.bf16.mxu0 %v726
    %2138 = vmatpush1.bf16.msra.mxu0 %v725
    %2139 = vmatprep.subr.bf16.mxu0 %v722
    %2140 = vmatpush1.bf16.msra.mxu0 %v721
    %2141 = vmatprep.subr.bf16.mxu0 %v718
    %2142 = vmatpush1.bf16.msra.mxu0 %v717
    %2143 = vmatprep.subr.bf16.mxu0 0
    %2144 = vmatpush2.bf16.msra.mxu0 0
    %2145 = vmatprep.subr.bf16.mxu0 0
    %2146 = vmatpush2.bf16.msra.mxu0 0
    %2147 = vmatprep.subr.bf16.mxu0 0
    %2148 = vmatpush2.bf16.msra.mxu0 0
    %2149 = vmatprep.subr.bf16.mxu0 0
    %2150 = vmatpush2.bf16.msra.mxu0 0
    %2151 = vmatprep.subr.bf16.mxu0 0
    %2152 = vmatpush2.bf16.msra.mxu0 0
    %2153 = vmatprep.subr.bf16.mxu0 0
    %2154 = vmatpush2.bf16.msra.mxu0 0
    %2155 = vmatprep.subr.bf16.mxu0 0
    %2156 = vmatpush2.bf16.msra.mxu0 0
    %2157 = vmatprep.subr.bf16.mxu0 0
    %2158 = vmatpush2.bf16.msra.mxu0 0
    %2159 = vmatprep.mubr.bf16.mxu0 0
    %2160 = vmatmul.mubr.bf16.gmra.mxu0 %v2083
    %v2161 = vpop.f32.mrf.mxu0
    %v2162 = vadd.f32 0.0, %v2161
    %v2163 = vpop.f32.mrf.mxu0
    %v2164 = vadd.f32 0.0, %v2163
    %v2165 = vpop.f32.mrf.mxu0
    %v2166 = vadd.f32 0.0, %v2165
    %v2167 = vpop.f32.mrf.mxu0
    %v2168 = vadd.f32 0.0, %v2167
    %2169 = vdwg.mxu0
    %v2170 = vadd.f32 %v465, %v2119
    %v2171 = vadd.f32 %v467, %v2121
    %v2172 = vadd.f32 %v508, %v2162
    %v2173 = vadd.f32 %v510, %v2164
    %v2174 = vadd.f32 %v469, %v2123
    %v2175 = vadd.f32 %v471, %v2125
    %v2176 = vadd.f32 %v512, %v2166
    %v2177 = vadd.f32 %v514, %v2168
    %2178 = vmatprep.subr.bf16.mxu0 %v998
    %2179 = vmatpush1.bf16.msra.mxu0 %v997
    %2180 = vmatprep.subr.bf16.mxu0 %v994
    %2181 = vmatpush1.bf16.msra.mxu0 %v993
    %2182 = vmatprep.subr.bf16.mxu0 %v990
    %2183 = vmatpush1.bf16.msra.mxu0 %v989
    %2184 = vmatprep.subr.bf16.mxu0 %v986
    %2185 = vmatpush1.bf16.msra.mxu0 %v985
    %2186 = vmatprep.subr.bf16.mxu0 %v982
    %2187 = vmatpush1.bf16.msra.mxu0 %v981
    %2188 = vmatprep.subr.bf16.mxu0 %v978
    %2189 = vmatpush1.bf16.msra.mxu0 %v977
    %2190 = vmatprep.subr.bf16.mxu0 %v974
    %2191 = vmatpush1.bf16.msra.mxu0 %v973
    %2192 = vmatprep.subr.bf16.mxu0 %v970
    %2193 = vmatpush1.bf16.msra.mxu0 %v969
    %2194 = vmatprep.subr.bf16.mxu0 0
    %2195 = vmatpush2.bf16.msra.mxu0 0
    %2196 = vmatprep.subr.bf16.mxu0 0
    %2197 = vmatpush2.bf16.msra.mxu0 0
    %2198 = vmatprep.subr.bf16.mxu0 0
    %2199 = vmatpush2.bf16.msra.mxu0 0
    %2200 = vmatprep.subr.bf16.mxu0 0
    %2201 = vmatpush2.bf16.msra.mxu0 0
    %2202 = vmatprep.subr.bf16.mxu0 0
    %2203 = vmatpush2.bf16.msra.mxu0 0
    %2204 = vmatprep.subr.bf16.mxu0 0
    %2205 = vmatpush2.bf16.msra.mxu0 0
    %2206 = vmatprep.subr.bf16.mxu0 0
    %2207 = vmatpush2.bf16.msra.mxu0 0
    %2208 = vmatprep.subr.bf16.mxu0 0
    %2209 = vmatpush2.bf16.msra.mxu0 0
    %2210 = vmatprep.mubr.bf16.mxu0 0
    %2211 = vmatmul.mubr.bf16.gmra.mxu0 %v1954
    %v2212 = vpop.f32.mrf.mxu0
    %v2213 = vadd.f32 0.0, %v2212
    %v2214 = vpop.f32.mrf.mxu0
    %v2215 = vadd.f32 0.0, %v2214
    %v2216 = vpop.f32.mrf.mxu0
    %v2217 = vadd.f32 0.0, %v2216
    %v2218 = vpop.f32.mrf.mxu0
    %v2219 = vadd.f32 0.0, %v2218
    %2220 = vdwg.mxu0
    %2221 = vmatprep.subr.bf16.mxu0 %v1000
    %2222 = vmatpush1.bf16.msra.mxu0 %v999
    %2223 = vmatprep.subr.bf16.mxu0 %v996
    %2224 = vmatpush1.bf16.msra.mxu0 %v995
    %2225 = vmatprep.subr.bf16.mxu0 %v992
    %2226 = vmatpush1.bf16.msra.mxu0 %v991
    %2227 = vmatprep.subr.bf16.mxu0 %v988
    %2228 = vmatpush1.bf16.msra.mxu0 %v987
    %2229 = vmatprep.subr.bf16.mxu0 %v984
    %2230 = vmatpush1.bf16.msra.mxu0 %v983
    %2231 = vmatprep.subr.bf16.mxu0 %v980
    %2232 = vmatpush1.bf16.msra.mxu0 %v979
    %2233 = vmatprep.subr.bf16.mxu0 %v976
    %2234 = vmatpush1.bf16.msra.mxu0 %v975
    %2235 = vmatprep.subr.bf16.mxu0 %v972
    %2236 = vmatpush1.bf16.msra.mxu0 %v971
    %2237 = vmatprep.subr.bf16.mxu0 0
    %2238 = vmatpush2.bf16.msra.mxu0 0
    %2239 = vmatprep.subr.bf16.mxu0 0
    %2240 = vmatpush2.bf16.msra.mxu0 0
    %2241 = vmatprep.subr.bf16.mxu0 0
    %2242 = vmatpush2.bf16.msra.mxu0 0
    %2243 = vmatprep.subr.bf16.mxu0 0
    %2244 = vmatpush2.bf16.msra.mxu0 0
    %2245 = vmatprep.subr.bf16.mxu0 0
    %2246 = vmatpush2.bf16.msra.mxu0 0
    %2247 = vmatprep.subr.bf16.mxu0 0
    %2248 = vmatpush2.bf16.msra.mxu0 0
    %2249 = vmatprep.subr.bf16.mxu0 0
    %2250 = vmatpush2.bf16.msra.mxu0 0
    %2251 = vmatprep.subr.bf16.mxu0 0
    %2252 = vmatpush2.bf16.msra.mxu0 0
    %2253 = vmatprep.mubr.bf16.mxu0 0
    %2254 = vmatmul.mubr.bf16.gmra.mxu0 %v1954
    %v2255 = vpop.f32.mrf.mxu0
    %v2256 = vadd.f32 0.0, %v2255
    %v2257 = vpop.f32.mrf.mxu0
    %v2258 = vadd.f32 0.0, %v2257
    %v2259 = vpop.f32.mrf.mxu0
    %v2260 = vadd.f32 0.0, %v2259
    %v2261 = vpop.f32.mrf.mxu0
    %v2262 = vadd.f32 0.0, %v2261
    %2263 = vdwg.mxu0
    %v2264 = vadd.f32 %v2170, %v2213
    %v2265 = vadd.f32 %v2171, %v2215
    %v2266 = vadd.f32 %v2172, %v2256
    %v2267 = vadd.f32 %v2173, %v2258
    %v2268 = vadd.f32 %v2174, %v2217
    %v2269 = vadd.f32 %v2175, %v2219
    %v2270 = vadd.f32 %v2176, %v2260
    %v2271 = vadd.f32 %v2177, %v2262
    %v2272 = vxor.u32 %v2264, 2147483648
    %v2273 = vxor.u32 %v2268, 2147483648
    %v2274 = vmul.f32 %v2272, 1.442695
    %v2275 = vpow.pop %v2274
    %v2276 = vmul.f32 %v2273, 1.442695
    %v2277 = vpow.pop %v2276
    %v2278 = vadd.f32 %v2275, 1.0
    %v2279 = vadd.f32 %v2277, 1.0
    %v2280 = vrcp.pop %v2278
    %v2281 = vmul.f32 1.0, %v2280
    %v2282 = vrcp.pop %v2279
    %v2283 = vmul.f32 1.0, %v2282
    %v2284 = vxor.u32 %v2265, 2147483648
    %v2285 = vxor.u32 %v2269, 2147483648
    %v2286 = vmul.f32 %v2284, 1.442695
    %v2287 = vpow.pop %v2286
    %v2288 = vmul.f32 %v2285, 1.442695
    %v2289 = vpow.pop %v2288
    %v2290 = vadd.f32 %v2287, 1.0
    %v2291 = vadd.f32 %v2289, 1.0
    %v2292 = vrcp.pop %v2290
    %v2293 = vmul.f32 1.0, %v2292
    %v2294 = vrcp.pop %v2291
    %v2295 = vmul.f32 1.0, %v2294
    %v2296 = vtanh.pop %v2266
    %v2297 = vtanh.pop %v2270
    %v2298 = vxor.u32 %v2267, 2147483648
    %v2299 = vxor.u32 %v2271, 2147483648
    %v2300 = vmul.f32 %v2298, 1.442695
    %v2301 = vpow.pop %v2300
    %v2302 = vmul.f32 %v2299, 1.442695
    %v2303 = vpow.pop %v2302
    %v2304 = vadd.f32 %v2301, 1.0
    %v2305 = vadd.f32 %v2303, 1.0
    %v2306 = vrcp.pop %v2304
    %v2307 = vmul.f32 1.0, %v2306
    %v2308 = vrcp.pop %v2305
    %v2309 = vmul.f32 1.0, %v2308
    %v2310 = vmul.f32 %v2293, %v1948
    %v2311 = vmul.f32 %v2295, %v1949
    %v2312 = vmul.f32 %v2281, %v2296
    %v2313 = vmul.f32 %v2283, %v2297
    %v2314 = vadd.f32 %v2310, %v2312
    %v2315 = vadd.f32 %v2311, %v2313
    %v2316 = vtanh.pop %v2314
    %v2317 = vtanh.pop %v2315
    %v2318 = vmul.f32 %v2307, %v2316
    %v2319 = vmul.f32 %v2309, %v2317
    %v2320 = vpack.c.bf16 %v2319, %v2318
    %2321 = vmatprep.subr.bf16.mxu0 0
    %2322 = vmatpush1.bf16.msra.mxu0 %v1215
    %2323 = vmatprep.subr.bf16.mxu0 0
    %2324 = vmatpush1.bf16.msra.mxu0 %v1214
    %2325 = vmatprep.subr.bf16.mxu0 0
    %2326 = vmatpush1.bf16.msra.mxu0 %v1213
    %2327 = vmatprep.subr.bf16.mxu0 0
    %2328 = vmatpush1.bf16.msra.mxu0 %v1212
    %2329 = vmatprep.subr.bf16.mxu0 0
    %2330 = vmatpush1.bf16.msra.mxu0 %v1211
    %2331 = vmatprep.subr.bf16.mxu0 0
    %2332 = vmatpush1.bf16.msra.mxu0 %v1210
    %2333 = vmatprep.subr.bf16.mxu0 0
    %2334 = vmatpush1.bf16.msra.mxu0 %v1209
    %2335 = vmatprep.subr.bf16.mxu0 0
    %2336 = vmatpush1.bf16.msra.mxu0 %v1208
    %2337 = vmatprep.subr.bf16.mxu0 0
    %2338 = vmatpush2.bf16.msra.mxu0 0
    %2339 = vmatprep.subr.bf16.mxu0 0
    %2340 = vmatpush2.bf16.msra.mxu0 0
    %2341 = vmatprep.subr.bf16.mxu0 0
    %2342 = vmatpush2.bf16.msra.mxu0 0
    %2343 = vmatprep.subr.bf16.mxu0 0
    %2344 = vmatpush2.bf16.msra.mxu0 0
    %2345 = vmatprep.subr.bf16.mxu0 0
    %2346 = vmatpush2.bf16.msra.mxu0 0
    %2347 = vmatprep.subr.bf16.mxu0 0
    %2348 = vmatpush2.bf16.msra.mxu0 0
    %2349 = vmatprep.subr.bf16.mxu0 0
    %2350 = vmatpush2.bf16.msra.mxu0 0
    %2351 = vmatprep.subr.bf16.mxu0 0
    %2352 = vmatpush2.bf16.msra.mxu0 0
    %2353 = vmatprep.mubr.bf16.mxu0 0
    %2354 = vmatmul.mubr.bf16.gmra.mxu0 %v2320
    %v2355 = vpop.f32.mrf.mxu0
    %v2356 = vadd.f32 %v521, %v2355
    %v2357 = vpop.f32.mrf.mxu0
    %v2358 = vpop.f32.mrf.mxu0
    %v2359 = vadd.f32 %v521, %v2358
    %v2360 = vpop.f32.mrf.mxu0
    %2361 = vdwg.mxu0
    %s2362 = scalar_lea.vmem [#allocation13], 48
    %2363 = vst [vmem:[%s2362] sm:$0xff] %v2356
    %2364 = vst [vmem:[%s2362 + $0x8] sm:$0xff] %v2359
    %2365 = vmax.xlane.f32.xlu0 %v2356
    %v2366 = vpop.xlane.xlu0 %2365
    %2367 = vmax.xlane.f32.xlu0 %v2359
    %v2368 = vpop.xlane.xlu0 %2367
    %vm2369 = vcmp.eq.f32.partialorder %v2356, %v2366
    %vm2370 = vcmp.eq.f32.partialorder %v2359, %v2368
    %v2371 = vsel %vm2369, %v524, 128
    %v2372 = vsel %vm2370, %v524, 128
    %v2373 = vand.u32 %v2371, 65535
    %v2374 = vshra.s32 %v2371, 16
    %v2375 = vcvt.s32.f32 %v2373
    %v2376 = vcvt.s32.f32 %v2374
    %2377 = vmin.xlane.f32.xlu0 %v2376
    %v2378 = vpop.xlane.xlu0 %2377
    %vm2379 = vcmp.eq.f32.partialorder %v2376, %v2378
    %v2380 = vsel %vm2379, %v2375, inf
    %2381 = vmin.xlane.f32.xlu0 %v2380
    %v2382 = vpop.xlane.xlu0 %2381
    %v2383 = vcvt.f32.s32 %v2382
    %v2384 = vcvt.f32.s32 %v2378
    %v2385 = vshll.u32 %v2384, 16
    %v2386 = vadd.s32 %v2385, %v2383
    %v2387 = vand.u32 %v2372, 65535
    %v2388 = vshra.s32 %v2372, 16
    %v2389 = vcvt.s32.f32 %v2387
    %v2390 = vcvt.s32.f32 %v2388
    %2391 = vmin.xlane.f32.xlu0 %v2390
    %v2392 = vpop.xlane.xlu0 %2391
    %vm2393 = vcmp.eq.f32.partialorder %v2390, %v2392
    %v2394 = vsel %vm2393, %v2389, inf
    %2395 = vmin.xlane.f32.xlu0 %v2394
    %v2396 = vpop.xlane.xlu0 %2395
    %v2397 = vcvt.f32.s32 %v2396
    %v2398 = vcvt.f32.s32 %v2392
    %v2399 = vshll.u32 %v2398, 16
    %v2400 = vadd.s32 %v2399, %v2397
    %vm2401 = vcmp.eq.s32.totalorder %v524, %v2386
    %vm2402 = vcmp.eq.s32.totalorder %v524, %v2400
    %v2403 = vsel %vm2401, 1, 0
    %v2404 = vsel %vm2402, 1, 0
    %v2405 = vcvt.s32.f32 %v2403
    %v2406 = vcvt.s32.f32 %v2404
    %v2407 = vpack.c.bf16 %v2406, %v2405
    %2408 = vmatprep.subr.bf16.mxu0 0
    %2409 = vmatpush1.bf16.msra.mxu0 %v568
    %2410 = vmatprep.subr.bf16.mxu0 0
    %2411 = vmatpush1.bf16.msra.mxu0 %v567
    %2412 = vmatprep.subr.bf16.mxu0 0
    %2413 = vmatpush1.bf16.msra.mxu0 %v566
    %2414 = vmatprep.subr.bf16.mxu0 0
    %2415 = vmatpush1.bf16.msra.mxu0 %v565
    %2416 = vmatprep.subr.bf16.mxu0 0
    %2417 = vmatpush1.bf16.msra.mxu0 %v564
    %2418 = vmatprep.subr.bf16.mxu0 0
    %2419 = vmatpush1.bf16.msra.mxu0 %v563
    %2420 = vmatprep.subr.bf16.mxu0 0
    %2421 = vmatpush1.bf16.msra.mxu0 %v562
    %2422 = vmatprep.subr.bf16.mxu0 0
    %2423 = vmatpush1.bf16.msra.mxu0 %v561
    %2424 = vmatprep.subr.bf16.mxu0 0
    %2425 = vmatpush2.bf16.msra.mxu0 0
    %2426 = vmatprep.subr.bf16.mxu0 0
    %2427 = vmatpush2.bf16.msra.mxu0 0
    %2428 = vmatprep.subr.bf16.mxu0 0
    %2429 = vmatpush2.bf16.msra.mxu0 0
    %2430 = vmatprep.subr.bf16.mxu0 0
    %2431 = vmatpush2.bf16.msra.mxu0 0
    %2432 = vmatprep.subr.bf16.mxu0 0
    %2433 = vmatpush2.bf16.msra.mxu0 0
    %2434 = vmatprep.subr.bf16.mxu0 0
    %2435 = vmatpush2.bf16.msra.mxu0 0
    %2436 = vmatprep.subr.bf16.mxu0 0
    %2437 = vmatpush2.bf16.msra.mxu0 0
    %2438 = vmatprep.subr.bf16.mxu0 0
    %2439 = vmatpush2.bf16.msra.mxu0 0
    %2440 = vmatprep.mubr.bf16.mxu0 0
    %2441 = vmatmul.mubr.bf16.gmra.mxu0 %v2407
    %v2442 = vpop.f32.mrf.mxu0
    %v2443 = vadd.f32 0.0, %v2442
    %v2444 = vpop.f32.mrf.mxu0
    %v2445 = vpop.f32.mrf.mxu0
    %v2446 = vadd.f32 0.0, %v2445
    %v2447 = vpop.f32.mrf.mxu0
    %2448 = vdwg.mxu0
    %v2449 = vpack.c.bf16 %v2446, %v2443
    %2450 = vmatprep.subr.bf16.mxu0 %v744
    %2451 = vmatpush1.bf16.msra.mxu0 %v743
    %2452 = vmatprep.subr.bf16.mxu0 %v740
    %2453 = vmatpush1.bf16.msra.mxu0 %v739
    %2454 = vmatprep.subr.bf16.mxu0 %v736
    %2455 = vmatpush1.bf16.msra.mxu0 %v735
    %2456 = vmatprep.subr.bf16.mxu0 %v732
    %2457 = vmatpush1.bf16.msra.mxu0 %v731
    %2458 = vmatprep.subr.bf16.mxu0 %v728
    %2459 = vmatpush1.bf16.msra.mxu0 %v727
    %2460 = vmatprep.subr.bf16.mxu0 %v724
    %2461 = vmatpush1.bf16.msra.mxu0 %v723
    %2462 = vmatprep.subr.bf16.mxu0 %v720
    %2463 = vmatpush1.bf16.msra.mxu0 %v719
    %2464 = vmatprep.subr.bf16.mxu0 %v716
    %2465 = vmatpush1.bf16.msra.mxu0 %v715
    %2466 = vmatprep.subr.bf16.mxu0 0
    %2467 = vmatpush2.bf16.msra.mxu0 0
    %2468 = vmatprep.subr.bf16.mxu0 0
    %2469 = vmatpush2.bf16.msra.mxu0 0
    %2470 = vmatprep.subr.bf16.mxu0 0
    %2471 = vmatpush2.bf16.msra.mxu0 0
    %2472 = vmatprep.subr.bf16.mxu0 0
    %2473 = vmatpush2.bf16.msra.mxu0 0
    %2474 = vmatprep.subr.bf16.mxu0 0
    %2475 = vmatpush2.bf16.msra.mxu0 0
    %2476 = vmatprep.subr.bf16.mxu0 0
    %2477 = vmatpush2.bf16.msra.mxu0 0
    %2478 = vmatprep.subr.bf16.mxu0 0
    %2479 = vmatpush2.bf16.msra.mxu0 0
    %2480 = vmatprep.subr.bf16.mxu0 0
    %2481 = vmatpush2.bf16.msra.mxu0 0
    %2482 = vmatprep.mubr.bf16.mxu0 0
    %2483 = vmatmul.mubr.bf16.gmra.mxu0 %v2449
    %v2484 = vpop.f32.mrf.mxu0
    %v2485 = vadd.f32 0.0, %v2484
    %v2486 = vpop.f32.mrf.mxu0
    %v2487 = vadd.f32 0.0, %v2486
    %v2488 = vpop.f32.mrf.mxu0
    %v2489 = vadd.f32 0.0, %v2488
    %v2490 = vpop.f32.mrf.mxu0
    %v2491 = vadd.f32 0.0, %v2490
    %2492 = vdwg.mxu0
    %2493 = vmatprep.subr.bf16.mxu0 %v746
    %2494 = vmatpush1.bf16.msra.mxu0 %v745
    %2495 = vmatprep.subr.bf16.mxu0 %v742
    %2496 = vmatpush1.bf16.msra.mxu0 %v741
    %2497 = vmatprep.subr.bf16.mxu0 %v738
    %2498 = vmatpush1.bf16.msra.mxu0 %v737
    %2499 = vmatprep.subr.bf16.mxu0 %v734
    %2500 = vmatpush1.bf16.msra.mxu0 %v733
    %2501 = vmatprep.subr.bf16.mxu0 %v730
    %2502 = vmatpush1.bf16.msra.mxu0 %v729
    %2503 = vmatprep.subr.bf16.mxu0 %v726
    %2504 = vmatpush1.bf16.msra.mxu0 %v725
    %2505 = vmatprep.subr.bf16.mxu0 %v722
    %2506 = vmatpush1.bf16.msra.mxu0 %v721
    %2507 = vmatprep.subr.bf16.mxu0 %v718
    %2508 = vmatpush1.bf16.msra.mxu0 %v717
    %2509 = vmatprep.subr.bf16.mxu0 0
    %2510 = vmatpush2.bf16.msra.mxu0 0
    %2511 = vmatprep.subr.bf16.mxu0 0
    %2512 = vmatpush2.bf16.msra.mxu0 0
    %2513 = vmatprep.subr.bf16.mxu0 0
    %2514 = vmatpush2.bf16.msra.mxu0 0
    %2515 = vmatprep.subr.bf16.mxu0 0
    %2516 = vmatpush2.bf16.msra.mxu0 0
    %2517 = vmatprep.subr.bf16.mxu0 0
    %2518 = vmatpush2.bf16.msra.mxu0 0
    %2519 = vmatprep.subr.bf16.mxu0 0
    %2520 = vmatpush2.bf16.msra.mxu0 0
    %2521 = vmatprep.subr.bf16.mxu0 0
    %2522 = vmatpush2.bf16.msra.mxu0 0
    %2523 = vmatprep.subr.bf16.mxu0 0
    %2524 = vmatpush2.bf16.msra.mxu0 0
    %2525 = vmatprep.mubr.bf16.mxu0 0
    %2526 = vmatmul.mubr.bf16.gmra.mxu0 %v2449
    %v2527 = vpop.f32.mrf.mxu0
    %v2528 = vadd.f32 0.0, %v2527
    %v2529 = vpop.f32.mrf.mxu0
    %v2530 = vadd.f32 0.0, %v2529
    %v2531 = vpop.f32.mrf.mxu0
    %v2532 = vadd.f32 0.0, %v2531
    %v2533 = vpop.f32.mrf.mxu0
    %v2534 = vadd.f32 0.0, %v2533
    %2535 = vdwg.mxu0
    %v2536 = vadd.f32 %v465, %v2485
    %v2537 = vadd.f32 %v467, %v2487
    %v2538 = vadd.f32 %v508, %v2528
    %v2539 = vadd.f32 %v510, %v2530
    %v2540 = vadd.f32 %v469, %v2489
    %v2541 = vadd.f32 %v471, %v2491
    %v2542 = vadd.f32 %v512, %v2532
    %v2543 = vadd.f32 %v514, %v2534
    %2544 = vmatprep.subr.bf16.mxu0 %v998
    %2545 = vmatpush1.bf16.msra.mxu0 %v997
    %2546 = vmatprep.subr.bf16.mxu0 %v994
    %2547 = vmatpush1.bf16.msra.mxu0 %v993
    %2548 = vmatprep.subr.bf16.mxu0 %v990
    %2549 = vmatpush1.bf16.msra.mxu0 %v989
    %2550 = vmatprep.subr.bf16.mxu0 %v986
    %2551 = vmatpush1.bf16.msra.mxu0 %v985
    %2552 = vmatprep.subr.bf16.mxu0 %v982
    %2553 = vmatpush1.bf16.msra.mxu0 %v981
    %2554 = vmatprep.subr.bf16.mxu0 %v978
    %2555 = vmatpush1.bf16.msra.mxu0 %v977
    %2556 = vmatprep.subr.bf16.mxu0 %v974
    %2557 = vmatpush1.bf16.msra.mxu0 %v973
    %2558 = vmatprep.subr.bf16.mxu0 %v970
    %2559 = vmatpush1.bf16.msra.mxu0 %v969
    %2560 = vmatprep.subr.bf16.mxu0 0
    %2561 = vmatpush2.bf16.msra.mxu0 0
    %2562 = vmatprep.subr.bf16.mxu0 0
    %2563 = vmatpush2.bf16.msra.mxu0 0
    %2564 = vmatprep.subr.bf16.mxu0 0
    %2565 = vmatpush2.bf16.msra.mxu0 0
    %2566 = vmatprep.subr.bf16.mxu0 0
    %2567 = vmatpush2.bf16.msra.mxu0 0
    %2568 = vmatprep.subr.bf16.mxu0 0
    %2569 = vmatpush2.bf16.msra.mxu0 0
    %2570 = vmatprep.subr.bf16.mxu0 0
    %2571 = vmatpush2.bf16.msra.mxu0 0
    %2572 = vmatprep.subr.bf16.mxu0 0
    %2573 = vmatpush2.bf16.msra.mxu0 0
    %2574 = vmatprep.subr.bf16.mxu0 0
    %2575 = vmatpush2.bf16.msra.mxu0 0
    %2576 = vmatprep.mubr.bf16.mxu0 0
    %2577 = vmatmul.mubr.bf16.gmra.mxu0 %v2320
    %v2578 = vpop.f32.mrf.mxu0
    %v2579 = vadd.f32 0.0, %v2578
    %v2580 = vpop.f32.mrf.mxu0
    %v2581 = vadd.f32 0.0, %v2580
    %v2582 = vpop.f32.mrf.mxu0
    %v2583 = vadd.f32 0.0, %v2582
    %v2584 = vpop.f32.mrf.mxu0
    %v2585 = vadd.f32 0.0, %v2584
    %2586 = vdwg.mxu0
    %2587 = vmatprep.subr.bf16.mxu0 %v1000
    %2588 = vmatpush1.bf16.msra.mxu0 %v999
    %2589 = vmatprep.subr.bf16.mxu0 %v996
    %2590 = vmatpush1.bf16.msra.mxu0 %v995
    %2591 = vmatprep.subr.bf16.mxu0 %v992
    %2592 = vmatpush1.bf16.msra.mxu0 %v991
    %2593 = vmatprep.subr.bf16.mxu0 %v988
    %2594 = vmatpush1.bf16.msra.mxu0 %v987
    %2595 = vmatprep.subr.bf16.mxu0 %v984
    %2596 = vmatpush1.bf16.msra.mxu0 %v983
    %2597 = vmatprep.subr.bf16.mxu0 %v980
    %2598 = vmatpush1.bf16.msra.mxu0 %v979
    %2599 = vmatprep.subr.bf16.mxu0 %v976
    %2600 = vmatpush1.bf16.msra.mxu0 %v975
    %2601 = vmatprep.subr.bf16.mxu0 %v972
    %2602 = vmatpush1.bf16.msra.mxu0 %v971
    %2603 = vmatprep.subr.bf16.mxu0 0
    %2604 = vmatpush2.bf16.msra.mxu0 0
    %2605 = vmatprep.subr.bf16.mxu0 0
    %2606 = vmatpush2.bf16.msra.mxu0 0
    %2607 = vmatprep.subr.bf16.mxu0 0
    %2608 = vmatpush2.bf16.msra.mxu0 0
    %2609 = vmatprep.subr.bf16.mxu0 0
    %2610 = vmatpush2.bf16.msra.mxu0 0
    %2611 = vmatprep.subr.bf16.mxu0 0
    %2612 = vmatpush2.bf16.msra.mxu0 0
    %2613 = vmatprep.subr.bf16.mxu0 0
    %2614 = vmatpush2.bf16.msra.mxu0 0
    %2615 = vmatprep.subr.bf16.mxu0 0
    %2616 = vmatpush2.bf16.msra.mxu0 0
    %2617 = vmatprep.subr.bf16.mxu0 0
    %2618 = vmatpush2.bf16.msra.mxu0 0
    %2619 = vmatprep.mubr.bf16.mxu0 0
    %2620 = vmatmul.mubr.bf16.gmra.mxu0 %v2320
    %v2621 = vpop.f32.mrf.mxu0
    %v2622 = vadd.f32 0.0, %v2621
    %v2623 = vpop.f32.mrf.mxu0
    %v2624 = vadd.f32 0.0, %v2623
    %v2625 = vpop.f32.mrf.mxu0
    %v2626 = vadd.f32 0.0, %v2625
    %v2627 = vpop.f32.mrf.mxu0
    %v2628 = vadd.f32 0.0, %v2627
    %2629 = vdwg.mxu0
    %v2630 = vadd.f32 %v2536, %v2579
    %v2631 = vadd.f32 %v2537, %v2581
    %v2632 = vadd.f32 %v2538, %v2622
    %v2633 = vadd.f32 %v2539, %v2624
    %v2634 = vadd.f32 %v2540, %v2583
    %v2635 = vadd.f32 %v2541, %v2585
    %v2636 = vadd.f32 %v2542, %v2626
    %v2637 = vadd.f32 %v2543, %v2628
    %v2638 = vxor.u32 %v2630, 2147483648
    %v2639 = vxor.u32 %v2634, 2147483648
    %v2640 = vmul.f32 %v2638, 1.442695
    %v2641 = vpow.pop %v2640
    %v2642 = vmul.f32 %v2639, 1.442695
    %v2643 = vpow.pop %v2642
    %v2644 = vadd.f32 %v2641, 1.0
    %v2645 = vadd.f32 %v2643, 1.0
    %v2646 = vrcp.pop %v2644
    %v2647 = vmul.f32 1.0, %v2646
    %v2648 = vrcp.pop %v2645
    %v2649 = vmul.f32 1.0, %v2648
    %v2650 = vxor.u32 %v2631, 2147483648
    %v2651 = vxor.u32 %v2635, 2147483648
    %v2652 = vmul.f32 %v2650, 1.442695
    %v2653 = vpow.pop %v2652
    %v2654 = vmul.f32 %v2651, 1.442695
    %v2655 = vpow.pop %v2654
    %v2656 = vadd.f32 %v2653, 1.0
    %v2657 = vadd.f32 %v2655, 1.0
    %v2658 = vrcp.pop %v2656
    %v2659 = vmul.f32 1.0, %v2658
    %v2660 = vrcp.pop %v2657
    %v2661 = vmul.f32 1.0, %v2660
    %v2662 = vtanh.pop %v2632
    %v2663 = vtanh.pop %v2636
    %v2664 = vxor.u32 %v2633, 2147483648
    %v2665 = vxor.u32 %v2637, 2147483648
    %v2666 = vmul.f32 %v2664, 1.442695
    %v2667 = vpow.pop %v2666
    %v2668 = vmul.f32 %v2665, 1.442695
    %v2669 = vpow.pop %v2668
    %v2670 = vadd.f32 %v2667, 1.0
    %v2671 = vadd.f32 %v2669, 1.0
    %v2672 = vrcp.pop %v2670
    %v2673 = vmul.f32 1.0, %v2672
    %v2674 = vrcp.pop %v2671
    %v2675 = vmul.f32 1.0, %v2674
    %v2676 = vmul.f32 %v2659, %v2314
    %v2677 = vmul.f32 %v2661, %v2315
    %v2678 = vmul.f32 %v2647, %v2662
    %v2679 = vmul.f32 %v2649, %v2663
    %v2680 = vadd.f32 %v2676, %v2678
    %v2681 = vadd.f32 %v2677, %v2679
    %v2682 = vtanh.pop %v2680
    %v2683 = vtanh.pop %v2681
    %v2684 = vmul.f32 %v2673, %v2682
    %v2685 = vmul.f32 %v2675, %v2683
    %v2686 = vpack.c.bf16 %v2685, %v2684
    %2687 = vmatprep.subr.bf16.mxu0 0
    %2688 = vmatpush1.bf16.msra.mxu0 %v1215
    %2689 = vmatprep.subr.bf16.mxu0 0
    %2690 = vmatpush1.bf16.msra.mxu0 %v1214
    %2691 = vmatprep.subr.bf16.mxu0 0
    %2692 = vmatpush1.bf16.msra.mxu0 %v1213
    %2693 = vmatprep.subr.bf16.mxu0 0
    %2694 = vmatpush1.bf16.msra.mxu0 %v1212
    %2695 = vmatprep.subr.bf16.mxu0 0
    %2696 = vmatpush1.bf16.msra.mxu0 %v1211
    %2697 = vmatprep.subr.bf16.mxu0 0
    %2698 = vmatpush1.bf16.msra.mxu0 %v1210
    %2699 = vmatprep.subr.bf16.mxu0 0
    %2700 = vmatpush1.bf16.msra.mxu0 %v1209
    %2701 = vmatprep.subr.bf16.mxu0 0
    %2702 = vmatpush1.bf16.msra.mxu0 %v1208
    %2703 = vmatprep.subr.bf16.mxu0 0
    %2704 = vmatpush2.bf16.msra.mxu0 0
    %2705 = vmatprep.subr.bf16.mxu0 0
    %2706 = vmatpush2.bf16.msra.mxu0 0
    %2707 = vmatprep.subr.bf16.mxu0 0
    %2708 = vmatpush2.bf16.msra.mxu0 0
    %2709 = vmatprep.subr.bf16.mxu0 0
    %2710 = vmatpush2.bf16.msra.mxu0 0
    %2711 = vmatprep.subr.bf16.mxu0 0
    %2712 = vmatpush2.bf16.msra.mxu0 0
    %2713 = vmatprep.subr.bf16.mxu0 0
    %2714 = vmatpush2.bf16.msra.mxu0 0
    %2715 = vmatprep.subr.bf16.mxu0 0
    %2716 = vmatpush2.bf16.msra.mxu0 0
    %2717 = vmatprep.subr.bf16.mxu0 0
    %2718 = vmatpush2.bf16.msra.mxu0 0
    %2719 = vmatprep.mubr.bf16.mxu0 0
    %2720 = vmatmul.mubr.bf16.gmra.mxu0 %v2686
    %v2721 = vpop.f32.mrf.mxu0
    %v2722 = vadd.f32 %v521, %v2721
    %v2723 = vpop.f32.mrf.mxu0
    %v2724 = vpop.f32.mrf.mxu0
    %v2725 = vadd.f32 %v521, %v2724
    %v2726 = vpop.f32.mrf.mxu0
    %2727 = vdwg.mxu0
    %s2728 = scalar_lea.vmem [#allocation13], 64
    %2729 = vst [vmem:[%s2728] sm:$0xff] %v2722
    %2730 = vst [vmem:[%s2728 + $0x8] sm:$0xff] %v2725
    %2731 = vmax.xlane.f32.xlu0 %v2722
    %v2732 = vpop.xlane.xlu0 %2731
    %2733 = vmax.xlane.f32.xlu0 %v2725
    %v2734 = vpop.xlane.xlu0 %2733
    %vm2735 = vcmp.eq.f32.partialorder %v2722, %v2732
    %vm2736 = vcmp.eq.f32.partialorder %v2725, %v2734
    %v2737 = vsel %vm2735, %v524, 128
    %v2738 = vsel %vm2736, %v524, 128
    %v2739 = vand.u32 %v2737, 65535
    %v2740 = vshra.s32 %v2737, 16
    %v2741 = vcvt.s32.f32 %v2739
    %v2742 = vcvt.s32.f32 %v2740
    %2743 = vmin.xlane.f32.xlu0 %v2742
    %v2744 = vpop.xlane.xlu0 %2743
    %vm2745 = vcmp.eq.f32.partialorder %v2742, %v2744
    %v2746 = vsel %vm2745, %v2741, inf
    %2747 = vmin.xlane.f32.xlu0 %v2746
    %v2748 = vpop.xlane.xlu0 %2747
    %v2749 = vcvt.f32.s32 %v2748
    %v2750 = vcvt.f32.s32 %v2744
    %v2751 = vshll.u32 %v2750, 16
    %v2752 = vadd.s32 %v2751, %v2749
    %v2753 = vand.u32 %v2738, 65535
    %v2754 = vshra.s32 %v2738, 16
    %v2755 = vcvt.s32.f32 %v2753
    %v2756 = vcvt.s32.f32 %v2754
    %2757 = vmin.xlane.f32.xlu0 %v2756
    %v2758 = vpop.xlane.xlu0 %2757
    %vm2759 = vcmp.eq.f32.partialorder %v2756, %v2758
    %v2760 = vsel %vm2759, %v2755, inf
    %2761 = vmin.xlane.f32.xlu0 %v2760
    %v2762 = vpop.xlane.xlu0 %2761
    %v2763 = vcvt.f32.s32 %v2762
    %v2764 = vcvt.f32.s32 %v2758
    %v2765 = vshll.u32 %v2764, 16
    %v2766 = vadd.s32 %v2765, %v2763
    %vm2767 = vcmp.eq.s32.totalorder %v524, %v2752
    %vm2768 = vcmp.eq.s32.totalorder %v524, %v2766
    %v2769 = vsel %vm2767, 1, 0
    %v2770 = vsel %vm2768, 1, 0
    %v2771 = vcvt.s32.f32 %v2769
    %v2772 = vcvt.s32.f32 %v2770
    %v2773 = vpack.c.bf16 %v2772, %v2771
    %2774 = vmatprep.subr.bf16.mxu0 0
    %2775 = vmatpush1.bf16.msra.mxu0 %v568
    %2776 = vmatprep.subr.bf16.mxu0 0
    %2777 = vmatpush1.bf16.msra.mxu0 %v567
    %2778 = vmatprep.subr.bf16.mxu0 0
    %2779 = vmatpush1.bf16.msra.mxu0 %v566
    %2780 = vmatprep.subr.bf16.mxu0 0
    %2781 = vmatpush1.bf16.msra.mxu0 %v565
    %2782 = vmatprep.subr.bf16.mxu0 0
    %2783 = vmatpush1.bf16.msra.mxu0 %v564
    %2784 = vmatprep.subr.bf16.mxu0 0
    %2785 = vmatpush1.bf16.msra.mxu0 %v563
    %2786 = vmatprep.subr.bf16.mxu0 0
    %2787 = vmatpush1.bf16.msra.mxu0 %v562
    %2788 = vmatprep.subr.bf16.mxu0 0
    %2789 = vmatpush1.bf16.msra.mxu0 %v561
    %2790 = vmatprep.subr.bf16.mxu0 0
    %2791 = vmatpush2.bf16.msra.mxu0 0
    %2792 = vmatprep.subr.bf16.mxu0 0
    %2793 = vmatpush2.bf16.msra.mxu0 0
    %2794 = vmatprep.subr.bf16.mxu0 0
    %2795 = vmatpush2.bf16.msra.mxu0 0
    %2796 = vmatprep.subr.bf16.mxu0 0
    %2797 = vmatpush2.bf16.msra.mxu0 0
    %2798 = vmatprep.subr.bf16.mxu0 0
    %2799 = vmatpush2.bf16.msra.mxu0 0
    %2800 = vmatprep.subr.bf16.mxu0 0
    %2801 = vmatpush2.bf16.msra.mxu0 0
    %2802 = vmatprep.subr.bf16.mxu0 0
    %2803 = vmatpush2.bf16.msra.mxu0 0
    %2804 = vmatprep.subr.bf16.mxu0 0
    %2805 = vmatpush2.bf16.msra.mxu0 0
    %2806 = vmatprep.mubr.bf16.mxu0 0
    %2807 = vmatmul.mubr.bf16.gmra.mxu0 %v2773
    %v2808 = vpop.f32.mrf.mxu0
    %v2809 = vadd.f32 0.0, %v2808
    %v2810 = vpop.f32.mrf.mxu0
    %v2811 = vpop.f32.mrf.mxu0
    %v2812 = vadd.f32 0.0, %v2811
    %v2813 = vpop.f32.mrf.mxu0
    %2814 = vdwg.mxu0
    %v2815 = vpack.c.bf16 %v2812, %v2809
    %2816 = vmatprep.subr.bf16.mxu0 %v744
    %2817 = vmatpush1.bf16.msra.mxu0 %v743
    %2818 = vmatprep.subr.bf16.mxu0 %v740
    %2819 = vmatpush1.bf16.msra.mxu0 %v739
    %2820 = vmatprep.subr.bf16.mxu0 %v736
    %2821 = vmatpush1.bf16.msra.mxu0 %v735
    %2822 = vmatprep.subr.bf16.mxu0 %v732
    %2823 = vmatpush1.bf16.msra.mxu0 %v731
    %2824 = vmatprep.subr.bf16.mxu0 %v728
    %2825 = vmatpush1.bf16.msra.mxu0 %v727
    %2826 = vmatprep.subr.bf16.mxu0 %v724
    %2827 = vmatpush1.bf16.msra.mxu0 %v723
    %2828 = vmatprep.subr.bf16.mxu0 %v720
    %2829 = vmatpush1.bf16.msra.mxu0 %v719
    %2830 = vmatprep.subr.bf16.mxu0 %v716
    %2831 = vmatpush1.bf16.msra.mxu0 %v715
    %2832 = vmatprep.subr.bf16.mxu0 0
    %2833 = vmatpush2.bf16.msra.mxu0 0
    %2834 = vmatprep.subr.bf16.mxu0 0
    %2835 = vmatpush2.bf16.msra.mxu0 0
    %2836 = vmatprep.subr.bf16.mxu0 0
    %2837 = vmatpush2.bf16.msra.mxu0 0
    %2838 = vmatprep.subr.bf16.mxu0 0
    %2839 = vmatpush2.bf16.msra.mxu0 0
    %2840 = vmatprep.subr.bf16.mxu0 0
    %2841 = vmatpush2.bf16.msra.mxu0 0
    %2842 = vmatprep.subr.bf16.mxu0 0
    %2843 = vmatpush2.bf16.msra.mxu0 0
    %2844 = vmatprep.subr.bf16.mxu0 0
    %2845 = vmatpush2.bf16.msra.mxu0 0
    %2846 = vmatprep.subr.bf16.mxu0 0
    %2847 = vmatpush2.bf16.msra.mxu0 0
    %2848 = vmatprep.mubr.bf16.mxu0 0
    %2849 = vmatmul.mubr.bf16.gmra.mxu0 %v2815
    %v2850 = vpop.f32.mrf.mxu0
    %v2851 = vadd.f32 0.0, %v2850
    %v2852 = vpop.f32.mrf.mxu0
    %v2853 = vadd.f32 0.0, %v2852
    %v2854 = vpop.f32.mrf.mxu0
    %v2855 = vadd.f32 0.0, %v2854
    %v2856 = vpop.f32.mrf.mxu0
    %v2857 = vadd.f32 0.0, %v2856
    %2858 = vdwg.mxu0
    %2859 = vmatprep.subr.bf16.mxu0 %v746
    %2860 = vmatpush1.bf16.msra.mxu0 %v745
    %2861 = vmatprep.subr.bf16.mxu0 %v742
    %2862 = vmatpush1.bf16.msra.mxu0 %v741
    %2863 = vmatprep.subr.bf16.mxu0 %v738
    %2864 = vmatpush1.bf16.msra.mxu0 %v737
    %2865 = vmatprep.subr.bf16.mxu0 %v734
    %2866 = vmatpush1.bf16.msra.mxu0 %v733
    %2867 = vmatprep.subr.bf16.mxu0 %v730
    %2868 = vmatpush1.bf16.msra.mxu0 %v729
    %2869 = vmatprep.subr.bf16.mxu0 %v726
    %2870 = vmatpush1.bf16.msra.mxu0 %v725
    %2871 = vmatprep.subr.bf16.mxu0 %v722
    %2872 = vmatpush1.bf16.msra.mxu0 %v721
    %2873 = vmatprep.subr.bf16.mxu0 %v718
    %2874 = vmatpush1.bf16.msra.mxu0 %v717
    %2875 = vmatprep.subr.bf16.mxu0 0
    %2876 = vmatpush2.bf16.msra.mxu0 0
    %2877 = vmatprep.subr.bf16.mxu0 0
    %2878 = vmatpush2.bf16.msra.mxu0 0
    %2879 = vmatprep.subr.bf16.mxu0 0
    %2880 = vmatpush2.bf16.msra.mxu0 0
    %2881 = vmatprep.subr.bf16.mxu0 0
    %2882 = vmatpush2.bf16.msra.mxu0 0
    %2883 = vmatprep.subr.bf16.mxu0 0
    %2884 = vmatpush2.bf16.msra.mxu0 0
    %2885 = vmatprep.subr.bf16.mxu0 0
    %2886 = vmatpush2.bf16.msra.mxu0 0
    %2887 = vmatprep.subr.bf16.mxu0 0
    %2888 = vmatpush2.bf16.msra.mxu0 0
    %2889 = vmatprep.subr.bf16.mxu0 0
    %2890 = vmatpush2.bf16.msra.mxu0 0
    %2891 = vmatprep.mubr.bf16.mxu0 0
    %2892 = vmatmul.mubr.bf16.gmra.mxu0 %v2815
    %v2893 = vpop.f32.mrf.mxu0
    %v2894 = vadd.f32 0.0, %v2893
    %v2895 = vpop.f32.mrf.mxu0
    %v2896 = vadd.f32 0.0, %v2895
    %v2897 = vpop.f32.mrf.mxu0
    %v2898 = vadd.f32 0.0, %v2897
    %v2899 = vpop.f32.mrf.mxu0
    %v2900 = vadd.f32 0.0, %v2899
    %2901 = vdwg.mxu0
    %v2902 = vadd.f32 %v465, %v2851
    %v2903 = vadd.f32 %v467, %v2853
    %v2904 = vadd.f32 %v508, %v2894
    %v2905 = vadd.f32 %v510, %v2896
    %v2906 = vadd.f32 %v469, %v2855
    %v2907 = vadd.f32 %v471, %v2857
    %v2908 = vadd.f32 %v512, %v2898
    %v2909 = vadd.f32 %v514, %v2900
    %2910 = vmatprep.subr.bf16.mxu0 %v998
    %2911 = vmatpush1.bf16.msra.mxu0 %v997
    %2912 = vmatprep.subr.bf16.mxu0 %v994
    %2913 = vmatpush1.bf16.msra.mxu0 %v993
    %2914 = vmatprep.subr.bf16.mxu0 %v990
    %2915 = vmatpush1.bf16.msra.mxu0 %v989
    %2916 = vmatprep.subr.bf16.mxu0 %v986
    %2917 = vmatpush1.bf16.msra.mxu0 %v985
    %2918 = vmatprep.subr.bf16.mxu0 %v982
    %2919 = vmatpush1.bf16.msra.mxu0 %v981
    %2920 = vmatprep.subr.bf16.mxu0 %v978
    %2921 = vmatpush1.bf16.msra.mxu0 %v977
    %2922 = vmatprep.subr.bf16.mxu0 %v974
    %2923 = vmatpush1.bf16.msra.mxu0 %v973
    %2924 = vmatprep.subr.bf16.mxu0 %v970
    %2925 = vmatpush1.bf16.msra.mxu0 %v969
    %2926 = vmatprep.subr.bf16.mxu0 0
    %2927 = vmatpush2.bf16.msra.mxu0 0
    %2928 = vmatprep.subr.bf16.mxu0 0
    %2929 = vmatpush2.bf16.msra.mxu0 0
    %2930 = vmatprep.subr.bf16.mxu0 0
    %2931 = vmatpush2.bf16.msra.mxu0 0
    %2932 = vmatprep.subr.bf16.mxu0 0
    %2933 = vmatpush2.bf16.msra.mxu0 0
    %2934 = vmatprep.subr.bf16.mxu0 0
    %2935 = vmatpush2.bf16.msra.mxu0 0
    %2936 = vmatprep.subr.bf16.mxu0 0
    %2937 = vmatpush2.bf16.msra.mxu0 0
    %2938 = vmatprep.subr.bf16.mxu0 0
    %2939 = vmatpush2.bf16.msra.mxu0 0
    %2940 = vmatprep.subr.bf16.mxu0 0
    %2941 = vmatpush2.bf16.msra.mxu0 0
    %2942 = vmatprep.mubr.bf16.mxu0 0
    %2943 = vmatmul.mubr.bf16.gmra.mxu0 %v2686
    %v2944 = vpop.f32.mrf.mxu0
    %v2945 = vadd.f32 0.0, %v2944
    %v2946 = vpop.f32.mrf.mxu0
    %v2947 = vadd.f32 0.0, %v2946
    %v2948 = vpop.f32.mrf.mxu0
    %v2949 = vadd.f32 0.0, %v2948
    %v2950 = vpop.f32.mrf.mxu0
    %v2951 = vadd.f32 0.0, %v2950
    %2952 = vdwg.mxu0
    %2953 = vmatprep.subr.bf16.mxu0 %v1000
    %2954 = vmatpush1.bf16.msra.mxu0 %v999
    %2955 = vmatprep.subr.bf16.mxu0 %v996
    %2956 = vmatpush1.bf16.msra.mxu0 %v995
    %2957 = vmatprep.subr.bf16.mxu0 %v992
    %2958 = vmatpush1.bf16.msra.mxu0 %v991
    %2959 = vmatprep.subr.bf16.mxu0 %v988
    %2960 = vmatpush1.bf16.msra.mxu0 %v987
    %2961 = vmatprep.subr.bf16.mxu0 %v984
    %2962 = vmatpush1.bf16.msra.mxu0 %v983
    %2963 = vmatprep.subr.bf16.mxu0 %v980
    %2964 = vmatpush1.bf16.msra.mxu0 %v979
    %2965 = vmatprep.subr.bf16.mxu0 %v976
    %2966 = vmatpush1.bf16.msra.mxu0 %v975
    %2967 = vmatprep.subr.bf16.mxu0 %v972
    %2968 = vmatpush1.bf16.msra.mxu0 %v971
    %2969 = vmatprep.subr.bf16.mxu0 0
    %2970 = vmatpush2.bf16.msra.mxu0 0
    %2971 = vmatprep.subr.bf16.mxu0 0
    %2972 = vmatpush2.bf16.msra.mxu0 0
    %2973 = vmatprep.subr.bf16.mxu0 0
    %2974 = vmatpush2.bf16.msra.mxu0 0
    %2975 = vmatprep.subr.bf16.mxu0 0
    %2976 = vmatpush2.bf16.msra.mxu0 0
    %2977 = vmatprep.subr.bf16.mxu0 0
    %2978 = vmatpush2.bf16.msra.mxu0 0
    %2979 = vmatprep.subr.bf16.mxu0 0
    %2980 = vmatpush2.bf16.msra.mxu0 0
    %2981 = vmatprep.subr.bf16.mxu0 0
    %2982 = vmatpush2.bf16.msra.mxu0 0
    %2983 = vmatprep.subr.bf16.mxu0 0
    %2984 = vmatpush2.bf16.msra.mxu0 0
    %2985 = vmatprep.mubr.bf16.mxu0 0
    %2986 = vmatmul.mubr.bf16.gmra.mxu0 %v2686
    %v2987 = vpop.f32.mrf.mxu0
    %v2988 = vadd.f32 0.0, %v2987
    %v2989 = vpop.f32.mrf.mxu0
    %v2990 = vadd.f32 0.0, %v2989
    %v2991 = vpop.f32.mrf.mxu0
    %v2992 = vadd.f32 0.0, %v2991
    %v2993 = vpop.f32.mrf.mxu0
    %v2994 = vadd.f32 0.0, %v2993
    %2995 = vdwg.mxu0
    %v2996 = vadd.f32 %v2902, %v2945
    %v2997 = vadd.f32 %v2903, %v2947
    %v2998 = vadd.f32 %v2904, %v2988
    %v2999 = vadd.f32 %v2905, %v2990
    %v3000 = vadd.f32 %v2906, %v2949
    %v3001 = vadd.f32 %v2907, %v2951
    %v3002 = vadd.f32 %v2908, %v2992
    %v3003 = vadd.f32 %v2909, %v2994
    %v3004 = vxor.u32 %v2996, 2147483648
    %v3005 = vxor.u32 %v3000, 2147483648
    %v3006 = vmul.f32 %v3004, 1.442695
    %v3007 = vpow.pop %v3006
    %v3008 = vmul.f32 %v3005, 1.442695
    %v3009 = vpow.pop %v3008
    %v3010 = vadd.f32 %v3007, 1.0
    %v3011 = vadd.f32 %v3009, 1.0
    %v3012 = vrcp.pop %v3010
    %v3013 = vmul.f32 1.0, %v3012
    %v3014 = vrcp.pop %v3011
    %v3015 = vmul.f32 1.0, %v3014
    %v3016 = vxor.u32 %v2997, 2147483648
    %v3017 = vxor.u32 %v3001, 2147483648
    %v3018 = vmul.f32 %v3016, 1.442695
    %v3019 = vpow.pop %v3018
    %v3020 = vmul.f32 %v3017, 1.442695
    %v3021 = vpow.pop %v3020
    %v3022 = vadd.f32 %v3019, 1.0
    %v3023 = vadd.f32 %v3021, 1.0
    %v3024 = vrcp.pop %v3022
    %v3025 = vmul.f32 1.0, %v3024
    %v3026 = vrcp.pop %v3023
    %v3027 = vmul.f32 1.0, %v3026
    %v3028 = vtanh.pop %v2998
    %v3029 = vtanh.pop %v3002
    %v3030 = vxor.u32 %v2999, 2147483648
    %v3031 = vxor.u32 %v3003, 2147483648
    %v3032 = vmul.f32 %v3030, 1.442695
    %v3033 = vpow.pop %v3032
    %v3034 = vmul.f32 %v3031, 1.442695
    %v3035 = vpow.pop %v3034
    %v3036 = vadd.f32 %v3033, 1.0
    %v3037 = vadd.f32 %v3035, 1.0
    %v3038 = vrcp.pop %v3036
    %v3039 = vmul.f32 1.0, %v3038
    %v3040 = vrcp.pop %v3037
    %v3041 = vmul.f32 1.0, %v3040
    %v3042 = vmul.f32 %v3025, %v2680
    %v3043 = vmul.f32 %v3027, %v2681
    %v3044 = vmul.f32 %v3013, %v3028
    %v3045 = vmul.f32 %v3015, %v3029
    %v3046 = vadd.f32 %v3042, %v3044
    %v3047 = vadd.f32 %v3043, %v3045
    %v3048 = vtanh.pop %v3046
    %v3049 = vtanh.pop %v3047
    %v3050 = vmul.f32 %v3039, %v3048
    %v3051 = vmul.f32 %v3041, %v3049
    %v3052 = vpack.c.bf16 %v3051, %v3050
    %3053 = vmatprep.subr.bf16.mxu0 0
    %3054 = vmatpush1.bf16.msra.mxu0 %v1215
    %3055 = vmatprep.subr.bf16.mxu0 0
    %3056 = vmatpush1.bf16.msra.mxu0 %v1214
    %3057 = vmatprep.subr.bf16.mxu0 0
    %3058 = vmatpush1.bf16.msra.mxu0 %v1213
    %3059 = vmatprep.subr.bf16.mxu0 0
    %3060 = vmatpush1.bf16.msra.mxu0 %v1212
    %3061 = vmatprep.subr.bf16.mxu0 0
    %3062 = vmatpush1.bf16.msra.mxu0 %v1211
    %3063 = vmatprep.subr.bf16.mxu0 0
    %3064 = vmatpush1.bf16.msra.mxu0 %v1210
    %3065 = vmatprep.subr.bf16.mxu0 0
    %3066 = vmatpush1.bf16.msra.mxu0 %v1209
    %3067 = vmatprep.subr.bf16.mxu0 0
    %3068 = vmatpush1.bf16.msra.mxu0 %v1208
    %3069 = vmatprep.subr.bf16.mxu0 0
    %3070 = vmatpush2.bf16.msra.mxu0 0
    %3071 = vmatprep.subr.bf16.mxu0 0
    %3072 = vmatpush2.bf16.msra.mxu0 0
    %3073 = vmatprep.subr.bf16.mxu0 0
    %3074 = vmatpush2.bf16.msra.mxu0 0
    %3075 = vmatprep.subr.bf16.mxu0 0
    %3076 = vmatpush2.bf16.msra.mxu0 0
    %3077 = vmatprep.subr.bf16.mxu0 0
    %3078 = vmatpush2.bf16.msra.mxu0 0
    %3079 = vmatprep.subr.bf16.mxu0 0
    %3080 = vmatpush2.bf16.msra.mxu0 0
    %3081 = vmatprep.subr.bf16.mxu0 0
    %3082 = vmatpush2.bf16.msra.mxu0 0
    %3083 = vmatprep.subr.bf16.mxu0 0
    %3084 = vmatpush2.bf16.msra.mxu0 0
    %3085 = vmatprep.mubr.bf16.mxu0 0
    %3086 = vmatmul.mubr.bf16.gmra.mxu0 %v3052
    %v3087 = vpop.f32.mrf.mxu0
    %v3088 = vadd.f32 %v521, %v3087
    %v3089 = vpop.f32.mrf.mxu0
    %v3090 = vpop.f32.mrf.mxu0
    %v3091 = vadd.f32 %v521, %v3090
    %v3092 = vpop.f32.mrf.mxu0
    %3093 = vdwg.mxu0
    %s3094 = scalar_lea.vmem [#allocation13], 80
    %3095 = vst [vmem:[%s3094] sm:$0xff] %v3088
    %3096 = vst [vmem:[%s3094 + $0x8] sm:$0xff] %v3091
    %3097 = vmax.xlane.f32.xlu0 %v3088
    %v3098 = vpop.xlane.xlu0 %3097
    %3099 = vmax.xlane.f32.xlu0 %v3091
    %v3100 = vpop.xlane.xlu0 %3099
    %vm3101 = vcmp.eq.f32.partialorder %v3088, %v3098
    %vm3102 = vcmp.eq.f32.partialorder %v3091, %v3100
    %v3103 = vsel %vm3101, %v524, 128
    %v3104 = vsel %vm3102, %v524, 128
    %v3105 = vand.u32 %v3103, 65535
    %v3106 = vshra.s32 %v3103, 16
    %v3107 = vcvt.s32.f32 %v3105
    %v3108 = vcvt.s32.f32 %v3106
    %3109 = vmin.xlane.f32.xlu0 %v3108
    %v3110 = vpop.xlane.xlu0 %3109
    %vm3111 = vcmp.eq.f32.partialorder %v3108, %v3110
    %v3112 = vsel %vm3111, %v3107, inf
    %3113 = vmin.xlane.f32.xlu0 %v3112
    %v3114 = vpop.xlane.xlu0 %3113
    %v3115 = vcvt.f32.s32 %v3114
    %v3116 = vcvt.f32.s32 %v3110
    %v3117 = vshll.u32 %v3116, 16
    %v3118 = vadd.s32 %v3117, %v3115
    %v3119 = vand.u32 %v3104, 65535
    %v3120 = vshra.s32 %v3104, 16
    %v3121 = vcvt.s32.f32 %v3119
    %v3122 = vcvt.s32.f32 %v3120
    %3123 = vmin.xlane.f32.xlu0 %v3122
    %v3124 = vpop.xlane.xlu0 %3123
    %vm3125 = vcmp.eq.f32.partialorder %v3122, %v3124
    %v3126 = vsel %vm3125, %v3121, inf
    %3127 = vmin.xlane.f32.xlu0 %v3126
    %v3128 = vpop.xlane.xlu0 %3127
    %v3129 = vcvt.f32.s32 %v3128
    %v3130 = vcvt.f32.s32 %v3124
    %v3131 = vshll.u32 %v3130, 16
    %v3132 = vadd.s32 %v3131, %v3129
    %vm3133 = vcmp.eq.s32.totalorder %v524, %v3118
    %vm3134 = vcmp.eq.s32.totalorder %v524, %v3132
    %v3135 = vsel %vm3133, 1, 0
    %v3136 = vsel %vm3134, 1, 0
    %v3137 = vcvt.s32.f32 %v3135
    %v3138 = vcvt.s32.f32 %v3136
    %v3139 = vpack.c.bf16 %v3138, %v3137
    %3140 = vmatprep.subr.bf16.mxu0 0
    %3141 = vmatpush1.bf16.msra.mxu0 %v568
    %3142 = vmatprep.subr.bf16.mxu0 0
    %3143 = vmatpush1.bf16.msra.mxu0 %v567
    %3144 = vmatprep.subr.bf16.mxu0 0
    %3145 = vmatpush1.bf16.msra.mxu0 %v566
    %3146 = vmatprep.subr.bf16.mxu0 0
    %3147 = vmatpush1.bf16.msra.mxu0 %v565
    %3148 = vmatprep.subr.bf16.mxu0 0
    %3149 = vmatpush1.bf16.msra.mxu0 %v564
    %3150 = vmatprep.subr.bf16.mxu0 0
    %3151 = vmatpush1.bf16.msra.mxu0 %v563
    %3152 = vmatprep.subr.bf16.mxu0 0
    %3153 = vmatpush1.bf16.msra.mxu0 %v562
    %3154 = vmatprep.subr.bf16.mxu0 0
    %3155 = vmatpush1.bf16.msra.mxu0 %v561
    %3156 = vmatprep.subr.bf16.mxu0 0
    %3157 = vmatpush2.bf16.msra.mxu0 0
    %3158 = vmatprep.subr.bf16.mxu0 0
    %3159 = vmatpush2.bf16.msra.mxu0 0
    %3160 = vmatprep.subr.bf16.mxu0 0
    %3161 = vmatpush2.bf16.msra.mxu0 0
    %3162 = vmatprep.subr.bf16.mxu0 0
    %3163 = vmatpush2.bf16.msra.mxu0 0
    %3164 = vmatprep.subr.bf16.mxu0 0
    %3165 = vmatpush2.bf16.msra.mxu0 0
    %3166 = vmatprep.subr.bf16.mxu0 0
    %3167 = vmatpush2.bf16.msra.mxu0 0
    %3168 = vmatprep.subr.bf16.mxu0 0
    %3169 = vmatpush2.bf16.msra.mxu0 0
    %3170 = vmatprep.subr.bf16.mxu0 0
    %3171 = vmatpush2.bf16.msra.mxu0 0
    %3172 = vmatprep.mubr.bf16.mxu0 0
    %3173 = vmatmul.mubr.bf16.gmra.mxu0 %v3139
    %v3174 = vpop.f32.mrf.mxu0
    %v3175 = vadd.f32 0.0, %v3174
    %v3176 = vpop.f32.mrf.mxu0
    %v3177 = vpop.f32.mrf.mxu0
    %v3178 = vadd.f32 0.0, %v3177
    %v3179 = vpop.f32.mrf.mxu0
    %3180 = vdwg.mxu0
    %v3181 = vpack.c.bf16 %v3178, %v3175
    %3182 = vmatprep.subr.bf16.mxu0 %v744
    %3183 = vmatpush1.bf16.msra.mxu0 %v743
    %3184 = vmatprep.subr.bf16.mxu0 %v740
    %3185 = vmatpush1.bf16.msra.mxu0 %v739
    %3186 = vmatprep.subr.bf16.mxu0 %v736
    %3187 = vmatpush1.bf16.msra.mxu0 %v735
    %3188 = vmatprep.subr.bf16.mxu0 %v732
    %3189 = vmatpush1.bf16.msra.mxu0 %v731
    %3190 = vmatprep.subr.bf16.mxu0 %v728
    %3191 = vmatpush1.bf16.msra.mxu0 %v727
    %3192 = vmatprep.subr.bf16.mxu0 %v724
    %3193 = vmatpush1.bf16.msra.mxu0 %v723
    %3194 = vmatprep.subr.bf16.mxu0 %v720
    %3195 = vmatpush1.bf16.msra.mxu0 %v719
    %3196 = vmatprep.subr.bf16.mxu0 %v716
    %3197 = vmatpush1.bf16.msra.mxu0 %v715
    %3198 = vmatprep.subr.bf16.mxu0 0
    %3199 = vmatpush2.bf16.msra.mxu0 0
    %3200 = vmatprep.subr.bf16.mxu0 0
    %3201 = vmatpush2.bf16.msra.mxu0 0
    %3202 = vmatprep.subr.bf16.mxu0 0
    %3203 = vmatpush2.bf16.msra.mxu0 0
    %3204 = vmatprep.subr.bf16.mxu0 0
    %3205 = vmatpush2.bf16.msra.mxu0 0
    %3206 = vmatprep.subr.bf16.mxu0 0
    %3207 = vmatpush2.bf16.msra.mxu0 0
    %3208 = vmatprep.subr.bf16.mxu0 0
    %3209 = vmatpush2.bf16.msra.mxu0 0
    %3210 = vmatprep.subr.bf16.mxu0 0
    %3211 = vmatpush2.bf16.msra.mxu0 0
    %3212 = vmatprep.subr.bf16.mxu0 0
    %3213 = vmatpush2.bf16.msra.mxu0 0
    %3214 = vmatprep.mubr.bf16.mxu0 0
    %3215 = vmatmul.mubr.bf16.gmra.mxu0 %v3181
    %v3216 = vpop.f32.mrf.mxu0
    %v3217 = vadd.f32 0.0, %v3216
    %v3218 = vpop.f32.mrf.mxu0
    %v3219 = vadd.f32 0.0, %v3218
    %v3220 = vpop.f32.mrf.mxu0
    %v3221 = vadd.f32 0.0, %v3220
    %v3222 = vpop.f32.mrf.mxu0
    %v3223 = vadd.f32 0.0, %v3222
    %3224 = vdwg.mxu0
    %3225 = vmatprep.subr.bf16.mxu0 %v746
    %3226 = vmatpush1.bf16.msra.mxu0 %v745
    %3227 = vmatprep.subr.bf16.mxu0 %v742
    %3228 = vmatpush1.bf16.msra.mxu0 %v741
    %3229 = vmatprep.subr.bf16.mxu0 %v738
    %3230 = vmatpush1.bf16.msra.mxu0 %v737
    %3231 = vmatprep.subr.bf16.mxu0 %v734
    %3232 = vmatpush1.bf16.msra.mxu0 %v733
    %3233 = vmatprep.subr.bf16.mxu0 %v730
    %3234 = vmatpush1.bf16.msra.mxu0 %v729
    %3235 = vmatprep.subr.bf16.mxu0 %v726
    %3236 = vmatpush1.bf16.msra.mxu0 %v725
    %3237 = vmatprep.subr.bf16.mxu0 %v722
    %3238 = vmatpush1.bf16.msra.mxu0 %v721
    %3239 = vmatprep.subr.bf16.mxu0 %v718
    %3240 = vmatpush1.bf16.msra.mxu0 %v717
    %3241 = vmatprep.subr.bf16.mxu0 0
    %3242 = vmatpush2.bf16.msra.mxu0 0
    %3243 = vmatprep.subr.bf16.mxu0 0
    %3244 = vmatpush2.bf16.msra.mxu0 0
    %3245 = vmatprep.subr.bf16.mxu0 0
    %3246 = vmatpush2.bf16.msra.mxu0 0
    %3247 = vmatprep.subr.bf16.mxu0 0
    %3248 = vmatpush2.bf16.msra.mxu0 0
    %3249 = vmatprep.subr.bf16.mxu0 0
    %3250 = vmatpush2.bf16.msra.mxu0 0
    %3251 = vmatprep.subr.bf16.mxu0 0
    %3252 = vmatpush2.bf16.msra.mxu0 0
    %3253 = vmatprep.subr.bf16.mxu0 0
    %3254 = vmatpush2.bf16.msra.mxu0 0
    %3255 = vmatprep.subr.bf16.mxu0 0
    %3256 = vmatpush2.bf16.msra.mxu0 0
    %3257 = vmatprep.mubr.bf16.mxu0 0
    %3258 = vmatmul.mubr.bf16.gmra.mxu0 %v3181
    %v3259 = vpop.f32.mrf.mxu0
    %v3260 = vadd.f32 0.0, %v3259
    %v3261 = vpop.f32.mrf.mxu0
    %v3262 = vadd.f32 0.0, %v3261
    %v3263 = vpop.f32.mrf.mxu0
    %v3264 = vadd.f32 0.0, %v3263
    %v3265 = vpop.f32.mrf.mxu0
    %v3266 = vadd.f32 0.0, %v3265
    %3267 = vdwg.mxu0
    %v3268 = vadd.f32 %v465, %v3217
    %v3269 = vadd.f32 %v467, %v3219
    %v3270 = vadd.f32 %v508, %v3260
    %v3271 = vadd.f32 %v510, %v3262
    %v3272 = vadd.f32 %v469, %v3221
    %v3273 = vadd.f32 %v471, %v3223
    %v3274 = vadd.f32 %v512, %v3264
    %v3275 = vadd.f32 %v514, %v3266
    %3276 = vmatprep.subr.bf16.mxu0 %v998
    %3277 = vmatpush1.bf16.msra.mxu0 %v997
    %3278 = vmatprep.subr.bf16.mxu0 %v994
    %3279 = vmatpush1.bf16.msra.mxu0 %v993
    %3280 = vmatprep.subr.bf16.mxu0 %v990
    %3281 = vmatpush1.bf16.msra.mxu0 %v989
    %3282 = vmatprep.subr.bf16.mxu0 %v986
    %3283 = vmatpush1.bf16.msra.mxu0 %v985
    %3284 = vmatprep.subr.bf16.mxu0 %v982
    %3285 = vmatpush1.bf16.msra.mxu0 %v981
    %3286 = vmatprep.subr.bf16.mxu0 %v978
    %3287 = vmatpush1.bf16.msra.mxu0 %v977
    %3288 = vmatprep.subr.bf16.mxu0 %v974
    %3289 = vmatpush1.bf16.msra.mxu0 %v973
    %3290 = vmatprep.subr.bf16.mxu0 %v970
    %3291 = vmatpush1.bf16.msra.mxu0 %v969
    %3292 = vmatprep.subr.bf16.mxu0 0
    %3293 = vmatpush2.bf16.msra.mxu0 0
    %3294 = vmatprep.subr.bf16.mxu0 0
    %3295 = vmatpush2.bf16.msra.mxu0 0
    %3296 = vmatprep.subr.bf16.mxu0 0
    %3297 = vmatpush2.bf16.msra.mxu0 0
    %3298 = vmatprep.subr.bf16.mxu0 0
    %3299 = vmatpush2.bf16.msra.mxu0 0
    %3300 = vmatprep.subr.bf16.mxu0 0
    %3301 = vmatpush2.bf16.msra.mxu0 0
    %3302 = vmatprep.subr.bf16.mxu0 0
    %3303 = vmatpush2.bf16.msra.mxu0 0
    %3304 = vmatprep.subr.bf16.mxu0 0
    %3305 = vmatpush2.bf16.msra.mxu0 0
    %3306 = vmatprep.subr.bf16.mxu0 0
    %3307 = vmatpush2.bf16.msra.mxu0 0
    %3308 = vmatprep.mubr.bf16.mxu0 0
    %3309 = vmatmul.mubr.bf16.gmra.mxu0 %v3052
    %v3310 = vpop.f32.mrf.mxu0
    %v3311 = vadd.f32 0.0, %v3310
    %v3312 = vpop.f32.mrf.mxu0
    %v3313 = vadd.f32 0.0, %v3312
    %v3314 = vpop.f32.mrf.mxu0
    %v3315 = vadd.f32 0.0, %v3314
    %v3316 = vpop.f32.mrf.mxu0
    %v3317 = vadd.f32 0.0, %v3316
    %3318 = vdwg.mxu0
    %3319 = vmatprep.subr.bf16.mxu0 %v1000
    %3320 = vmatpush1.bf16.msra.mxu0 %v999
    %3321 = vmatprep.subr.bf16.mxu0 %v996
    %3322 = vmatpush1.bf16.msra.mxu0 %v995
    %3323 = vmatprep.subr.bf16.mxu0 %v992
    %3324 = vmatpush1.bf16.msra.mxu0 %v991
    %3325 = vmatprep.subr.bf16.mxu0 %v988
    %3326 = vmatpush1.bf16.msra.mxu0 %v987
    %3327 = vmatprep.subr.bf16.mxu0 %v984
    %3328 = vmatpush1.bf16.msra.mxu0 %v983
    %3329 = vmatprep.subr.bf16.mxu0 %v980
    %3330 = vmatpush1.bf16.msra.mxu0 %v979
    %3331 = vmatprep.subr.bf16.mxu0 %v976
    %3332 = vmatpush1.bf16.msra.mxu0 %v975
    %3333 = vmatprep.subr.bf16.mxu0 %v972
    %3334 = vmatpush1.bf16.msra.mxu0 %v971
    %3335 = vmatprep.subr.bf16.mxu0 0
    %3336 = vmatpush2.bf16.msra.mxu0 0
    %3337 = vmatprep.subr.bf16.mxu0 0
    %3338 = vmatpush2.bf16.msra.mxu0 0
    %3339 = vmatprep.subr.bf16.mxu0 0
    %3340 = vmatpush2.bf16.msra.mxu0 0
    %3341 = vmatprep.subr.bf16.mxu0 0
    %3342 = vmatpush2.bf16.msra.mxu0 0
    %3343 = vmatprep.subr.bf16.mxu0 0
    %3344 = vmatpush2.bf16.msra.mxu0 0
    %3345 = vmatprep.subr.bf16.mxu0 0
    %3346 = vmatpush2.bf16.msra.mxu0 0
    %3347 = vmatprep.subr.bf16.mxu0 0
    %3348 = vmatpush2.bf16.msra.mxu0 0
    %3349 = vmatprep.subr.bf16.mxu0 0
    %3350 = vmatpush2.bf16.msra.mxu0 0
    %3351 = vmatprep.mubr.bf16.mxu0 0
    %3352 = vmatmul.mubr.bf16.gmra.mxu0 %v3052
    %v3353 = vpop.f32.mrf.mxu0
    %v3354 = vadd.f32 0.0, %v3353
    %v3355 = vpop.f32.mrf.mxu0
    %v3356 = vadd.f32 0.0, %v3355
    %v3357 = vpop.f32.mrf.mxu0
    %v3358 = vadd.f32 0.0, %v3357
    %v3359 = vpop.f32.mrf.mxu0
    %v3360 = vadd.f32 0.0, %v3359
    %3361 = vdwg.mxu0
    %v3362 = vadd.f32 %v3268, %v3311
    %v3363 = vadd.f32 %v3269, %v3313
    %v3364 = vadd.f32 %v3270, %v3354
    %v3365 = vadd.f32 %v3271, %v3356
    %v3366 = vadd.f32 %v3272, %v3315
    %v3367 = vadd.f32 %v3273, %v3317
    %v3368 = vadd.f32 %v3274, %v3358
    %v3369 = vadd.f32 %v3275, %v3360
    %v3370 = vxor.u32 %v3362, 2147483648
    %v3371 = vxor.u32 %v3366, 2147483648
    %v3372 = vmul.f32 %v3370, 1.442695
    %v3373 = vpow.pop %v3372
    %v3374 = vmul.f32 %v3371, 1.442695
    %v3375 = vpow.pop %v3374
    %v3376 = vadd.f32 %v3373, 1.0
    %v3377 = vadd.f32 %v3375, 1.0
    %v3378 = vrcp.pop %v3376
    %v3379 = vmul.f32 1.0, %v3378
    %v3380 = vrcp.pop %v3377
    %v3381 = vmul.f32 1.0, %v3380
    %v3382 = vxor.u32 %v3363, 2147483648
    %v3383 = vxor.u32 %v3367, 2147483648
    %v3384 = vmul.f32 %v3382, 1.442695
    %v3385 = vpow.pop %v3384
    %v3386 = vmul.f32 %v3383, 1.442695
    %v3387 = vpow.pop %v3386
    %v3388 = vadd.f32 %v3385, 1.0
    %v3389 = vadd.f32 %v3387, 1.0
    %v3390 = vrcp.pop %v3388
    %v3391 = vmul.f32 1.0, %v3390
    %v3392 = vrcp.pop %v3389
    %v3393 = vmul.f32 1.0, %v3392
    %v3394 = vtanh.pop %v3364
    %v3395 = vtanh.pop %v3368
    %v3396 = vxor.u32 %v3365, 2147483648
    %v3397 = vxor.u32 %v3369, 2147483648
    %v3398 = vmul.f32 %v3396, 1.442695
    %v3399 = vpow.pop %v3398
    %v3400 = vmul.f32 %v3397, 1.442695
    %v3401 = vpow.pop %v3400
    %v3402 = vadd.f32 %v3399, 1.0
    %v3403 = vadd.f32 %v3401, 1.0
    %v3404 = vrcp.pop %v3402
    %v3405 = vmul.f32 1.0, %v3404
    %v3406 = vrcp.pop %v3403
    %v3407 = vmul.f32 1.0, %v3406
    %v3408 = vmul.f32 %v3391, %v3046
    %v3409 = vmul.f32 %v3393, %v3047
    %v3410 = vmul.f32 %v3379, %v3394
    %v3411 = vmul.f32 %v3381, %v3395
    %v3412 = vadd.f32 %v3408, %v3410
    %v3413 = vadd.f32 %v3409, %v3411
    %v3414 = vtanh.pop %v3412
    %v3415 = vtanh.pop %v3413
    %v3416 = vmul.f32 %v3405, %v3414
    %v3417 = vmul.f32 %v3407, %v3415
    %v3418 = vpack.c.bf16 %v3417, %v3416
    %3419 = vmatprep.subr.bf16.mxu0 0
    %3420 = vmatpush1.bf16.msra.mxu0 %v1215
    %3421 = vmatprep.subr.bf16.mxu0 0
    %3422 = vmatpush1.bf16.msra.mxu0 %v1214
    %3423 = vmatprep.subr.bf16.mxu0 0
    %3424 = vmatpush1.bf16.msra.mxu0 %v1213
    %3425 = vmatprep.subr.bf16.mxu0 0
    %3426 = vmatpush1.bf16.msra.mxu0 %v1212
    %3427 = vmatprep.subr.bf16.mxu0 0
    %3428 = vmatpush1.bf16.msra.mxu0 %v1211
    %3429 = vmatprep.subr.bf16.mxu0 0
    %3430 = vmatpush1.bf16.msra.mxu0 %v1210
    %3431 = vmatprep.subr.bf16.mxu0 0
    %3432 = vmatpush1.bf16.msra.mxu0 %v1209
    %3433 = vmatprep.subr.bf16.mxu0 0
    %3434 = vmatpush1.bf16.msra.mxu0 %v1208
    %3435 = vmatprep.subr.bf16.mxu0 0
    %3436 = vmatpush2.bf16.msra.mxu0 0
    %3437 = vmatprep.subr.bf16.mxu0 0
    %3438 = vmatpush2.bf16.msra.mxu0 0
    %3439 = vmatprep.subr.bf16.mxu0 0
    %3440 = vmatpush2.bf16.msra.mxu0 0
    %3441 = vmatprep.subr.bf16.mxu0 0
    %3442 = vmatpush2.bf16.msra.mxu0 0
    %3443 = vmatprep.subr.bf16.mxu0 0
    %3444 = vmatpush2.bf16.msra.mxu0 0
    %3445 = vmatprep.subr.bf16.mxu0 0
    %3446 = vmatpush2.bf16.msra.mxu0 0
    %3447 = vmatprep.subr.bf16.mxu0 0
    %3448 = vmatpush2.bf16.msra.mxu0 0
    %3449 = vmatprep.subr.bf16.mxu0 0
    %3450 = vmatpush2.bf16.msra.mxu0 0
    %3451 = vmatprep.mubr.bf16.mxu0 0
    %3452 = vmatmul.mubr.bf16.gmra.mxu0 %v3418
    %v3453 = vpop.f32.mrf.mxu0
    %v3454 = vadd.f32 %v521, %v3453
    %v3455 = vpop.f32.mrf.mxu0
    %v3456 = vpop.f32.mrf.mxu0
    %v3457 = vadd.f32 %v521, %v3456
    %v3458 = vpop.f32.mrf.mxu0
    %3459 = vdwg.mxu0
    %s3460 = scalar_lea.vmem [#allocation13], 96
    %3461 = vst [vmem:[%s3460] sm:$0xff] %v3454
    %3462 = vst [vmem:[%s3460 + $0x8] sm:$0xff] %v3457
    %3463 = vmax.xlane.f32.xlu0 %v3454
    %v3464 = vpop.xlane.xlu0 %3463
    %3465 = vmax.xlane.f32.xlu0 %v3457
    %v3466 = vpop.xlane.xlu0 %3465
    %vm3467 = vcmp.eq.f32.partialorder %v3454, %v3464
    %vm3468 = vcmp.eq.f32.partialorder %v3457, %v3466
    %v3469 = vsel %vm3467, %v524, 128
    %v3470 = vsel %vm3468, %v524, 128
    %v3471 = vand.u32 %v3469, 65535
    %v3472 = vshra.s32 %v3469, 16
    %v3473 = vcvt.s32.f32 %v3471
    %v3474 = vcvt.s32.f32 %v3472
    %3475 = vmin.xlane.f32.xlu0 %v3474
    %v3476 = vpop.xlane.xlu0 %3475
    %vm3477 = vcmp.eq.f32.partialorder %v3474, %v3476
    %v3478 = vsel %vm3477, %v3473, inf
    %3479 = vmin.xlane.f32.xlu0 %v3478
    %v3480 = vpop.xlane.xlu0 %3479
    %v3481 = vcvt.f32.s32 %v3480
    %v3482 = vcvt.f32.s32 %v3476
    %v3483 = vshll.u32 %v3482, 16
    %v3484 = vadd.s32 %v3483, %v3481
    %v3485 = vand.u32 %v3470, 65535
    %v3486 = vshra.s32 %v3470, 16
    %v3487 = vcvt.s32.f32 %v3485
    %v3488 = vcvt.s32.f32 %v3486
    %3489 = vmin.xlane.f32.xlu0 %v3488
    %v3490 = vpop.xlane.xlu0 %3489
    %vm3491 = vcmp.eq.f32.partialorder %v3488, %v3490
    %v3492 = vsel %vm3491, %v3487, inf
    %3493 = vmin.xlane.f32.xlu0 %v3492
    %v3494 = vpop.xlane.xlu0 %3493
    %v3495 = vcvt.f32.s32 %v3494
    %v3496 = vcvt.f32.s32 %v3490
    %v3497 = vshll.u32 %v3496, 16
    %v3498 = vadd.s32 %v3497, %v3495
    %vm3499 = vcmp.eq.s32.totalorder %v524, %v3484
    %vm3500 = vcmp.eq.s32.totalorder %v524, %v3498
    %v3501 = vsel %vm3499, 1, 0
    %v3502 = vsel %vm3500, 1, 0
    %v3503 = vcvt.s32.f32 %v3501
    %v3504 = vcvt.s32.f32 %v3502
    %v3505 = vpack.c.bf16 %v3504, %v3503
    %3506 = vmatprep.subr.bf16.mxu0 0
    %3507 = vmatpush1.bf16.msra.mxu0 %v568
    %3508 = vmatprep.subr.bf16.mxu0 0
    %3509 = vmatpush1.bf16.msra.mxu0 %v567
    %3510 = vmatprep.subr.bf16.mxu0 0
    %3511 = vmatpush1.bf16.msra.mxu0 %v566
    %3512 = vmatprep.subr.bf16.mxu0 0
    %3513 = vmatpush1.bf16.msra.mxu0 %v565
    %3514 = vmatprep.subr.bf16.mxu0 0
    %3515 = vmatpush1.bf16.msra.mxu0 %v564
    %3516 = vmatprep.subr.bf16.mxu0 0
    %3517 = vmatpush1.bf16.msra.mxu0 %v563
    %3518 = vmatprep.subr.bf16.mxu0 0
    %3519 = vmatpush1.bf16.msra.mxu0 %v562
    %3520 = vmatprep.subr.bf16.mxu0 0
    %3521 = vmatpush1.bf16.msra.mxu0 %v561
    %3522 = vmatprep.subr.bf16.mxu0 0
    %3523 = vmatpush2.bf16.msra.mxu0 0
    %3524 = vmatprep.subr.bf16.mxu0 0
    %3525 = vmatpush2.bf16.msra.mxu0 0
    %3526 = vmatprep.subr.bf16.mxu0 0
    %3527 = vmatpush2.bf16.msra.mxu0 0
    %3528 = vmatprep.subr.bf16.mxu0 0
    %3529 = vmatpush2.bf16.msra.mxu0 0
    %3530 = vmatprep.subr.bf16.mxu0 0
    %3531 = vmatpush2.bf16.msra.mxu0 0
    %3532 = vmatprep.subr.bf16.mxu0 0
    %3533 = vmatpush2.bf16.msra.mxu0 0
    %3534 = vmatprep.subr.bf16.mxu0 0
    %3535 = vmatpush2.bf16.msra.mxu0 0
    %3536 = vmatprep.subr.bf16.mxu0 0
    %3537 = vmatpush2.bf16.msra.mxu0 0
    %3538 = vmatprep.mubr.bf16.mxu0 0
    %3539 = vmatmul.mubr.bf16.gmra.mxu0 %v3505
    %v3540 = vpop.f32.mrf.mxu0
    %v3541 = vadd.f32 0.0, %v3540
    %v3542 = vpop.f32.mrf.mxu0
    %v3543 = vpop.f32.mrf.mxu0
    %v3544 = vadd.f32 0.0, %v3543
    %v3545 = vpop.f32.mrf.mxu0
    %3546 = vdwg.mxu0
    %v3547 = vpack.c.bf16 %v3544, %v3541
    %3548 = vmatprep.subr.bf16.mxu0 %v744
    %3549 = vmatpush1.bf16.msra.mxu0 %v743
    %3550 = vmatprep.subr.bf16.mxu0 %v740
    %3551 = vmatpush1.bf16.msra.mxu0 %v739
    %3552 = vmatprep.subr.bf16.mxu0 %v736
    %3553 = vmatpush1.bf16.msra.mxu0 %v735
    %3554 = vmatprep.subr.bf16.mxu0 %v732
    %3555 = vmatpush1.bf16.msra.mxu0 %v731
    %3556 = vmatprep.subr.bf16.mxu0 %v728
    %3557 = vmatpush1.bf16.msra.mxu0 %v727
    %3558 = vmatprep.subr.bf16.mxu0 %v724
    %3559 = vmatpush1.bf16.msra.mxu0 %v723
    %3560 = vmatprep.subr.bf16.mxu0 %v720
    %3561 = vmatpush1.bf16.msra.mxu0 %v719
    %3562 = vmatprep.subr.bf16.mxu0 %v716
    %3563 = vmatpush1.bf16.msra.mxu0 %v715
    %3564 = vmatprep.subr.bf16.mxu0 0
    %3565 = vmatpush2.bf16.msra.mxu0 0
    %3566 = vmatprep.subr.bf16.mxu0 0
    %3567 = vmatpush2.bf16.msra.mxu0 0
    %3568 = vmatprep.subr.bf16.mxu0 0
    %3569 = vmatpush2.bf16.msra.mxu0 0
    %3570 = vmatprep.subr.bf16.mxu0 0
    %3571 = vmatpush2.bf16.msra.mxu0 0
    %3572 = vmatprep.subr.bf16.mxu0 0
    %3573 = vmatpush2.bf16.msra.mxu0 0
    %3574 = vmatprep.subr.bf16.mxu0 0
    %3575 = vmatpush2.bf16.msra.mxu0 0
    %3576 = vmatprep.subr.bf16.mxu0 0
    %3577 = vmatpush2.bf16.msra.mxu0 0
    %3578 = vmatprep.subr.bf16.mxu0 0
    %3579 = vmatpush2.bf16.msra.mxu0 0
    %3580 = vmatprep.mubr.bf16.mxu0 0
    %3581 = vmatmul.mubr.bf16.gmra.mxu0 %v3547
    %v3582 = vpop.f32.mrf.mxu0
    %v3583 = vadd.f32 0.0, %v3582
    %v3584 = vpop.f32.mrf.mxu0
    %v3585 = vadd.f32 0.0, %v3584
    %v3586 = vpop.f32.mrf.mxu0
    %v3587 = vadd.f32 0.0, %v3586
    %v3588 = vpop.f32.mrf.mxu0
    %v3589 = vadd.f32 0.0, %v3588
    %3590 = vdwg.mxu0
    %3591 = vmatprep.subr.bf16.mxu0 %v746
    %3592 = vmatpush1.bf16.msra.mxu0 %v745
    %3593 = vmatprep.subr.bf16.mxu0 %v742
    %3594 = vmatpush1.bf16.msra.mxu0 %v741
    %3595 = vmatprep.subr.bf16.mxu0 %v738
    %3596 = vmatpush1.bf16.msra.mxu0 %v737
    %3597 = vmatprep.subr.bf16.mxu0 %v734
    %3598 = vmatpush1.bf16.msra.mxu0 %v733
    %3599 = vmatprep.subr.bf16.mxu0 %v730
    %3600 = vmatpush1.bf16.msra.mxu0 %v729
    %3601 = vmatprep.subr.bf16.mxu0 %v726
    %3602 = vmatpush1.bf16.msra.mxu0 %v725
    %3603 = vmatprep.subr.bf16.mxu0 %v722
    %3604 = vmatpush1.bf16.msra.mxu0 %v721
    %3605 = vmatprep.subr.bf16.mxu0 %v718
    %3606 = vmatpush1.bf16.msra.mxu0 %v717
    %3607 = vmatprep.subr.bf16.mxu0 0
    %3608 = vmatpush2.bf16.msra.mxu0 0
    %3609 = vmatprep.subr.bf16.mxu0 0
    %3610 = vmatpush2.bf16.msra.mxu0 0
    %3611 = vmatprep.subr.bf16.mxu0 0
    %3612 = vmatpush2.bf16.msra.mxu0 0
    %3613 = vmatprep.subr.bf16.mxu0 0
    %3614 = vmatpush2.bf16.msra.mxu0 0
    %3615 = vmatprep.subr.bf16.mxu0 0
    %3616 = vmatpush2.bf16.msra.mxu0 0
    %3617 = vmatprep.subr.bf16.mxu0 0
    %3618 = vmatpush2.bf16.msra.mxu0 0
    %3619 = vmatprep.subr.bf16.mxu0 0
    %3620 = vmatpush2.bf16.msra.mxu0 0
    %3621 = vmatprep.subr.bf16.mxu0 0
    %3622 = vmatpush2.bf16.msra.mxu0 0
    %3623 = vmatprep.mubr.bf16.mxu0 0
    %3624 = vmatmul.mubr.bf16.gmra.mxu0 %v3547
    %v3625 = vpop.f32.mrf.mxu0
    %v3626 = vadd.f32 0.0, %v3625
    %v3627 = vpop.f32.mrf.mxu0
    %v3628 = vadd.f32 0.0, %v3627
    %v3629 = vpop.f32.mrf.mxu0
    %v3630 = vadd.f32 0.0, %v3629
    %v3631 = vpop.f32.mrf.mxu0
    %v3632 = vadd.f32 0.0, %v3631
    %3633 = vdwg.mxu0
    %v3634 = vadd.f32 %v465, %v3583
    %v3635 = vadd.f32 %v467, %v3585
    %v3636 = vadd.f32 %v508, %v3626
    %v3637 = vadd.f32 %v510, %v3628
    %v3638 = vadd.f32 %v469, %v3587
    %v3639 = vadd.f32 %v471, %v3589
    %v3640 = vadd.f32 %v512, %v3630
    %v3641 = vadd.f32 %v514, %v3632
    %3642 = vmatprep.subr.bf16.mxu0 %v998
    %3643 = vmatpush1.bf16.msra.mxu0 %v997
    %3644 = vmatprep.subr.bf16.mxu0 %v994
    %3645 = vmatpush1.bf16.msra.mxu0 %v993
    %3646 = vmatprep.subr.bf16.mxu0 %v990
    %3647 = vmatpush1.bf16.msra.mxu0 %v989
    %3648 = vmatprep.subr.bf16.mxu0 %v986
    %3649 = vmatpush1.bf16.msra.mxu0 %v985
    %3650 = vmatprep.subr.bf16.mxu0 %v982
    %3651 = vmatpush1.bf16.msra.mxu0 %v981
    %3652 = vmatprep.subr.bf16.mxu0 %v978
    %3653 = vmatpush1.bf16.msra.mxu0 %v977
    %3654 = vmatprep.subr.bf16.mxu0 %v974
    %3655 = vmatpush1.bf16.msra.mxu0 %v973
    %3656 = vmatprep.subr.bf16.mxu0 %v970
    %3657 = vmatpush1.bf16.msra.mxu0 %v969
    %3658 = vmatprep.subr.bf16.mxu0 0
    %3659 = vmatpush2.bf16.msra.mxu0 0
    %3660 = vmatprep.subr.bf16.mxu0 0
    %3661 = vmatpush2.bf16.msra.mxu0 0
    %3662 = vmatprep.subr.bf16.mxu0 0
    %3663 = vmatpush2.bf16.msra.mxu0 0
    %3664 = vmatprep.subr.bf16.mxu0 0
    %3665 = vmatpush2.bf16.msra.mxu0 0
    %3666 = vmatprep.subr.bf16.mxu0 0
    %3667 = vmatpush2.bf16.msra.mxu0 0
    %3668 = vmatprep.subr.bf16.mxu0 0
    %3669 = vmatpush2.bf16.msra.mxu0 0
    %3670 = vmatprep.subr.bf16.mxu0 0
    %3671 = vmatpush2.bf16.msra.mxu0 0
    %3672 = vmatprep.subr.bf16.mxu0 0
    %3673 = vmatpush2.bf16.msra.mxu0 0
    %3674 = vmatprep.mubr.bf16.mxu0 0
    %3675 = vmatmul.mubr.bf16.gmra.mxu0 %v3418
    %v3676 = vpop.f32.mrf.mxu0
    %v3677 = vadd.f32 0.0, %v3676
    %v3678 = vpop.f32.mrf.mxu0
    %v3679 = vadd.f32 0.0, %v3678
    %v3680 = vpop.f32.mrf.mxu0
    %v3681 = vadd.f32 0.0, %v3680
    %v3682 = vpop.f32.mrf.mxu0
    %v3683 = vadd.f32 0.0, %v3682
    %3684 = vdwg.mxu0
    %3685 = vmatprep.subr.bf16.mxu0 %v1000
    %3686 = vmatpush1.bf16.msra.mxu0 %v999
    %3687 = vmatprep.subr.bf16.mxu0 %v996
    %3688 = vmatpush1.bf16.msra.mxu0 %v995
    %3689 = vmatprep.subr.bf16.mxu0 %v992
    %3690 = vmatpush1.bf16.msra.mxu0 %v991
    %3691 = vmatprep.subr.bf16.mxu0 %v988
    %3692 = vmatpush1.bf16.msra.mxu0 %v987
    %3693 = vmatprep.subr.bf16.mxu0 %v984
    %3694 = vmatpush1.bf16.msra.mxu0 %v983
    %3695 = vmatprep.subr.bf16.mxu0 %v980
    %3696 = vmatpush1.bf16.msra.mxu0 %v979
    %3697 = vmatprep.subr.bf16.mxu0 %v976
    %3698 = vmatpush1.bf16.msra.mxu0 %v975
    %3699 = vmatprep.subr.bf16.mxu0 %v972
    %3700 = vmatpush1.bf16.msra.mxu0 %v971
    %3701 = vmatprep.subr.bf16.mxu0 0
    %3702 = vmatpush2.bf16.msra.mxu0 0
    %3703 = vmatprep.subr.bf16.mxu0 0
    %3704 = vmatpush2.bf16.msra.mxu0 0
    %3705 = vmatprep.subr.bf16.mxu0 0
    %3706 = vmatpush2.bf16.msra.mxu0 0
    %3707 = vmatprep.subr.bf16.mxu0 0
    %3708 = vmatpush2.bf16.msra.mxu0 0
    %3709 = vmatprep.subr.bf16.mxu0 0
    %3710 = vmatpush2.bf16.msra.mxu0 0
    %3711 = vmatprep.subr.bf16.mxu0 0
    %3712 = vmatpush2.bf16.msra.mxu0 0
    %3713 = vmatprep.subr.bf16.mxu0 0
    %3714 = vmatpush2.bf16.msra.mxu0 0
    %3715 = vmatprep.subr.bf16.mxu0 0
    %3716 = vmatpush2.bf16.msra.mxu0 0
    %3717 = vmatprep.mubr.bf16.mxu0 0
    %3718 = vmatmul.mubr.bf16.gmra.mxu0 %v3418
    %v3719 = vpop.f32.mrf.mxu0
    %v3720 = vadd.f32 0.0, %v3719
    %v3721 = vpop.f32.mrf.mxu0
    %v3722 = vadd.f32 0.0, %v3721
    %v3723 = vpop.f32.mrf.mxu0
    %v3724 = vadd.f32 0.0, %v3723
    %v3725 = vpop.f32.mrf.mxu0
    %v3726 = vadd.f32 0.0, %v3725
    %3727 = vdwg.mxu0
    %v3728 = vadd.f32 %v3634, %v3677
    %v3729 = vadd.f32 %v3635, %v3679
    %v3730 = vadd.f32 %v3636, %v3720
    %v3731 = vadd.f32 %v3637, %v3722
    %v3732 = vadd.f32 %v3638, %v3681
    %v3733 = vadd.f32 %v3639, %v3683
    %v3734 = vadd.f32 %v3640, %v3724
    %v3735 = vadd.f32 %v3641, %v3726
    %v3736 = vxor.u32 %v3728, 2147483648
    %v3737 = vxor.u32 %v3732, 2147483648
    %v3738 = vmul.f32 %v3736, 1.442695
    %v3739 = vpow.pop %v3738
    %v3740 = vmul.f32 %v3737, 1.442695
    %v3741 = vpow.pop %v3740
    %v3742 = vadd.f32 %v3739, 1.0
    %v3743 = vadd.f32 %v3741, 1.0
    %v3744 = vrcp.pop %v3742
    %v3745 = vmul.f32 1.0, %v3744
    %v3746 = vrcp.pop %v3743
    %v3747 = vmul.f32 1.0, %v3746
    %v3748 = vxor.u32 %v3729, 2147483648
    %v3749 = vxor.u32 %v3733, 2147483648
    %v3750 = vmul.f32 %v3748, 1.442695
    %v3751 = vpow.pop %v3750
    %v3752 = vmul.f32 %v3749, 1.442695
    %v3753 = vpow.pop %v3752
    %v3754 = vadd.f32 %v3751, 1.0
    %v3755 = vadd.f32 %v3753, 1.0
    %v3756 = vrcp.pop %v3754
    %v3757 = vmul.f32 1.0, %v3756
    %v3758 = vrcp.pop %v3755
    %v3759 = vmul.f32 1.0, %v3758
    %v3760 = vtanh.pop %v3730
    %v3761 = vtanh.pop %v3734
    %v3762 = vxor.u32 %v3731, 2147483648
    %v3763 = vxor.u32 %v3735, 2147483648
    %v3764 = vmul.f32 %v3762, 1.442695
    %v3765 = vpow.pop %v3764
    %v3766 = vmul.f32 %v3763, 1.442695
    %v3767 = vpow.pop %v3766
    %v3768 = vadd.f32 %v3765, 1.0
    %v3769 = vadd.f32 %v3767, 1.0
    %v3770 = vrcp.pop %v3768
    %v3771 = vmul.f32 1.0, %v3770
    %v3772 = vrcp.pop %v3769
    %v3773 = vmul.f32 1.0, %v3772
    %v3774 = vmul.f32 %v3757, %v3412
    %v3775 = vmul.f32 %v3759, %v3413
    %v3776 = vmul.f32 %v3745, %v3760
    %v3777 = vmul.f32 %v3747, %v3761
    %v3778 = vadd.f32 %v3774, %v3776
    %v3779 = vadd.f32 %v3775, %v3777
    %v3780 = vtanh.pop %v3778
    %v3781 = vtanh.pop %v3779
    %v3782 = vmul.f32 %v3771, %v3780
    %v3783 = vmul.f32 %v3773, %v3781
    %v3784 = vpack.c.bf16 %v3783, %v3782
    %3785 = vmatprep.subr.bf16.mxu0 0
    %3786 = vmatpush1.bf16.msra.mxu0 %v1215
    %3787 = vmatprep.subr.bf16.mxu0 0
    %3788 = vmatpush1.bf16.msra.mxu0 %v1214
    %3789 = vmatprep.subr.bf16.mxu0 0
    %3790 = vmatpush1.bf16.msra.mxu0 %v1213
    %3791 = vmatprep.subr.bf16.mxu0 0
    %3792 = vmatpush1.bf16.msra.mxu0 %v1212
    %3793 = vmatprep.subr.bf16.mxu0 0
    %3794 = vmatpush1.bf16.msra.mxu0 %v1211
    %3795 = vmatprep.subr.bf16.mxu0 0
    %3796 = vmatpush1.bf16.msra.mxu0 %v1210
    %3797 = vmatprep.subr.bf16.mxu0 0
    %3798 = vmatpush1.bf16.msra.mxu0 %v1209
    %3799 = vmatprep.subr.bf16.mxu0 0
    %3800 = vmatpush1.bf16.msra.mxu0 %v1208
    %3801 = vmatprep.subr.bf16.mxu0 0
    %3802 = vmatpush2.bf16.msra.mxu0 0
    %3803 = vmatprep.subr.bf16.mxu0 0
    %3804 = vmatpush2.bf16.msra.mxu0 0
    %3805 = vmatprep.subr.bf16.mxu0 0
    %3806 = vmatpush2.bf16.msra.mxu0 0
    %3807 = vmatprep.subr.bf16.mxu0 0
    %3808 = vmatpush2.bf16.msra.mxu0 0
    %3809 = vmatprep.subr.bf16.mxu0 0
    %3810 = vmatpush2.bf16.msra.mxu0 0
    %3811 = vmatprep.subr.bf16.mxu0 0
    %3812 = vmatpush2.bf16.msra.mxu0 0
    %3813 = vmatprep.subr.bf16.mxu0 0
    %3814 = vmatpush2.bf16.msra.mxu0 0
    %3815 = vmatprep.subr.bf16.mxu0 0
    %3816 = vmatpush2.bf16.msra.mxu0 0
    %3817 = vmatprep.mubr.bf16.mxu0 0
    %3818 = vmatmul.mubr.bf16.gmra.mxu0 %v3784
    %v3819 = vpop.f32.mrf.mxu0
    %v3820 = vadd.f32 %v521, %v3819
    %v3821 = vpop.f32.mrf.mxu0
    %v3822 = vpop.f32.mrf.mxu0
    %v3823 = vadd.f32 %v521, %v3822
    %v3824 = vpop.f32.mrf.mxu0
    %3825 = vdwg.mxu0
    %s3826 = scalar_lea.vmem [#allocation13], 112
    %3827 = vst [vmem:[%s3826] sm:$0xff] %v3820
    %3828 = vst [vmem:[%s3826 + $0x8] sm:$0xff] %v3823
    %3829 = vst [vmem:[#allocation14] sm:$0xff] %v3782
    %3830 = vst [vmem:[#allocation14 + $0x8] sm:$0xff] %v3783
    %3831 = vst [vmem:[#allocation16] sm:$0xff] %v3778
    %3832 = vst [vmem:[#allocation16 + $0x8] sm:$0xff] %v3779
    // Predicated region
    $region58: #{tpu_custom_call.1} parent=1 // pred_check
      _
    $region59: #{tpu_custom_call.1} parent=1 // pred_check_branch
      %3834 = sbr.rel (0) target = $region61
    $region60: #{tpu_custom_call.1} parent=1 // pred_region
      %s3836 = ssub.s32 2048, 2048
      %3837 = vsyncadd [#allocation4], %s3836
      %s3838 = sshll.u32 [#allocation13], 4
      %s3839 = int_to_ptr.vmem [resolvable:$true] %s3838
      %3844 = dma.vmem_to_hbm [thread:$0]  %s3839, 2048, %s8, [#allocation4], 128, 128, 8
    $region61: #{tpu_custom_call.1} parent=1 // pred_fallthru
      _
    // Predicated region
    $region62: #{tpu_custom_call.1} parent=1 // pred_check
      _
    $region63: #{tpu_custom_call.1} parent=1 // pred_check_branch
      %3846 = sbr.rel (0) target = $region65
    $region64: #{tpu_custom_call.1} parent=1 // pred_region
      %s3848 = ssub.s32 256, 256
      %3849 = vsyncadd [#allocation15], %s3848
      %s3850 = sshll.u32 [#allocation14], 4
      %s3851 = int_to_ptr.vmem [resolvable:$true] %s3850
      %3856 = dma.vmem_to_hbm [thread:$0]  %s3851, 256, %s9, [#allocation15], 128, 128, 8
    $region65: #{tpu_custom_call.1} parent=1 // pred_fallthru
      _
    // Predicated region
    $region66: #{tpu_custom_call.1} parent=1 // pred_check
      _
    $region67: #{tpu_custom_call.1} parent=1 // pred_check_branch
      %3858 = sbr.rel (0) target = $region69
    $region68: #{tpu_custom_call.1} parent=1 // pred_region
      %s3860 = ssub.s32 256, 256
      %3861 = vsyncadd [#allocation15], %s3860
      %s3862 = sshll.u32 [#allocation16], 4
      %s3863 = int_to_ptr.vmem [resolvable:$true] %s3862
      %3868 = dma.vmem_to_hbm [thread:$0]  %s3863, 256, %s10, [#allocation15], 128, 128, 8
    $region69: #{tpu_custom_call.1} parent=1 // pred_fallthru
      _
    // Predicated region
    $region70: #{tpu_custom_call.1} parent=1 // pred_check
      _
    $region71: #{tpu_custom_call.1} parent=1 // pred_check_branch
      %3870 = sbr.rel (0) target = $region73
    $region72: #{tpu_custom_call.1} parent=1 // pred_region
      %3871 = dma.done [#allocation4], 2048
    $region73: #{tpu_custom_call.1} parent=1 // pred_fallthru
      _
    // Predicated region
    $region74: #{tpu_custom_call.1} parent=1 // pred_check
      _
    $region75: #{tpu_custom_call.1} parent=1 // pred_check_branch
      %3873 = sbr.rel (0) target = $region77
    $region76: #{tpu_custom_call.1} parent=1 // pred_region
      %3874 = dma.done [#allocation15], 256
    $region77: #{tpu_custom_call.1} parent=1 // pred_fallthru
      _
    // Predicated region
    $region78: #{tpu_custom_call.1} parent=1 // pred_check
      _
    $region79: #{tpu_custom_call.1} parent=1 // pred_check_branch
      %3876 = sbr.rel (0) target = $region81
    $region80: #{tpu_custom_call.1} parent=1 // pred_region
      %3877 = dma.done [#allocation15], 256
    $region81: #{tpu_custom_call.1} parent=1 // pred_fallthru
      _
    %3878 = vsyncpa [#allocation3], 1
    %3879 = vsyncpa [#allocation6], 1
    %3880 = vsyncpa [#allocation9], 1
    %3881 = vsyncpa [#allocation12], 1
    %3882 = vsyncpa [#allocation4], 1
    %3883 = vsyncpa [#allocation15], 1

</llo_original>
